<compile_context>
chip_gen: v7x
topology: tpu7x:2x2x1
jax: 0.10.0
libtpu: 0.0.40
codegen_flags: <defaults>
</compile_context>

<pallas_src>
import functools

import numpy as np
import jax
import jax.numpy as jnp
from jax.experimental import pallas as pl
from jax.experimental.pallas import tpu as pltpu


# ------------------------------ Pallas kernel ------------------------------ #

def _disc_kernel(x_ref, b_ref, s_ref, o_ref, xs_ref, *,
                 stages, N, G, LP, OUT_R):
    """One grid step == one conv stage (last stage also does pool + sigmoid).

    x_ref : (NH_pad, LP) bf16   padded input activation (fetched once, stage 0)
    b_ref : (3, LP, LP)  bf16   this stage's banded conv weights (streamed)
    s_ref : (1, 1, LP)   f32    this stage's folded BN shift + conv bias row
    o_ref : (OUT_R, LP)  f32    sigmoid(pooled); valid region [ :N, :1 ]
    xs_ref: (ROWS_S, LP) f32    persistent activation scratch (rows G..G+M valid)
    """
    stage = pl.program_id(0)

    for li, st in enumerate(stages):

        @pl.when(stage == li)
        def _(li=li, st=st):
            hin, hout = st['hin'], st['hout']
            wout, cout = st['wout'], st['cout']
            k, s, p = st['k'], st['s'], st['p']
            m_out = N * hout

            if li == 0:
                # Load the bf16 input into the f32 activation scratch once.
                xs_ref[pl.ds(G, x_ref.shape[0]), :] = x_ref[...].astype(jnp.float32)

            need_mask = any((dy - p < 0) or (s * (hout - 1) + dy - p >= hin)
                            for dy in range(k))
            row = (jax.lax.broadcasted_iota(jnp.int32, (m_out, LP), 0)
                   if need_mask else None)

            # ---- row selection per vertical tap (no MXU, no A matmul) ------
            sels = []
            for dy in range(k):
                off = dy - p
                if s == 1:
                    sel = xs_ref[pl.ds(G + off, m_out), :]
                else:
                    parts = [xs_ref[pl.ds(G + n * hin + off, hout, stride=s), :]
                             for n in range(N)]
                    sel = parts[0] if N == 1 else jnp.concatenate(parts, axis=0)
                # Zero rows whose source row falls in the conv zero-padding;
                # this also kills guard-row / cross-batch garbage (NaN-safe).
                lo_bad = off < 0
                hi_bad = s * (hout - 1) + off >= hin
                if lo_bad or hi_bad:
                    bad = jnp.zeros((m_out, LP), jnp.bool_)
                    for n in range(N):
                        if lo_bad:
                            bad = bad | (row == n * hout)
                        if hi_bad:
                            bad = bad | (row == n * hout + hout - 1)
                    sel = jnp.where(bad, 0.0, sel)
                sels.append(sel.astype(jnp.bfloat16))

            # ---- independent banded-weight dots, combined afterwards -------
            contribs = [jnp.dot(sels[dy], b_ref[dy],
                                preferred_element_type=jnp.float32)
                        for dy in range(k)]
            y = contribs[0]
            for c in contribs[1:]:
                y = y + c
            y = y + s_ref[0]                      # folded BN shift + conv bias

            if st['swish']:                       # swish(x) = x * sigmoid(x)
                y = y * pl.reciprocal(1.0 + jnp.exp(-y), approx=True)

            xs_ref[pl.ds(G, m_out), :] = y        # carry activation to next stage

            if li == len(stages) - 1:
                # Global average pool over (hout, wout) + final torch.sigmoid.
                col = jax.lax.broadcasted_iota(jnp.int32, (m_out, LP), 1)
                ym = jnp.where(col < wout * cout, y, 0.0)
                rowsum = jnp.sum(ym, axis=1, keepdims=True) / float(hout * wout)
                if hout > 1:
                    pooled = jnp.concatenate(
                        [jnp.sum(rowsum[n * hout:(n + 1) * hout, :],
                                 axis=0, keepdims=True) for n in range(N)],
                        axis=0)
                else:
                    pooled = rowsum               # (N, 1)
                sig = pl.reciprocal(1.0 + jnp.exp(-pooled), approx=True)
                o_ref[...] = jnp.zeros((OUT_R, LP), jnp.float32)
                o_ref[0:N, 0:1] = sig


# --------------------------- host-side construction ------------------------ #

def build_network(key, num_channel=3, base_filter=8, H=16, W=16):
    """Random params mirroring the PyTorch module, BN folded (inference mode)."""
    bf = base_filter
    cfgs = [dict(cin=num_channel, cout=bf, k=3, s=1, p=1, bn=False, swish=True)]
    for cin, cout, s in [(bf, bf, 2), (bf, 2 * bf, 1), (2 * bf, 2 * bf, 2),
                         (2 * bf, 4 * bf, 1), (4 * bf, 4 * bf, 2),
                         (4 * bf, 8 * bf, 1), (8 * bf, 8 * bf, 2)]:
        cfgs.append(dict(cin=cin, cout=cout, k=3, s=s, p=1, bn=True, swish=True))
    cfgs.append(dict(cin=8 * bf, cout=1, k=1, s=1, p=0, bn=False, swish=False))

    layers = []
    h, w = H, W
    for cfg in cfgs:
        key, wk, bk = jax.random.split(key, 3)
        k, s, p, cin, cout = cfg['k'], cfg['s'], cfg['p'], cfg['cin'], cfg['cout']
        wgt = 0.05 * jax.random.normal(wk, (k, k, cin, cout), jnp.float32)
        bias = 0.01 * jax.random.normal(bk, (cout,), jnp.float32)
        if cfg['bn']:
            # PyTorch BatchNorm2d defaults: gamma=1, beta=0, mean=0, var=1, eps=1e-5
            gamma = jnp.ones((cout,), jnp.float32)
            beta = jnp.zeros((cout,), jnp.float32)
            mean = jnp.zeros((cout,), jnp.float32)
            var = jnp.ones((cout,), jnp.float32)
            scale = gamma / jnp.sqrt(var + 1e-5)
            shift = beta - mean * scale
        else:
            scale = jnp.ones((cout,), jnp.float32)
            shift = jnp.zeros((cout,), jnp.float32)
        w_eff = wgt * scale                      # fold BN scale into conv weights
        b_eff = bias * scale + shift             # folded bias
        ho = (h + 2 * p - k) // s + 1
        wo = (w + 2 * p - k) // s + 1
        layers.append(dict(w=w_eff, b=b_eff, k=k, s=s, p=p, swish=cfg['swish'],
                           hin=h, win=w, hout=ho, wout=wo, cin=cin, cout=cout))
        h, w = ho, wo
    return layers


def build_operands(layers):
    """Stacked banded weight matrices B, folded-bias rows S, static stage meta."""
    LP = int(max(max(L['win'] * L['cin'], L['wout'] * L['cout']) for L in layers))
    LP = max(128, -(-LP // 128) * 128)
    nl = len(layers)

    B = np.zeros((3 * nl, LP, LP), np.float32)
    S = np.zeros((nl, 1, LP), np.float32)
    stages = []
    for li, L in enumerate(layers):
        wnp = np.asarray(L['w'], np.float32)
        bnp = np.asarray(L['b'], np.float32)
        k, s, p = L['k'], L['s'], L['p']
        win, wout = L['win'], L['wout']
        cin, cout = L['cin'], L['cout']
        for dy in range(k):
            for wo in range(wout):
                for dx in range(k):
                    wsrc = s * wo + dx - p
                    if 0 <= wsrc < win:
                        B[3 * li + dy, wsrc * cin:(wsrc + 1) * cin,
                                       wo * cout:(wo + 1) * cout] = wnp[dy, dx]
        for wo in range(wout):
            S[li, 0, wo * cout:(wo + 1) * cout] = bnp
        stages.append(dict(hin=L['hin'], hout=L['hout'], wout=wout, cout=cout,
                           k=k, s=s, p=p, swish=bool(L['swish'])))

    return (jnp.asarray(B, jnp.bfloat16), jnp.asarray(S, jnp.float32),
            tuple(stages), LP)


def make_discriminator(layers, N, H, W, C):
    Bm, Sm, stages, LP = build_operands(layers)
    nl = len(layers)

    NH = N * H
    NH_pad = max(8, -(-NH // 8) * 8)
    G = 8                                         # guard rows before activation
    ROWS_S = ((G + NH_pad + 8) + 7) // 8 * 8      # guard + rows + tail guard
    OUT_R = max(8, -(-N // 8) * 8)
    c_last = layers[-1]['cout']

    call = pl.pallas_call(
        functools.partial(_disc_kernel, stages=stages, N=N, G=G, LP=LP,
                          OUT_R=OUT_R),
        out_shape=jax.ShapeDtypeStruct((OUT_R, LP), jnp.float32),
        grid=(nl,),
        in_specs=[
            # Input activation: constant block index -> fetched once (stage 0).
            pl.BlockSpec((NH_pad, LP), lambda i: (0, 0)),
            # Per-stage banded weights: streamed, double-buffered by Pallas.
            pl.BlockSpec((3, LP, LP), lambda i: (i, 0, 0)),
            # Per-stage folded bias row.
            pl.BlockSpec((1, 1, LP), lambda i: (i, 0, 0)),
        ],
        out_specs=pl.BlockSpec((OUT_R, LP), lambda i: (0, 0)),
        scratch_shapes=[pltpu.VMEM((ROWS_S, LP), jnp.float32)],
        compiler_params=pltpu.CompilerParams(
            dimension_semantics=("arbitrary",)),   # stages are sequential
    )

    def forward(x_nchw):
        n, c, h, w = x_nchw.shape
        # Layout glue only: NCHW -> NHWC -> (N*H, W*C), zero-pad to (NH_pad, LP).
        x = jnp.transpose(x_nchw, (0, 2, 3, 1)).reshape(n * h, w * c)
        x = jnp.pad(x, ((0, NH_pad - n * h), (0, LP - w * c))).astype(jnp.bfloat16)
        out = call(x, Bm, Sm)
        return out[:n, :c_last]                   # == .view(N, -1), 1 channel

    return jax.jit(forward)


# ------------------------------- reference --------------------------------- #

def reference_forward(x_nchw, layers):
    """Pure-JAX (XLA) f32 reference of the same folded network."""
    x = jnp.transpose(x_nchw, (0, 2, 3, 1)).astype(jnp.float32)
    for L in layers:
        y = jax.lax.conv_general_dilated(
            x, L['w'], window_strides=(L['s'], L['s']),
            padding=[(L['p'], L['p']), (L['p'], L['p'])],
            dimension_numbers=('NHWC', 'HWIO', 'NHWC'))
        y = y + L['b']
        if L['swish']:
            y = y * jax.nn.sigmoid(y)
        x = y
    pooled = jnp.mean(x, axis=(1, 2))             # avg_pool over full spatial extent
    return jax.nn.sigmoid(pooled)                 # (N, C_out) == .view(N, -1)


# ---------------------------------- main ------------------------------------ #

if __name__ == "__main__":
    key = jax.random.PRNGKey(0)
    pkey, xkey = jax.random.split(key)

    N, C, H, W = 2, 3, 16, 16
    layers = build_network(pkey, num_channel=C, base_filter=8, H=H, W=W)
    forward = make_discriminator(layers, N, H, W, C)

    x = jax.random.normal(xkey, (N, C, H, W), jnp.float32)   # NCHW, like PyTorch
    out = forward(x)
    jax.block_until_ready(out)

    assert out.shape == (N, 1), out.shape
    assert bool(jnp.all(jnp.isfinite(out)))

    ref = reference_forward(x, layers)
    # bf16 matmul operands (f32 accumulation) vs f32 reference -> loose tolerance.
    assert jnp.allclose(out, ref, atol=3e-2, rtol=3e-2), (out, ref)

    print("KERNEL_OK")
</pallas_src>

<mosaic_0001>
module attributes {stable_mosaic.version = 11 : i64} {
  func.func @_disc_kernel(%arg0: i32, %arg1: memref<32x128xbf16, #tpu.memory_space<vmem>>, %arg2: memref<3x128x128xbf16, #tpu.memory_space<vmem>>, %arg3: memref<1x1x128xf32, #tpu.memory_space<vmem>>, %arg4: memref<8x128xf32, #tpu.memory_space<vmem>>, %arg5: memref<48x128xf32, #tpu.memory_space<vmem>>) attributes {dimension_semantics = [#tpu.dimension_semantics<arbitrary>], iteration_bounds = array<i64: 9>, scalar_prefetch = 0 : i64, scratch_operands = 1 : i64, tpu.core_type = #tpu.core_type<tc>, window_params = [{pipeline_mode = #tpu.pipeline_mode<synchronous>, transform_indices = @transform_0, window_bounds = array<i64: 32, 128>}, {transform_indices = @transform_1, window_bounds = array<i64: 3, 128, 128>}, {transform_indices = @transform_2, window_bounds = array<i64: 1, 1, 128>}, {pipeline_mode = #tpu.pipeline_mode<synchronous>, transform_indices = @transform_3, window_bounds = array<i64: 8, 128>}]} {
    %c0_i32 = arith.constant 0 : i32
    %0 = arith.cmpi eq, %arg0, %c0_i32 : i32
    %1 = arith.extui %0 : i1 to i32
    %c0_i32_0 = arith.constant 0 : i32
    %2 = arith.cmpi ne, %1, %c0_i32_0 : i32
    scf.if %2 {
      %c0 = arith.constant 0 : index
      %c0_9 = arith.constant 0 : index
      %27 = vector.load %arg1[%c0, %c0_9] : memref<32x128xbf16, #tpu.memory_space<vmem>>, vector<32x128xbf16>
      %28 = arith.extf %27 : vector<32x128xbf16> to vector<32x128xf32>
      %c8 = arith.constant 8 : index
      %c0_10 = arith.constant 0 : index
      %29 = vector.load %arg5[%c8, %c0_10] : memref<48x128xf32, #tpu.memory_space<vmem>>, vector<32x128xf32>
      tpu.vector_store %arg5[%c8, %c0_10], %28 {strides = array<i32>} : memref<48x128xf32, #tpu.memory_space<vmem>>, vector<32x128xf32>,
      %30 = tpu.iota {dimensions = array<i32: 0>} : vector<32x128xi32>
      %c7 = arith.constant 7 : index
      %c0_11 = arith.constant 0 : index
      %31 = vector.load %arg5[%c7, %c0_11] : memref<48x128xf32, #tpu.memory_space<vmem>>, vector<32x128xf32>
      %false = arith.constant false
      %32 = vector.broadcast %false : i1 to vector<32x128xi1>
      %c0_i32_12 = arith.constant 0 : i32
      %33 = vector.broadcast %c0_i32_12 : i32 to vector<32x128xi32>
      %34 = arith.cmpi eq, %30, %33 : vector<32x128xi32>
      %35 = arith.ori %32, %34 : vector<32x128xi1>
      %c16_i32 = arith.constant 16 : i32
      %36 = vector.broadcast %c16_i32 : i32 to vector<32x128xi32>
      %37 = arith.cmpi eq, %30, %36 : vector<32x128xi32>
      %38 = arith.ori %35, %37 : vector<32x128xi1>
      %cst = arith.constant 0.000000e+00 : f32
      %39 = vector.broadcast %cst : f32 to vector<32x128xf32>
      %40 = arith.select %38, %39, %31 : vector<32x128xi1>, vector<32x128xf32>
      %41 = arith.truncf %40 : vector<32x128xf32> to vector<32x128xbf16>
      %c8_13 = arith.constant 8 : index
      %c0_14 = arith.constant 0 : index
      %42 = vector.load %arg5[%c8_13, %c0_14] : memref<48x128xf32, #tpu.memory_space<vmem>>, vector<32x128xf32>
      %43 = arith.truncf %42 : vector<32x128xf32> to vector<32x128xbf16>
      %c9 = arith.constant 9 : index
      %c0_15 = arith.constant 0 : index
      %44 = vector.load %arg5[%c9, %c0_15] : memref<48x128xf32, #tpu.memory_space<vmem>>, vector<32x128xf32>
      %false_16 = arith.constant false
      %45 = vector.broadcast %false_16 : i1 to vector<32x128xi1>
      %c15_i32 = arith.constant 15 : i32
      %46 = vector.broadcast %c15_i32 : i32 to vector<32x128xi32>
      %47 = arith.cmpi eq, %30, %46 : vector<32x128xi32>
      %48 = arith.ori %45, %47 : vector<32x128xi1>
      %c31_i32 = arith.constant 31 : i32
      %49 = vector.broadcast %c31_i32 : i32 to vector<32x128xi32>
      %50 = arith.cmpi eq, %30, %49 : vector<32x128xi32>
      %51 = arith.ori %48, %50 : vector<32x128xi1>
      %cst_17 = arith.constant 0.000000e+00 : f32
      %52 = vector.broadcast %cst_17 : f32 to vector<32x128xf32>
      %53 = arith.select %51, %52, %44 : vector<32x128xi1>, vector<32x128xf32>
      %54 = arith.truncf %53 : vector<32x128xf32> to vector<32x128xbf16>
      %c0_18 = arith.constant 0 : index
      %c0_19 = arith.constant 0 : index
      %c0_20 = arith.constant 0 : index
      %55 = vector.load %arg2[%c0_18, %c0_19, %c0_20] : memref<3x128x128xbf16, #tpu.memory_space<vmem>>, vector<1x128x128xbf16>
      %56 = vector.shape_cast %55 : vector<1x128x128xbf16> to vector<128x128xbf16>
      %cst_21 = arith.constant dense<0.000000e+00> : vector<32x128xf32>
      %57 = tpu.matmul %41, %56, %cst_21 {dimension_numbers = #tpu.dot_dimension_numbers<[1], [0], [0], [1], [0, 0, 1, 1], [], []>} : vector<32x128xbf16>, vector<128x128xbf16>, vector<32x128xf32> -> vector<32x128xf32>
      %c1 = arith.constant 1 : index
      %c0_22 = arith.constant 0 : index
      %c0_23 = arith.constant 0 : index
      %58 = vector.load %arg2[%c1, %c0_22, %c0_23] : memref<3x128x128xbf16, #tpu.memory_space<vmem>>, vector<1x128x128xbf16>
      %59 = vector.shape_cast %58 : vector<1x128x128xbf16> to vector<128x128xbf16>
      %cst_24 = arith.constant dense<0.000000e+00> : vector<32x128xf32>
      %60 = tpu.matmul %43, %59, %cst_24 {dimension_numbers = #tpu.dot_dimension_numbers<[1], [0], [0], [1], [0, 0, 1, 1], [], []>} : vector<32x128xbf16>, vector<128x128xbf16>, vector<32x128xf32> -> vector<32x128xf32>
      %c2 = arith.constant 2 : index
      %c0_25 = arith.constant 0 : index
      %c0_26 = arith.constant 0 : index
      %61 = vector.load %arg2[%c2, %c0_25, %c0_26] : memref<3x128x128xbf16, #tpu.memory_space<vmem>>, vector<1x128x128xbf16>
      %62 = vector.shape_cast %61 : vector<1x128x128xbf16> to vector<128x128xbf16>
      %cst_27 = arith.constant dense<0.000000e+00> : vector<32x128xf32>
      %63 = tpu.matmul %54, %62, %cst_27 {dimension_numbers = #tpu.dot_dimension_numbers<[1], [0], [0], [1], [0, 0, 1, 1], [], []>} : vector<32x128xbf16>, vector<128x128xbf16>, vector<32x128xf32> -> vector<32x128xf32>
      %64 = arith.addf %57, %60 : vector<32x128xf32>
      %65 = arith.addf %64, %63 : vector<32x128xf32>
      %c0_28 = arith.constant 0 : index
      %c0_29 = arith.constant 0 : index
      %c0_30 = arith.constant 0 : index
      %66 = vector.load %arg3[%c0_28, %c0_29, %c0_30] : memref<1x1x128xf32, #tpu.memory_space<vmem>>, vector<1x1x128xf32>
      %67 = vector.shape_cast %66 : vector<1x1x128xf32> to vector<1x128xf32>
      %68 = vector.broadcast %67 : vector<1x128xf32> to vector<32x128xf32>
      %69 = arith.addf %65, %68 : vector<32x128xf32>
      %cst_31 = arith.constant 0.000000e+00 : f32
      %70 = vector.broadcast %cst_31 : f32 to vector<32x128xf32>
      %71 = arith.subf %70, %69 : vector<32x128xf32>
      %72 = math.exp %71 : vector<32x128xf32>
      %cst_32 = arith.constant 1.000000e+00 : f32
      %73 = vector.broadcast %cst_32 : f32 to vector<32x128xf32>
      %74 = arith.addf %73, %72 : vector<32x128xf32>
      %75 = tpu.reciprocal %74 {approx = true} : vector<32x128xf32> -> vector<32x128xf32>
      %76 = arith.mulf %69, %75 : vector<32x128xf32>
      %c8_33 = arith.constant 8 : index
      %c0_34 = arith.constant 0 : index
      %77 = vector.load %arg5[%c8_33, %c0_34] : memref<48x128xf32, #tpu.memory_space<vmem>>, vector<32x128xf32>
      tpu.vector_store %arg5[%c8_33, %c0_34], %76 {strides = array<i32>} : memref<48x128xf32, #tpu.memory_space<vmem>>, vector<32x128xf32>,
    } else {
    }
    %c1_i32 = arith.constant 1 : i32
    %3 = arith.cmpi eq, %arg0, %c1_i32 : i32
    %4 = arith.extui %3 : i1 to i32
    %c0_i32_1 = arith.constant 0 : i32
    %5 = arith.cmpi ne, %4, %c0_i32_1 : i32
    scf.if %5 {
      %27 = tpu.iota {dimensions = array<i32: 0>} : vector<16x128xi32>
      %c7 = arith.constant 7 : index
      %c0 = arith.constant 0 : index
      %28 = tpu.strided_load %arg5[%c7, %c0] {strides = array<i32: 2, 1>} : memref<48x128xf32, #tpu.memory_space<vmem>>, vector<8x128xf32>
      %c23 = arith.constant 23 : index
      %c0_9 = arith.constant 0 : index
      %29 = tpu.strided_load %arg5[%c23, %c0_9] {strides = array<i32: 2, 1>} : memref<48x128xf32, #tpu.memory_space<vmem>>, vector<8x128xf32>
      %30 = tpu.concatenate %28, %29 in 0 : vector<8x128xf32>, vector<8x128xf32> -> vector<16x128xf32>
      %false = arith.constant false
      %31 = vector.broadcast %false : i1 to vector<16x128xi1>
      %c0_i32_10 = arith.constant 0 : i32
      %32 = vector.broadcast %c0_i32_10 : i32 to vector<16x128xi32>
      %33 = arith.cmpi eq, %27, %32 : vector<16x128xi32>
      %34 = arith.ori %31, %33 : vector<16x128xi1>
      %c8_i32_11 = arith.constant 8 : i32
      %35 = vector.broadcast %c8_i32_11 : i32 to vector<16x128xi32>
      %36 = arith.cmpi eq, %27, %35 : vector<16x128xi32>
      %37 = arith.ori %34, %36 : vector<16x128xi1>
      %cst = arith.constant 0.000000e+00 : f32
      %38 = vector.broadcast %cst : f32 to vector<16x128xf32>
      %39 = arith.select %37, %38, %30 : vector<16x128xi1>, vector<16x128xf32>
      %40 = arith.truncf %39 : vector<16x128xf32> to vector<16x128xbf16>
      %c8 = arith.constant 8 : index
      %c0_12 = arith.constant 0 : index
      %41 = tpu.strided_load %arg5[%c8, %c0_12] {strides = array<i32: 2, 1>} : memref<48x128xf32, #tpu.memory_space<vmem>>, vector<8x128xf32>
      %c24 = arith.constant 24 : index
      %c0_13 = arith.constant 0 : index
      %42 = tpu.strided_load %arg5[%c24, %c0_13] {strides = array<i32: 2, 1>} : memref<48x128xf32, #tpu.memory_space<vmem>>, vector<8x128xf32>
      %43 = tpu.concatenate %41, %42 in 0 : vector<8x128xf32>, vector<8x128xf32> -> vector<16x128xf32>
      %44 = arith.truncf %43 : vector<16x128xf32> to vector<16x128xbf16>
      %c9 = arith.constant 9 : index
      %c0_14 = arith.constant 0 : index
      %45 = tpu.strided_load %arg5[%c9, %c0_14] {strides = array<i32: 2, 1>} : memref<48x128xf32, #tpu.memory_space<vmem>>, vector<8x128xf32>
      %c25 = arith.constant 25 : index
      %c0_15 = arith.constant 0 : index
      %46 = tpu.strided_load %arg5[%c25, %c0_15] {strides = array<i32: 2, 1>} : memref<48x128xf32, #tpu.memory_space<vmem>>, vector<8x128xf32>
      %47 = tpu.concatenate %45, %46 in 0 : vector<8x128xf32>, vector<8x128xf32> -> vector<16x128xf32>
      %48 = arith.truncf %47 : vector<16x128xf32> to vector<16x128xbf16>
      %c0_16 = arith.constant 0 : index
      %c0_17 = arith.constant 0 : index
      %c0_18 = arith.constant 0 : index
      %49 = vector.load %arg2[%c0_16, %c0_17, %c0_18] : memref<3x128x128xbf16, #tpu.memory_space<vmem>>, vector<1x128x128xbf16>
      %50 = vector.shape_cast %49 : vector<1x128x128xbf16> to vector<128x128xbf16>
      %cst_19 = arith.constant dense<0.000000e+00> : vector<16x128xf32>
      %51 = tpu.matmul %40, %50, %cst_19 {dimension_numbers = #tpu.dot_dimension_numbers<[1], [0], [0], [1], [0, 0, 1, 1], [], []>} : vector<16x128xbf16>, vector<128x128xbf16>, vector<16x128xf32> -> vector<16x128xf32>
      %c1 = arith.constant 1 : index
      %c0_20 = arith.constant 0 : index
      %c0_21 = arith.constant 0 : index
      %52 = vector.load %arg2[%c1, %c0_20, %c0_21] : memref<3x128x128xbf16, #tpu.memory_space<vmem>>, vector<1x128x128xbf16>
      %53 = vector.shape_cast %52 : vector<1x128x128xbf16> to vector<128x128xbf16>
      %cst_22 = arith.constant dense<0.000000e+00> : vector<16x128xf32>
      %54 = tpu.matmul %44, %53, %cst_22 {dimension_numbers = #tpu.dot_dimension_numbers<[1], [0], [0], [1], [0, 0, 1, 1], [], []>} : vector<16x128xbf16>, vector<128x128xbf16>, vector<16x128xf32> -> vector<16x128xf32>
      %c2 = arith.constant 2 : index
      %c0_23 = arith.constant 0 : index
      %c0_24 = arith.constant 0 : index
      %55 = vector.load %arg2[%c2, %c0_23, %c0_24] : memref<3x128x128xbf16, #tpu.memory_space<vmem>>, vector<1x128x128xbf16>
      %56 = vector.shape_cast %55 : vector<1x128x128xbf16> to vector<128x128xbf16>
      %cst_25 = arith.constant dense<0.000000e+00> : vector<16x128xf32>
      %57 = tpu.matmul %48, %56, %cst_25 {dimension_numbers = #tpu.dot_dimension_numbers<[1], [0], [0], [1], [0, 0, 1, 1], [], []>} : vector<16x128xbf16>, vector<128x128xbf16>, vector<16x128xf32> -> vector<16x128xf32>
      %58 = arith.addf %51, %54 : vector<16x128xf32>
      %59 = arith.addf %58, %57 : vector<16x128xf32>
      %c0_26 = arith.constant 0 : index
      %c0_27 = arith.constant 0 : index
      %c0_28 = arith.constant 0 : index
      %60 = vector.load %arg3[%c0_26, %c0_27, %c0_28] : memref<1x1x128xf32, #tpu.memory_space<vmem>>, vector<1x1x128xf32>
      %61 = vector.shape_cast %60 : vector<1x1x128xf32> to vector<1x128xf32>
      %62 = vector.broadcast %61 : vector<1x128xf32> to vector<16x128xf32>
      %63 = arith.addf %59, %62 : vector<16x128xf32>
      %cst_29 = arith.constant 0.000000e+00 : f32
      %64 = vector.broadcast %cst_29 : f32 to vector<16x128xf32>
      %65 = arith.subf %64, %63 : vector<16x128xf32>
      %66 = math.exp %65 : vector<16x128xf32>
      %cst_30 = arith.constant 1.000000e+00 : f32
      %67 = vector.broadcast %cst_30 : f32 to vector<16x128xf32>
      %68 = arith.addf %67, %66 : vector<16x128xf32>
      %69 = tpu.reciprocal %68 {approx = true} : vector<16x128xf32> -> vector<16x128xf32>
      %70 = arith.mulf %63, %69 : vector<16x128xf32>
      %c8_31 = arith.constant 8 : index
      %c0_32 = arith.constant 0 : index
      %71 = vector.load %arg5[%c8_31, %c0_32] : memref<48x128xf32, #tpu.memory_space<vmem>>, vector<16x128xf32>
      tpu.vector_store %arg5[%c8_31, %c0_32], %70 {strides = array<i32>} : memref<48x128xf32, #tpu.memory_space<vmem>>, vector<16x128xf32>,
    } else {
    }
    %c2_i32 = arith.constant 2 : i32
    %6 = arith.cmpi eq, %arg0, %c2_i32 : i32
    %7 = arith.extui %6 : i1 to i32
    %c0_i32_2 = arith.constant 0 : i32
    %8 = arith.cmpi ne, %7, %c0_i32_2 : i32
    scf.if %8 {
      %27 = tpu.iota {dimensions = array<i32: 0>} : vector<16x128xi32>
      %c7 = arith.constant 7 : index
      %c0 = arith.constant 0 : index
      %28 = vector.load %arg5[%c7, %c0] : memref<48x128xf32, #tpu.memory_space<vmem>>, vector<16x128xf32>
      %false = arith.constant false
      %29 = vector.broadcast %false : i1 to vector<16x128xi1>
      %c0_i32_9 = arith.constant 0 : i32
      %30 = vector.broadcast %c0_i32_9 : i32 to vector<16x128xi32>
      %31 = arith.cmpi eq, %27, %30 : vector<16x128xi32>
      %32 = arith.ori %29, %31 : vector<16x128xi1>
      %c8_i32_10 = arith.constant 8 : i32
      %33 = vector.broadcast %c8_i32_10 : i32 to vector<16x128xi32>
      %34 = arith.cmpi eq, %27, %33 : vector<16x128xi32>
      %35 = arith.ori %32, %34 : vector<16x128xi1>
      %cst = arith.constant 0.000000e+00 : f32
      %36 = vector.broadcast %cst : f32 to vector<16x128xf32>
      %37 = arith.select %35, %36, %28 : vector<16x128xi1>, vector<16x128xf32>
      %38 = arith.truncf %37 : vector<16x128xf32> to vector<16x128xbf16>
      %c8 = arith.constant 8 : index
      %c0_11 = arith.constant 0 : index
      %39 = vector.load %arg5[%c8, %c0_11] : memref<48x128xf32, #tpu.memory_space<vmem>>, vector<16x128xf32>
      %40 = arith.truncf %39 : vector<16x128xf32> to vector<16x128xbf16>
      %c9 = arith.constant 9 : index
      %c0_12 = arith.constant 0 : index
      %41 = vector.load %arg5[%c9, %c0_12] : memref<48x128xf32, #tpu.memory_space<vmem>>, vector<16x128xf32>
      %false_13 = arith.constant false
      %42 = vector.broadcast %false_13 : i1 to vector<16x128xi1>
      %c7_i32_14 = arith.constant 7 : i32
      %43 = vector.broadcast %c7_i32_14 : i32 to vector<16x128xi32>
      %44 = arith.cmpi eq, %27, %43 : vector<16x128xi32>
      %45 = arith.ori %42, %44 : vector<16x128xi1>
      %c15_i32 = arith.constant 15 : i32
      %46 = vector.broadcast %c15_i32 : i32 to vector<16x128xi32>
      %47 = arith.cmpi eq, %27, %46 : vector<16x128xi32>
      %48 = arith.ori %45, %47 : vector<16x128xi1>
      %cst_15 = arith.constant 0.000000e+00 : f32
      %49 = vector.broadcast %cst_15 : f32 to vector<16x128xf32>
      %50 = arith.select %48, %49, %41 : vector<16x128xi1>, vector<16x128xf32>
      %51 = arith.truncf %50 : vector<16x128xf32> to vector<16x128xbf16>
      %c0_16 = arith.constant 0 : index
      %c0_17 = arith.constant 0 : index
      %c0_18 = arith.constant 0 : index
      %52 = vector.load %arg2[%c0_16, %c0_17, %c0_18] : memref<3x128x128xbf16, #tpu.memory_space<vmem>>, vector<1x128x128xbf16>
      %53 = vector.shape_cast %52 : vector<1x128x128xbf16> to vector<128x128xbf16>
      %cst_19 = arith.constant dense<0.000000e+00> : vector<16x128xf32>
      %54 = tpu.matmul %38, %53, %cst_19 {dimension_numbers = #tpu.dot_dimension_numbers<[1], [0], [0], [1], [0, 0, 1, 1], [], []>} : vector<16x128xbf16>, vector<128x128xbf16>, vector<16x128xf32> -> vector<16x128xf32>
      %c1 = arith.constant 1 : index
      %c0_20 = arith.constant 0 : index
      %c0_21 = arith.constant 0 : index
      %55 = vector.load %arg2[%c1, %c0_20, %c0_21] : memref<3x128x128xbf16, #tpu.memory_space<vmem>>, vector<1x128x128xbf16>
      %56 = vector.shape_cast %55 : vector<1x128x128xbf16> to vector<128x128xbf16>
      %cst_22 = arith.constant dense<0.000000e+00> : vector<16x128xf32>
      %57 = tpu.matmul %40, %56, %cst_22 {dimension_numbers = #tpu.dot_dimension_numbers<[1], [0], [0], [1], [0, 0, 1, 1], [], []>} : vector<16x128xbf16>, vector<128x128xbf16>, vector<16x128xf32> -> vector<16x128xf32>
      %c2 = arith.constant 2 : index
      %c0_23 = arith.constant 0 : index
      %c0_24 = arith.constant 0 : index
      %58 = vector.load %arg2[%c2, %c0_23, %c0_24] : memref<3x128x128xbf16, #tpu.memory_space<vmem>>, vector<1x128x128xbf16>
      %59 = vector.shape_cast %58 : vector<1x128x128xbf16> to vector<128x128xbf16>
      %cst_25 = arith.constant dense<0.000000e+00> : vector<16x128xf32>
      %60 = tpu.matmul %51, %59, %cst_25 {dimension_numbers = #tpu.dot_dimension_numbers<[1], [0], [0], [1], [0, 0, 1, 1], [], []>} : vector<16x128xbf16>, vector<128x128xbf16>, vector<16x128xf32> -> vector<16x128xf32>
      %61 = arith.addf %54, %57 : vector<16x128xf32>
      %62 = arith.addf %61, %60 : vector<16x128xf32>
      %c0_26 = arith.constant 0 : index
      %c0_27 = arith.constant 0 : index
      %c0_28 = arith.constant 0 : index
      %63 = vector.load %arg3[%c0_26, %c0_27, %c0_28] : memref<1x1x128xf32, #tpu.memory_space<vmem>>, vector<1x1x128xf32>
      %64 = vector.shape_cast %63 : vector<1x1x128xf32> to vector<1x128xf32>
      %65 = vector.broadcast %64 : vector<1x128xf32> to vector<16x128xf32>
      %66 = arith.addf %62, %65 : vector<16x128xf32>
      %cst_29 = arith.constant 0.000000e+00 : f32
      %67 = vector.broadcast %cst_29 : f32 to vector<16x128xf32>
      %68 = arith.subf %67, %66 : vector<16x128xf32>
      %69 = math.exp %68 : vector<16x128xf32>
      %cst_30 = arith.constant 1.000000e+00 : f32
      %70 = vector.broadcast %cst_30 : f32 to vector<16x128xf32>
      %71 = arith.addf %70, %69 : vector<16x128xf32>
      %72 = tpu.reciprocal %71 {approx = true} : vector<16x128xf32> -> vector<16x128xf32>
      %73 = arith.mulf %66, %72 : vector<16x128xf32>
      %c8_31 = arith.constant 8 : index
      %c0_32 = arith.constant 0 : index
      %74 = vector.load %arg5[%c8_31, %c0_32] : memref<48x128xf32, #tpu.memory_space<vmem>>, vector<16x128xf32>
      tpu.vector_store %arg5[%c8_31, %c0_32], %73 {strides = array<i32>} : memref<48x128xf32, #tpu.memory_space<vmem>>, vector<16x128xf32>,
    } else {
    }
    %c3_i32 = arith.constant 3 : i32
    %9 = arith.cmpi eq, %arg0, %c3_i32 : i32
    %10 = arith.extui %9 : i1 to i32
    %c0_i32_3 = arith.constant 0 : i32
    %11 = arith.cmpi ne, %10, %c0_i32_3 : i32
    scf.if %11 {
      %27 = tpu.iota {dimensions = array<i32: 0>} : vector<8x128xi32>
      %c7 = arith.constant 7 : index
      %c0 = arith.constant 0 : index
      %28 = tpu.strided_load %arg5[%c7, %c0] {strides = array<i32: 2, 1>} : memref<48x128xf32, #tpu.memory_space<vmem>>, vector<4x128xf32>
      %c15 = arith.constant 15 : index
      %c0_9 = arith.constant 0 : index
      %29 = tpu.strided_load %arg5[%c15, %c0_9] {strides = array<i32: 2, 1>} : memref<48x128xf32, #tpu.memory_space<vmem>>, vector<4x128xf32>
      %30 = tpu.concatenate %28, %29 in 0 : vector<4x128xf32>, vector<4x128xf32> -> vector<8x128xf32>
      %false = arith.constant false
      %31 = vector.broadcast %false : i1 to vector<8x128xi1>
      %c0_i32_10 = arith.constant 0 : i32
      %32 = vector.broadcast %c0_i32_10 : i32 to vector<8x128xi32>
      %33 = arith.cmpi eq, %27, %32 : vector<8x128xi32>
      %34 = arith.ori %31, %33 : vector<8x128xi1>
      %c4_i32_11 = arith.constant 4 : i32
      %35 = vector.broadcast %c4_i32_11 : i32 to vector<8x128xi32>
      %36 = arith.cmpi eq, %27, %35 : vector<8x128xi32>
      %37 = arith.ori %34, %36 : vector<8x128xi1>
      %cst = arith.constant 0.000000e+00 : f32
      %38 = vector.broadcast %cst : f32 to vector<8x128xf32>
      %39 = arith.select %37, %38, %30 : vector<8x128xi1>, vector<8x128xf32>
      %40 = arith.truncf %39 : vector<8x128xf32> to vector<8x128xbf16>
      %c8 = arith.constant 8 : index
      %c0_12 = arith.constant 0 : index
      %41 = tpu.strided_load %arg5[%c8, %c0_12] {strides = array<i32: 2, 1>} : memref<48x128xf32, #tpu.memory_space<vmem>>, vector<4x128xf32>
      %c16 = arith.constant 16 : index
      %c0_13 = arith.constant 0 : index
      %42 = tpu.strided_load %arg5[%c16, %c0_13] {strides = array<i32: 2, 1>} : memref<48x128xf32, #tpu.memory_space<vmem>>, vector<4x128xf32>
      %43 = tpu.concatenate %41, %42 in 0 : vector<4x128xf32>, vector<4x128xf32> -> vector<8x128xf32>
      %44 = arith.truncf %43 : vector<8x128xf32> to vector<8x128xbf16>
      %c9 = arith.constant 9 : index
      %c0_14 = arith.constant 0 : index
      %45 = tpu.strided_load %arg5[%c9, %c0_14] {strides = array<i32: 2, 1>} : memref<48x128xf32, #tpu.memory_space<vmem>>, vector<4x128xf32>
      %c17 = arith.constant 17 : index
      %c0_15 = arith.constant 0 : index
      %46 = tpu.strided_load %arg5[%c17, %c0_15] {strides = array<i32: 2, 1>} : memref<48x128xf32, #tpu.memory_space<vmem>>, vector<4x128xf32>
      %47 = tpu.concatenate %45, %46 in 0 : vector<4x128xf32>, vector<4x128xf32> -> vector<8x128xf32>
      %48 = arith.truncf %47 : vector<8x128xf32> to vector<8x128xbf16>
      %c0_16 = arith.constant 0 : index
      %c0_17 = arith.constant 0 : index
      %c0_18 = arith.constant 0 : index
      %49 = vector.load %arg2[%c0_16, %c0_17, %c0_18] : memref<3x128x128xbf16, #tpu.memory_space<vmem>>, vector<1x128x128xbf16>
      %50 = vector.shape_cast %49 : vector<1x128x128xbf16> to vector<128x128xbf16>
      %cst_19 = arith.constant dense<0.000000e+00> : vector<8x128xf32>
      %51 = tpu.matmul %40, %50, %cst_19 {dimension_numbers = #tpu.dot_dimension_numbers<[1], [0], [0], [1], [0, 0, 1, 1], [], []>} : vector<8x128xbf16>, vector<128x128xbf16>, vector<8x128xf32> -> vector<8x128xf32>
      %c1 = arith.constant 1 : index
      %c0_20 = arith.constant 0 : index
      %c0_21 = arith.constant 0 : index
      %52 = vector.load %arg2[%c1, %c0_20, %c0_21] : memref<3x128x128xbf16, #tpu.memory_space<vmem>>, vector<1x128x128xbf16>
      %53 = vector.shape_cast %52 : vector<1x128x128xbf16> to vector<128x128xbf16>
      %cst_22 = arith.constant dense<0.000000e+00> : vector<8x128xf32>
      %54 = tpu.matmul %44, %53, %cst_22 {dimension_numbers = #tpu.dot_dimension_numbers<[1], [0], [0], [1], [0, 0, 1, 1], [], []>} : vector<8x128xbf16>, vector<128x128xbf16>, vector<8x128xf32> -> vector<8x128xf32>
      %c2 = arith.constant 2 : index
      %c0_23 = arith.constant 0 : index
      %c0_24 = arith.constant 0 : index
      %55 = vector.load %arg2[%c2, %c0_23, %c0_24] : memref<3x128x128xbf16, #tpu.memory_space<vmem>>, vector<1x128x128xbf16>
      %56 = vector.shape_cast %55 : vector<1x128x128xbf16> to vector<128x128xbf16>
      %cst_25 = arith.constant dense<0.000000e+00> : vector<8x128xf32>
      %57 = tpu.matmul %48, %56, %cst_25 {dimension_numbers = #tpu.dot_dimension_numbers<[1], [0], [0], [1], [0, 0, 1, 1], [], []>} : vector<8x128xbf16>, vector<128x128xbf16>, vector<8x128xf32> -> vector<8x128xf32>
      %58 = arith.addf %51, %54 : vector<8x128xf32>
      %59 = arith.addf %58, %57 : vector<8x128xf32>
      %c0_26 = arith.constant 0 : index
      %c0_27 = arith.constant 0 : index
      %c0_28 = arith.constant 0 : index
      %60 = vector.load %arg3[%c0_26, %c0_27, %c0_28] : memref<1x1x128xf32, #tpu.memory_space<vmem>>, vector<1x1x128xf32>
      %61 = vector.shape_cast %60 : vector<1x1x128xf32> to vector<1x128xf32>
      %62 = vector.broadcast %61 : vector<1x128xf32> to vector<8x128xf32>
      %63 = arith.addf %59, %62 : vector<8x128xf32>
      %cst_29 = arith.constant 0.000000e+00 : f32
      %64 = vector.broadcast %cst_29 : f32 to vector<8x128xf32>
      %65 = arith.subf %64, %63 : vector<8x128xf32>
      %66 = math.exp %65 : vector<8x128xf32>
      %cst_30 = arith.constant 1.000000e+00 : f32
      %67 = vector.broadcast %cst_30 : f32 to vector<8x128xf32>
      %68 = arith.addf %67, %66 : vector<8x128xf32>
      %69 = tpu.reciprocal %68 {approx = true} : vector<8x128xf32> -> vector<8x128xf32>
      %70 = arith.mulf %63, %69 : vector<8x128xf32>
      %c8_31 = arith.constant 8 : index
      %c0_32 = arith.constant 0 : index
      %71 = vector.load %arg5[%c8_31, %c0_32] : memref<48x128xf32, #tpu.memory_space<vmem>>, vector<8x128xf32>
      tpu.vector_store %arg5[%c8_31, %c0_32], %70 {strides = array<i32>} : memref<48x128xf32, #tpu.memory_space<vmem>>, vector<8x128xf32>,
    } else {
    }
    %c4_i32 = arith.constant 4 : i32
    %12 = arith.cmpi eq, %arg0, %c4_i32 : i32
    %13 = arith.extui %12 : i1 to i32
    %c0_i32_4 = arith.constant 0 : i32
    %14 = arith.cmpi ne, %13, %c0_i32_4 : i32
    scf.if %14 {
      %27 = tpu.iota {dimensions = array<i32: 0>} : vector<8x128xi32>
      %c7 = arith.constant 7 : index
      %c0 = arith.constant 0 : index
      %28 = vector.load %arg5[%c7, %c0] : memref<48x128xf32, #tpu.memory_space<vmem>>, vector<8x128xf32>
      %false = arith.constant false
      %29 = vector.broadcast %false : i1 to vector<8x128xi1>
      %c0_i32_9 = arith.constant 0 : i32
      %30 = vector.broadcast %c0_i32_9 : i32 to vector<8x128xi32>
      %31 = arith.cmpi eq, %27, %30 : vector<8x128xi32>
      %32 = arith.ori %29, %31 : vector<8x128xi1>
      %c4_i32_10 = arith.constant 4 : i32
      %33 = vector.broadcast %c4_i32_10 : i32 to vector<8x128xi32>
      %34 = arith.cmpi eq, %27, %33 : vector<8x128xi32>
      %35 = arith.ori %32, %34 : vector<8x128xi1>
      %cst = arith.constant 0.000000e+00 : f32
      %36 = vector.broadcast %cst : f32 to vector<8x128xf32>
      %37 = arith.select %35, %36, %28 : vector<8x128xi1>, vector<8x128xf32>
      %38 = arith.truncf %37 : vector<8x128xf32> to vector<8x128xbf16>
      %c8 = arith.constant 8 : index
      %c0_11 = arith.constant 0 : index
      %39 = vector.load %arg5[%c8, %c0_11] : memref<48x128xf32, #tpu.memory_space<vmem>>, vector<8x128xf32>
      %40 = arith.truncf %39 : vector<8x128xf32> to vector<8x128xbf16>
      %c9 = arith.constant 9 : index
      %c0_12 = arith.constant 0 : index
      %41 = vector.load %arg5[%c9, %c0_12] : memref<48x128xf32, #tpu.memory_space<vmem>>, vector<8x128xf32>
      %false_13 = arith.constant false
      %42 = vector.broadcast %false_13 : i1 to vector<8x128xi1>
      %c3_i32_14 = arith.constant 3 : i32
      %43 = vector.broadcast %c3_i32_14 : i32 to vector<8x128xi32>
      %44 = arith.cmpi eq, %27, %43 : vector<8x128xi32>
      %45 = arith.ori %42, %44 : vector<8x128xi1>
      %c7_i32_15 = arith.constant 7 : i32
      %46 = vector.broadcast %c7_i32_15 : i32 to vector<8x128xi32>
      %47 = arith.cmpi eq, %27, %46 : vector<8x128xi32>
      %48 = arith.ori %45, %47 : vector<8x128xi1>
      %cst_16 = arith.constant 0.000000e+00 : f32
      %49 = vector.broadcast %cst_16 : f32 to vector<8x128xf32>
      %50 = arith.select %48, %49, %41 : vector<8x128xi1>, vector<8x128xf32>
      %51 = arith.truncf %50 : vector<8x128xf32> to vector<8x128xbf16>
      %c0_17 = arith.constant 0 : index
      %c0_18 = arith.constant 0 : index
      %c0_19 = arith.constant 0 : index
      %52 = vector.load %arg2[%c0_17, %c0_18, %c0_19] : memref<3x128x128xbf16, #tpu.memory_space<vmem>>, vector<1x128x128xbf16>
      %53 = vector.shape_cast %52 : vector<1x128x128xbf16> to vector<128x128xbf16>
      %cst_20 = arith.constant dense<0.000000e+00> : vector<8x128xf32>
      %54 = tpu.matmul %38, %53, %cst_20 {dimension_numbers = #tpu.dot_dimension_numbers<[1], [0], [0], [1], [0, 0, 1, 1], [], []>} : vector<8x128xbf16>, vector<128x128xbf16>, vector<8x128xf32> -> vector<8x128xf32>
      %c1 = arith.constant 1 : index
      %c0_21 = arith.constant 0 : index
      %c0_22 = arith.constant 0 : index
      %55 = vector.load %arg2[%c1, %c0_21, %c0_22] : memref<3x128x128xbf16, #tpu.memory_space<vmem>>, vector<1x128x128xbf16>
      %56 = vector.shape_cast %55 : vector<1x128x128xbf16> to vector<128x128xbf16>
      %cst_23 = arith.constant dense<0.000000e+00> : vector<8x128xf32>
      %57 = tpu.matmul %40, %56, %cst_23 {dimension_numbers = #tpu.dot_dimension_numbers<[1], [0], [0], [1], [0, 0, 1, 1], [], []>} : vector<8x128xbf16>, vector<128x128xbf16>, vector<8x128xf32> -> vector<8x128xf32>
      %c2 = arith.constant 2 : index
      %c0_24 = arith.constant 0 : index
      %c0_25 = arith.constant 0 : index
      %58 = vector.load %arg2[%c2, %c0_24, %c0_25] : memref<3x128x128xbf16, #tpu.memory_space<vmem>>, vector<1x128x128xbf16>
      %59 = vector.shape_cast %58 : vector<1x128x128xbf16> to vector<128x128xbf16>
      %cst_26 = arith.constant dense<0.000000e+00> : vector<8x128xf32>
      %60 = tpu.matmul %51, %59, %cst_26 {dimension_numbers = #tpu.dot_dimension_numbers<[1], [0], [0], [1], [0, 0, 1, 1], [], []>} : vector<8x128xbf16>, vector<128x128xbf16>, vector<8x128xf32> -> vector<8x128xf32>
      %61 = arith.addf %54, %57 : vector<8x128xf32>
      %62 = arith.addf %61, %60 : vector<8x128xf32>
      %c0_27 = arith.constant 0 : index
      %c0_28 = arith.constant 0 : index
      %c0_29 = arith.constant 0 : index
      %63 = vector.load %arg3[%c0_27, %c0_28, %c0_29] : memref<1x1x128xf32, #tpu.memory_space<vmem>>, vector<1x1x128xf32>
      %64 = vector.shape_cast %63 : vector<1x1x128xf32> to vector<1x128xf32>
      %65 = vector.broadcast %64 : vector<1x128xf32> to vector<8x128xf32>
      %66 = arith.addf %62, %65 : vector<8x128xf32>
      %cst_30 = arith.constant 0.000000e+00 : f32
      %67 = vector.broadcast %cst_30 : f32 to vector<8x128xf32>
      %68 = arith.subf %67, %66 : vector<8x128xf32>
      %69 = math.exp %68 : vector<8x128xf32>
      %cst_31 = arith.constant 1.000000e+00 : f32
      %70 = vector.broadcast %cst_31 : f32 to vector<8x128xf32>
      %71 = arith.addf %70, %69 : vector<8x128xf32>
      %72 = tpu.reciprocal %71 {approx = true} : vector<8x128xf32> -> vector<8x128xf32>
      %73 = arith.mulf %66, %72 : vector<8x128xf32>
      %c8_32 = arith.constant 8 : index
      %c0_33 = arith.constant 0 : index
      %74 = vector.load %arg5[%c8_32, %c0_33] : memref<48x128xf32, #tpu.memory_space<vmem>>, vector<8x128xf32>
      tpu.vector_store %arg5[%c8_32, %c0_33], %73 {strides = array<i32>} : memref<48x128xf32, #tpu.memory_space<vmem>>, vector<8x128xf32>,
    } else {
    }
    %c5_i32 = arith.constant 5 : i32
    %15 = arith.cmpi eq, %arg0, %c5_i32 : i32
    %16 = arith.extui %15 : i1 to i32
    %c0_i32_5 = arith.constant 0 : i32
    %17 = arith.cmpi ne, %16, %c0_i32_5 : i32
    scf.if %17 {
      %27 = tpu.iota {dimensions = array<i32: 0>} : vector<4x128xi32>
      %c7 = arith.constant 7 : index
      %c0 = arith.constant 0 : index
      %28 = tpu.strided_load %arg5[%c7, %c0] {strides = array<i32: 2, 1>} : memref<48x128xf32, #tpu.memory_space<vmem>>, vector<2x128xf32>
      %c11 = arith.constant 11 : index
      %c0_9 = arith.constant 0 : index
      %29 = tpu.strided_load %arg5[%c11, %c0_9] {strides = array<i32: 2, 1>} : memref<48x128xf32, #tpu.memory_space<vmem>>, vector<2x128xf32>
      %30 = tpu.concatenate %28, %29 in 0 : vector<2x128xf32>, vector<2x128xf32> -> vector<4x128xf32>
      %false = arith.constant false
      %31 = vector.broadcast %false : i1 to vector<4x128xi1>
      %c0_i32_10 = arith.constant 0 : i32
      %32 = vector.broadcast %c0_i32_10 : i32 to vector<4x128xi32>
      %33 = arith.cmpi eq, %27, %32 : vector<4x128xi32>
      %34 = arith.ori %31, %33 : vector<4x128xi1>
      %c2_i32_11 = arith.constant 2 : i32
      %35 = vector.broadcast %c2_i32_11 : i32 to vector<4x128xi32>
      %36 = arith.cmpi eq, %27, %35 : vector<4x128xi32>
      %37 = arith.ori %34, %36 : vector<4x128xi1>
      %cst = arith.constant 0.000000e+00 : f32
      %38 = vector.broadcast %cst : f32 to vector<4x128xf32>
      %39 = arith.select %37, %38, %30 : vector<4x128xi1>, vector<4x128xf32>
      %40 = arith.truncf %39 : vector<4x128xf32> to vector<4x128xbf16>
      %c8 = arith.constant 8 : index
      %c0_12 = arith.constant 0 : index
      %41 = tpu.strided_load %arg5[%c8, %c0_12] {strides = array<i32: 2, 1>} : memref<48x128xf32, #tpu.memory_space<vmem>>, vector<2x128xf32>
      %c12 = arith.constant 12 : index
      %c0_13 = arith.constant 0 : index
      %42 = tpu.strided_load %arg5[%c12, %c0_13] {strides = array<i32: 2, 1>} : memref<48x128xf32, #tpu.memory_space<vmem>>, vector<2x128xf32>
      %43 = tpu.concatenate %41, %42 in 0 : vector<2x128xf32>, vector<2x128xf32> -> vector<4x128xf32>
      %44 = arith.truncf %43 : vector<4x128xf32> to vector<4x128xbf16>
      %c9 = arith.constant 9 : index
      %c0_14 = arith.constant 0 : index
      %45 = tpu.strided_load %arg5[%c9, %c0_14] {strides = array<i32: 2, 1>} : memref<48x128xf32, #tpu.memory_space<vmem>>, vector<2x128xf32>
      %c13 = arith.constant 13 : index
      %c0_15 = arith.constant 0 : index
      %46 = tpu.strided_load %arg5[%c13, %c0_15] {strides = array<i32: 2, 1>} : memref<48x128xf32, #tpu.memory_space<vmem>>, vector<2x128xf32>
      %47 = tpu.concatenate %45, %46 in 0 : vector<2x128xf32>, vector<2x128xf32> -> vector<4x128xf32>
      %48 = arith.truncf %47 : vector<4x128xf32> to vector<4x128xbf16>
      %c0_16 = arith.constant 0 : index
      %c0_17 = arith.constant 0 : index
      %c0_18 = arith.constant 0 : index
      %49 = vector.load %arg2[%c0_16, %c0_17, %c0_18] : memref<3x128x128xbf16, #tpu.memory_space<vmem>>, vector<1x128x128xbf16>
      %50 = vector.shape_cast %49 : vector<1x128x128xbf16> to vector<128x128xbf16>
      %cst_19 = arith.constant dense<0.000000e+00> : vector<4x128xf32>
      %51 = tpu.matmul %40, %50, %cst_19 {dimension_numbers = #tpu.dot_dimension_numbers<[1], [0], [0], [1], [0, 0, 1, 1], [], []>} : vector<4x128xbf16>, vector<128x128xbf16>, vector<4x128xf32> -> vector<4x128xf32>
      %c1 = arith.constant 1 : index
      %c0_20 = arith.constant 0 : index
      %c0_21 = arith.constant 0 : index
      %52 = vector.load %arg2[%c1, %c0_20, %c0_21] : memref<3x128x128xbf16, #tpu.memory_space<vmem>>, vector<1x128x128xbf16>
      %53 = vector.shape_cast %52 : vector<1x128x128xbf16> to vector<128x128xbf16>
      %cst_22 = arith.constant dense<0.000000e+00> : vector<4x128xf32>
      %54 = tpu.matmul %44, %53, %cst_22 {dimension_numbers = #tpu.dot_dimension_numbers<[1], [0], [0], [1], [0, 0, 1, 1], [], []>} : vector<4x128xbf16>, vector<128x128xbf16>, vector<4x128xf32> -> vector<4x128xf32>
      %c2 = arith.constant 2 : index
      %c0_23 = arith.constant 0 : index
      %c0_24 = arith.constant 0 : index
      %55 = vector.load %arg2[%c2, %c0_23, %c0_24] : memref<3x128x128xbf16, #tpu.memory_space<vmem>>, vector<1x128x128xbf16>
      %56 = vector.shape_cast %55 : vector<1x128x128xbf16> to vector<128x128xbf16>
      %cst_25 = arith.constant dense<0.000000e+00> : vector<4x128xf32>
      %57 = tpu.matmul %48, %56, %cst_25 {dimension_numbers = #tpu.dot_dimension_numbers<[1], [0], [0], [1], [0, 0, 1, 1], [], []>} : vector<4x128xbf16>, vector<128x128xbf16>, vector<4x128xf32> -> vector<4x128xf32>
      %58 = arith.addf %51, %54 : vector<4x128xf32>
      %59 = arith.addf %58, %57 : vector<4x128xf32>
      %c0_26 = arith.constant 0 : index
      %c0_27 = arith.constant 0 : index
      %c0_28 = arith.constant 0 : index
      %60 = vector.load %arg3[%c0_26, %c0_27, %c0_28] : memref<1x1x128xf32, #tpu.memory_space<vmem>>, vector<1x1x128xf32>
      %61 = vector.shape_cast %60 : vector<1x1x128xf32> to vector<1x128xf32>
      %62 = vector.broadcast %61 : vector<1x128xf32> to vector<4x128xf32>
      %63 = arith.addf %59, %62 : vector<4x128xf32>
      %cst_29 = arith.constant 0.000000e+00 : f32
      %64 = vector.broadcast %cst_29 : f32 to vector<4x128xf32>
      %65 = arith.subf %64, %63 : vector<4x128xf32>
      %66 = math.exp %65 : vector<4x128xf32>
      %cst_30 = arith.constant 1.000000e+00 : f32
      %67 = vector.broadcast %cst_30 : f32 to vector<4x128xf32>
      %68 = arith.addf %67, %66 : vector<4x128xf32>
      %69 = tpu.reciprocal %68 {approx = true} : vector<4x128xf32> -> vector<4x128xf32>
      %70 = arith.mulf %63, %69 : vector<4x128xf32>
      %c8_31 = arith.constant 8 : index
      %c0_32 = arith.constant 0 : index
      %71 = vector.load %arg5[%c8_31, %c0_32] : memref<48x128xf32, #tpu.memory_space<vmem>>, vector<4x128xf32>
      tpu.vector_store %arg5[%c8_31, %c0_32], %70 {strides = array<i32>} : memref<48x128xf32, #tpu.memory_space<vmem>>, vector<4x128xf32>,
    } else {
    }
    %c6_i32 = arith.constant 6 : i32
    %18 = arith.cmpi eq, %arg0, %c6_i32 : i32
    %19 = arith.extui %18 : i1 to i32
    %c0_i32_6 = arith.constant 0 : i32
    %20 = arith.cmpi ne, %19, %c0_i32_6 : i32
    scf.if %20 {
      %27 = tpu.iota {dimensions = array<i32: 0>} : vector<4x128xi32>
      %c7 = arith.constant 7 : index
      %c0 = arith.constant 0 : index
      %28 = vector.load %arg5[%c7, %c0] : memref<48x128xf32, #tpu.memory_space<vmem>>, vector<4x128xf32>
      %false = arith.constant false
      %29 = vector.broadcast %false : i1 to vector<4x128xi1>
      %c0_i32_9 = arith.constant 0 : i32
      %30 = vector.broadcast %c0_i32_9 : i32 to vector<4x128xi32>
      %31 = arith.cmpi eq, %27, %30 : vector<4x128xi32>
      %32 = arith.ori %29, %31 : vector<4x128xi1>
      %c2_i32_10 = arith.constant 2 : i32
      %33 = vector.broadcast %c2_i32_10 : i32 to vector<4x128xi32>
      %34 = arith.cmpi eq, %27, %33 : vector<4x128xi32>
      %35 = arith.ori %32, %34 : vector<4x128xi1>
      %cst = arith.constant 0.000000e+00 : f32
      %36 = vector.broadcast %cst : f32 to vector<4x128xf32>
      %37 = arith.select %35, %36, %28 : vector<4x128xi1>, vector<4x128xf32>
      %38 = arith.truncf %37 : vector<4x128xf32> to vector<4x128xbf16>
      %c8 = arith.constant 8 : index
      %c0_11 = arith.constant 0 : index
      %39 = vector.load %arg5[%c8, %c0_11] : memref<48x128xf32, #tpu.memory_space<vmem>>, vector<4x128xf32>
      %40 = arith.truncf %39 : vector<4x128xf32> to vector<4x128xbf16>
      %c9 = arith.constant 9 : index
      %c0_12 = arith.constant 0 : index
      %41 = vector.load %arg5[%c9, %c0_12] : memref<48x128xf32, #tpu.memory_space<vmem>>, vector<4x128xf32>
      %false_13 = arith.constant false
      %42 = vector.broadcast %false_13 : i1 to vector<4x128xi1>
      %c1_i32_14 = arith.constant 1 : i32
      %43 = vector.broadcast %c1_i32_14 : i32 to vector<4x128xi32>
      %44 = arith.cmpi eq, %27, %43 : vector<4x128xi32>
      %45 = arith.ori %42, %44 : vector<4x128xi1>
      %c3_i32_15 = arith.constant 3 : i32
      %46 = vector.broadcast %c3_i32_15 : i32 to vector<4x128xi32>
      %47 = arith.cmpi eq, %27, %46 : vector<4x128xi32>
      %48 = arith.ori %45, %47 : vector<4x128xi1>
      %cst_16 = arith.constant 0.000000e+00 : f32
      %49 = vector.broadcast %cst_16 : f32 to vector<4x128xf32>
      %50 = arith.select %48, %49, %41 : vector<4x128xi1>, vector<4x128xf32>
      %51 = arith.truncf %50 : vector<4x128xf32> to vector<4x128xbf16>
      %c0_17 = arith.constant 0 : index
      %c0_18 = arith.constant 0 : index
      %c0_19 = arith.constant 0 : index
      %52 = vector.load %arg2[%c0_17, %c0_18, %c0_19] : memref<3x128x128xbf16, #tpu.memory_space<vmem>>, vector<1x128x128xbf16>
      %53 = vector.shape_cast %52 : vector<1x128x128xbf16> to vector<128x128xbf16>
      %cst_20 = arith.constant dense<0.000000e+00> : vector<4x128xf32>
      %54 = tpu.matmul %38, %53, %cst_20 {dimension_numbers = #tpu.dot_dimension_numbers<[1], [0], [0], [1], [0, 0, 1, 1], [], []>} : vector<4x128xbf16>, vector<128x128xbf16>, vector<4x128xf32> -> vector<4x128xf32>
      %c1 = arith.constant 1 : index
      %c0_21 = arith.constant 0 : index
      %c0_22 = arith.constant 0 : index
      %55 = vector.load %arg2[%c1, %c0_21, %c0_22] : memref<3x128x128xbf16, #tpu.memory_space<vmem>>, vector<1x128x128xbf16>
      %56 = vector.shape_cast %55 : vector<1x128x128xbf16> to vector<128x128xbf16>
      %cst_23 = arith.constant dense<0.000000e+00> : vector<4x128xf32>
      %57 = tpu.matmul %40, %56, %cst_23 {dimension_numbers = #tpu.dot_dimension_numbers<[1], [0], [0], [1], [0, 0, 1, 1], [], []>} : vector<4x128xbf16>, vector<128x128xbf16>, vector<4x128xf32> -> vector<4x128xf32>
      %c2 = arith.constant 2 : index
      %c0_24 = arith.constant 0 : index
      %c0_25 = arith.constant 0 : index
      %58 = vector.load %arg2[%c2, %c0_24, %c0_25] : memref<3x128x128xbf16, #tpu.memory_space<vmem>>, vector<1x128x128xbf16>
      %59 = vector.shape_cast %58 : vector<1x128x128xbf16> to vector<128x128xbf16>
      %cst_26 = arith.constant dense<0.000000e+00> : vector<4x128xf32>
      %60 = tpu.matmul %51, %59, %cst_26 {dimension_numbers = #tpu.dot_dimension_numbers<[1], [0], [0], [1], [0, 0, 1, 1], [], []>} : vector<4x128xbf16>, vector<128x128xbf16>, vector<4x128xf32> -> vector<4x128xf32>
      %61 = arith.addf %54, %57 : vector<4x128xf32>
      %62 = arith.addf %61, %60 : vector<4x128xf32>
      %c0_27 = arith.constant 0 : index
      %c0_28 = arith.constant 0 : index
      %c0_29 = arith.constant 0 : index
      %63 = vector.load %arg3[%c0_27, %c0_28, %c0_29] : memref<1x1x128xf32, #tpu.memory_space<vmem>>, vector<1x1x128xf32>
      %64 = vector.shape_cast %63 : vector<1x1x128xf32> to vector<1x128xf32>
      %65 = vector.broadcast %64 : vector<1x128xf32> to vector<4x128xf32>
      %66 = arith.addf %62, %65 : vector<4x128xf32>
      %cst_30 = arith.constant 0.000000e+00 : f32
      %67 = vector.broadcast %cst_30 : f32 to vector<4x128xf32>
      %68 = arith.subf %67, %66 : vector<4x128xf32>
      %69 = math.exp %68 : vector<4x128xf32>
      %cst_31 = arith.constant 1.000000e+00 : f32
      %70 = vector.broadcast %cst_31 : f32 to vector<4x128xf32>
      %71 = arith.addf %70, %69 : vector<4x128xf32>
      %72 = tpu.reciprocal %71 {approx = true} : vector<4x128xf32> -> vector<4x128xf32>
      %73 = arith.mulf %66, %72 : vector<4x128xf32>
      %c8_32 = arith.constant 8 : index
      %c0_33 = arith.constant 0 : index
      %74 = vector.load %arg5[%c8_32, %c0_33] : memref<48x128xf32, #tpu.memory_space<vmem>>, vector<4x128xf32>
      tpu.vector_store %arg5[%c8_32, %c0_33], %73 {strides = array<i32>} : memref<48x128xf32, #tpu.memory_space<vmem>>, vector<4x128xf32>,
    } else {
    }
    %c7_i32 = arith.constant 7 : i32
    %21 = arith.cmpi eq, %arg0, %c7_i32 : i32
    %22 = arith.extui %21 : i1 to i32
    %c0_i32_7 = arith.constant 0 : i32
    %23 = arith.cmpi ne, %22, %c0_i32_7 : i32
    scf.if %23 {
      %27 = tpu.iota {dimensions = array<i32: 0>} : vector<2x128xi32>
      %c7 = arith.constant 7 : index
      %c0 = arith.constant 0 : index
      %28 = tpu.strided_load %arg5[%c7, %c0] {strides = array<i32: 2, 1>} : memref<48x128xf32, #tpu.memory_space<vmem>>, vector<1x128xf32>
      %c9 = arith.constant 9 : index
      %c0_9 = arith.constant 0 : index
      %29 = tpu.strided_load %arg5[%c9, %c0_9] {strides = array<i32: 2, 1>} : memref<48x128xf32, #tpu.memory_space<vmem>>, vector<1x128xf32>
      %30 = tpu.concatenate %28, %29 in 0 : vector<1x128xf32>, vector<1x128xf32> -> vector<2x128xf32>
      %false = arith.constant false
      %31 = vector.broadcast %false : i1 to vector<2x128xi1>
      %c0_i32_10 = arith.constant 0 : i32
      %32 = vector.broadcast %c0_i32_10 : i32 to vector<2x128xi32>
      %33 = arith.cmpi eq, %27, %32 : vector<2x128xi32>
      %34 = arith.ori %31, %33 : vector<2x128xi1>
      %c1_i32_11 = arith.constant 1 : i32
      %35 = vector.broadcast %c1_i32_11 : i32 to vector<2x128xi32>
      %36 = arith.cmpi eq, %27, %35 : vector<2x128xi32>
      %37 = arith.ori %34, %36 : vector<2x128xi1>
      %cst = arith.constant 0.000000e+00 : f32
      %38 = vector.broadcast %cst : f32 to vector<2x128xf32>
      %39 = arith.select %37, %38, %30 : vector<2x128xi1>, vector<2x128xf32>
      %40 = arith.truncf %39 : vector<2x128xf32> to vector<2x128xbf16>
      %c8 = arith.constant 8 : index
      %c0_12 = arith.constant 0 : index
      %41 = tpu.strided_load %arg5[%c8, %c0_12] {strides = array<i32: 2, 1>} : memref<48x128xf32, #tpu.memory_space<vmem>>, vector<1x128xf32>
      %c10 = arith.constant 10 : index
      %c0_13 = arith.constant 0 : index
      %42 = tpu.strided_load %arg5[%c10, %c0_13] {strides = array<i32: 2, 1>} : memref<48x128xf32, #tpu.memory_space<vmem>>, vector<1x128xf32>
      %43 = tpu.concatenate %41, %42 in 0 : vector<1x128xf32>, vector<1x128xf32> -> vector<2x128xf32>
      %44 = arith.truncf %43 : vector<2x128xf32> to vector<2x128xbf16>
      %c9_14 = arith.constant 9 : index
      %c0_15 = arith.constant 0 : index
      %45 = tpu.strided_load %arg5[%c9_14, %c0_15] {strides = array<i32: 2, 1>} : memref<48x128xf32, #tpu.memory_space<vmem>>, vector<1x128xf32>
      %c11 = arith.constant 11 : index
      %c0_16 = arith.constant 0 : index
      %46 = tpu.strided_load %arg5[%c11, %c0_16] {strides = array<i32: 2, 1>} : memref<48x128xf32, #tpu.memory_space<vmem>>, vector<1x128xf32>
      %47 = tpu.concatenate %45, %46 in 0 : vector<1x128xf32>, vector<1x128xf32> -> vector<2x128xf32>
      %48 = arith.truncf %47 : vector<2x128xf32> to vector<2x128xbf16>
      %c0_17 = arith.constant 0 : index
      %c0_18 = arith.constant 0 : index
      %c0_19 = arith.constant 0 : index
      %49 = vector.load %arg2[%c0_17, %c0_18, %c0_19] : memref<3x128x128xbf16, #tpu.memory_space<vmem>>, vector<1x128x128xbf16>
      %50 = vector.shape_cast %49 : vector<1x128x128xbf16> to vector<128x128xbf16>
      %cst_20 = arith.constant dense<0.000000e+00> : vector<2x128xf32>
      %51 = tpu.matmul %40, %50, %cst_20 {dimension_numbers = #tpu.dot_dimension_numbers<[1], [0], [0], [1], [0, 0, 1, 1], [], []>} : vector<2x128xbf16>, vector<128x128xbf16>, vector<2x128xf32> -> vector<2x128xf32>
      %c1 = arith.constant 1 : index
      %c0_21 = arith.constant 0 : index
      %c0_22 = arith.constant 0 : index
      %52 = vector.load %arg2[%c1, %c0_21, %c0_22] : memref<3x128x128xbf16, #tpu.memory_space<vmem>>, vector<1x128x128xbf16>
      %53 = vector.shape_cast %52 : vector<1x128x128xbf16> to vector<128x128xbf16>
      %cst_23 = arith.constant dense<0.000000e+00> : vector<2x128xf32>
      %54 = tpu.matmul %44, %53, %cst_23 {dimension_numbers = #tpu.dot_dimension_numbers<[1], [0], [0], [1], [0, 0, 1, 1], [], []>} : vector<2x128xbf16>, vector<128x128xbf16>, vector<2x128xf32> -> vector<2x128xf32>
      %c2 = arith.constant 2 : index
      %c0_24 = arith.constant 0 : index
      %c0_25 = arith.constant 0 : index
      %55 = vector.load %arg2[%c2, %c0_24, %c0_25] : memref<3x128x128xbf16, #tpu.memory_space<vmem>>, vector<1x128x128xbf16>
      %56 = vector.shape_cast %55 : vector<1x128x128xbf16> to vector<128x128xbf16>
      %cst_26 = arith.constant dense<0.000000e+00> : vector<2x128xf32>
      %57 = tpu.matmul %48, %56, %cst_26 {dimension_numbers = #tpu.dot_dimension_numbers<[1], [0], [0], [1], [0, 0, 1, 1], [], []>} : vector<2x128xbf16>, vector<128x128xbf16>, vector<2x128xf32> -> vector<2x128xf32>
      %58 = arith.addf %51, %54 : vector<2x128xf32>
      %59 = arith.addf %58, %57 : vector<2x128xf32>
      %c0_27 = arith.constant 0 : index
      %c0_28 = arith.constant 0 : index
      %c0_29 = arith.constant 0 : index
      %60 = vector.load %arg3[%c0_27, %c0_28, %c0_29] : memref<1x1x128xf32, #tpu.memory_space<vmem>>, vector<1x1x128xf32>
      %61 = vector.shape_cast %60 : vector<1x1x128xf32> to vector<1x128xf32>
      %62 = vector.broadcast %61 : vector<1x128xf32> to vector<2x128xf32>
      %63 = arith.addf %59, %62 : vector<2x128xf32>
      %cst_30 = arith.constant 0.000000e+00 : f32
      %64 = vector.broadcast %cst_30 : f32 to vector<2x128xf32>
      %65 = arith.subf %64, %63 : vector<2x128xf32>
      %66 = math.exp %65 : vector<2x128xf32>
      %cst_31 = arith.constant 1.000000e+00 : f32
      %67 = vector.broadcast %cst_31 : f32 to vector<2x128xf32>
      %68 = arith.addf %67, %66 : vector<2x128xf32>
      %69 = tpu.reciprocal %68 {approx = true} : vector<2x128xf32> -> vector<2x128xf32>
      %70 = arith.mulf %63, %69 : vector<2x128xf32>
      %c8_32 = arith.constant 8 : index
      %c0_33 = arith.constant 0 : index
      %71 = vector.load %arg5[%c8_32, %c0_33] : memref<48x128xf32, #tpu.memory_space<vmem>>, vector<2x128xf32>
      tpu.vector_store %arg5[%c8_32, %c0_33], %70 {strides = array<i32>} : memref<48x128xf32, #tpu.memory_space<vmem>>, vector<2x128xf32>,
    } else {
    }
    %c8_i32 = arith.constant 8 : i32
    %24 = arith.cmpi eq, %arg0, %c8_i32 : i32
    %25 = arith.extui %24 : i1 to i32
    %c0_i32_8 = arith.constant 0 : i32
    %26 = arith.cmpi ne, %25, %c0_i32_8 : i32
    scf.if %26 {
      %c8 = arith.constant 8 : index
      %c0 = arith.constant 0 : index
      %27 = vector.load %arg5[%c8, %c0] : memref<48x128xf32, #tpu.memory_space<vmem>>, vector<2x128xf32>
      %28 = arith.truncf %27 : vector<2x128xf32> to vector<2x128xbf16>
      %c0_9 = arith.constant 0 : index
      %c0_10 = arith.constant 0 : index
      %c0_11 = arith.constant 0 : index
      %29 = vector.load %arg2[%c0_9, %c0_10, %c0_11] : memref<3x128x128xbf16, #tpu.memory_space<vmem>>, vector<1x128x128xbf16>
      %30 = vector.shape_cast %29 : vector<1x128x128xbf16> to vector<128x128xbf16>
      %cst = arith.constant dense<0.000000e+00> : vector<2x128xf32>
      %31 = tpu.matmul %28, %30, %cst {dimension_numbers = #tpu.dot_dimension_numbers<[1], [0], [0], [1], [0, 0, 1, 1], [], []>} : vector<2x128xbf16>, vector<128x128xbf16>, vector<2x128xf32> -> vector<2x128xf32>
      %c0_12 = arith.constant 0 : index
      %c0_13 = arith.constant 0 : index
      %c0_14 = arith.constant 0 : index
      %32 = vector.load %arg3[%c0_12, %c0_13, %c0_14] : memref<1x1x128xf32, #tpu.memory_space<vmem>>, vector<1x1x128xf32>
      %33 = vector.shape_cast %32 : vector<1x1x128xf32> to vector<1x128xf32>
      %34 = vector.broadcast %33 : vector<1x128xf32> to vector<2x128xf32>
      %35 = arith.addf %31, %34 : vector<2x128xf32>
      %c8_15 = arith.constant 8 : index
      %c0_16 = arith.constant 0 : index
      %36 = vector.load %arg5[%c8_15, %c0_16] : memref<48x128xf32, #tpu.memory_space<vmem>>, vector<2x128xf32>
      tpu.vector_store %arg5[%c8_15, %c0_16], %35 {strides = array<i32>} : memref<48x128xf32, #tpu.memory_space<vmem>>, vector<2x128xf32>,
      %37 = tpu.iota {dimensions = array<i32: 1>} : vector<2x128xi32>
      %c1_i32_17 = arith.constant 1 : i32
      %38 = vector.broadcast %c1_i32_17 : i32 to vector<2x128xi32>
      %39 = arith.cmpi slt, %37, %38 : vector<2x128xi32>
      %cst_18 = arith.constant 0.000000e+00 : f32
      %40 = vector.broadcast %cst_18 : f32 to vector<2x128xf32>
      %41 = arith.select %39, %35, %40 : vector<2x128xi1>, vector<2x128xf32>
      %cst_19 = arith.constant dense<0.000000e+00> : vector<2xf32>
      %42 = vector.multi_reduction <add>, %41, %cst_19 [1] : vector<2x128xf32> to vector<2xf32>
      %43 = vector.shape_cast %42 : vector<2xf32> to vector<2x1xf32>
      %cst_20 = arith.constant 1.000000e+00 : f32
      %44 = vector.broadcast %cst_20 : f32 to vector<2x1xf32>
      %45 = arith.divf %43, %44 : vector<2x1xf32>
      %cst_21 = arith.constant 0.000000e+00 : f32
      %46 = vector.broadcast %cst_21 : f32 to vector<2x1xf32>
      %47 = arith.subf %46, %45 : vector<2x1xf32>
      %48 = math.exp %47 : vector<2x1xf32>
      %cst_22 = arith.constant 1.000000e+00 : f32
      %49 = vector.broadcast %cst_22 : f32 to vector<2x1xf32>
      %50 = arith.addf %49, %48 : vector<2x1xf32>
      %51 = tpu.reciprocal %50 {approx = true} : vector<2x1xf32> -> vector<2x1xf32>
      %cst_23 = arith.constant 0.000000e+00 : f32
      %52 = vector.broadcast %cst_23 : f32 to vector<8x128xf32>
      %c0_24 = arith.constant 0 : index
      %c0_25 = arith.constant 0 : index
      %53 = vector.load %arg4[%c0_24, %c0_25] : memref<8x128xf32, #tpu.memory_space<vmem>>, vector<8x128xf32>
      tpu.vector_store %arg4[%c0_24, %c0_25], %52 {strides = array<i32>} : memref<8x128xf32, #tpu.memory_space<vmem>>, vector<8x128xf32>,
      %c0_26 = arith.constant 0 : index
      %c0_27 = arith.constant 0 : index
      %54 = vector.load %arg4[%c0_26, %c0_27] : memref<8x128xf32, #tpu.memory_space<vmem>>, vector<2x1xf32>
      tpu.vector_store %arg4[%c0_26, %c0_27], %51 {strides = array<i32>} : memref<8x128xf32, #tpu.memory_space<vmem>>, vector<2x1xf32>,
    } else {
    }
    return
  }
  func.func @transform_0(%arg0: i32) -> (i32, i32) {
    %c0_i32 = arith.constant 0 : i32
    %c0_i32_0 = arith.constant 0 : i32
    %c0_i32_1 = arith.constant 0 : i32
    return %c0_i32, %c0_i32_0 : i32, i32
  }
  func.func @transform_1(%arg0: i32) -> (i32, i32, i32) {
    %c0_i32 = arith.constant 0 : i32
    %c0_i32_0 = arith.constant 0 : i32
    %c0_i32_1 = arith.constant 0 : i32
    return %arg0, %c0_i32, %c0_i32_0 : i32, i32, i32
  }
  func.func @transform_2(%arg0: i32) -> (i32, i32, i32) {
    %c0_i32 = arith.constant 0 : i32
    %c0_i32_0 = arith.constant 0 : i32
    %c0_i32_1 = arith.constant 0 : i32
    return %arg0, %c0_i32, %c0_i32_0 : i32, i32, i32
  }
  func.func @transform_3(%arg0: i32) -> (i32, i32) {
    %c0_i32 = arith.constant 0 : i32
    %c0_i32_0 = arith.constant 0 : i32
    %c0_i32_1 = arith.constant 0 : i32
    return %c0_i32, %c0_i32_0 : i32, i32
  }
}

</mosaic_0001>

<llo_original>
// kernel: forward.1
$region0: #{forward.1}
  #allocation0 [shape = 'u32[]', space=smem, size = 0x4, offset = 0x4, fixed_abs, tag = 'smem constant byte address 0x4 - core index']
  #allocation1 [shape = 'u32[144,128]{1,0:T(1,128)}', space=vmem, size = 0x12000, scoped, tag = 'internal scratch']
  #allocation2 [shape = 'f32[48,128]{1,0:T(8,128)}', space=vmem, size = 0x6000, scoped, tag = 'scratch operand']
  %s0 = inlined_call_operand.vmem [shape: bf16[32,128], index: 0, kind: input, shape index: {}]
  %s1 = inlined_call_operand.hbm [shape: bf16[27,128,128], index: 1, kind: input, shape index: {}]
  %s2 = inlined_call_operand.vmem [shape: f32[9,1,128], index: 2, kind: input, shape index: {}]
  %s3 = inlined_call_operand.vmem [shape: f32[8,128], index: 3, kind: output, shape index: {}]
  %s4 = sld [smem:[#allocation0]]
  $region85: #{forward.1} parent=0
    _
  %s6 = ssub.s32 1, %s4
  %s7 = scalar_select 0, %s6, %s4
  $region1: #{forward.1} parent=0
    #allocation3 [shape = 'u8[196608]{0}', space=vmem, size = 0x30000, scoped, tag = 'input window, operand 1']
    #allocation4 [shape = 's32[2]{0}', space=sflag, size = 0x8, scoped, tag = 'scoped memory for forward.1']
    %8 = vsyncpa [#allocation4], 0
    %s9 = scalar_lea.sflag [#allocation4], 1
    %10 = vsyncpa %s9, 0
    loop: start=0, step=1, limit=11
    $region2: #{forward.1} parent=1 // loop_pre_header
      _
    $region3: #{forward.1} parent=1 // loop_header
      %s12 = sphi 0, %s16
      %p13 = scmp.ge.s32.totalorder %s12, 11
      %s20 = sphi 0, %s20
      %s22 = sphi 0, %s20
      %s23 = sphi 0, %s22
      %s37 = sphi 0, %s23
      %s43 = sphi 0, %s45
      %s46 = sphi 0, %s43
      %s47 = sphi 0, %s46
      %s63 = sphi 0, %s47
      %s69 = sphi 0, %s71
      %s72 = sphi 0, %s69
      %s73 = sphi 0, %s72
      %s89 = sphi 0, %s73
      %s93 = sphi 0, %s93
      %s95 = sphi 0, %s93
      %s96 = sphi 0, %s95
      %s110 = sphi 0, %s96
    $region4: #{forward.1} parent=1 // loop_header_branch
      %15 = sbr.rel (%p13) target = $region8
    $region5: #{forward.1} parent=1 // loop_body
      %s17 = ssub.s32 %s12, 1
      %s18 = ssub.s32 %s12, 2
      %s19 = sadd.s32 %s12, 1
      %s21 = sadd.s32 %s20, 1
      %p24 = scmp.eq.s32.totalorder %s12, 8
      %p25 = scmp.ne.s32.totalorder %s20, %s22
      %p26 = scmp.eq.s32.totalorder %s12, 0
      %p27 = por %p25, %p26
      %p28 = scmp.ne.s32.totalorder %s20, %s22
      %p29 = scmp.eq.s32.totalorder %s17, 8
      %p30 = por %p28, %p29
      %p31 = scmp.ne.s32.totalorder %s22, %s23
      %p32 = scmp.eq.s32.totalorder %s17, 0
      %p33 = por %p31, %p32
      %p34 = scmp.ne.s32.totalorder %s22, %s23
      %p35 = scmp.eq.s32.totalorder %s18, 8
      %p36 = por %p34, %p35
      %p38 = scmp.ne.s32.totalorder %s23, %s37
      %p39 = scmp.eq.s32.totalorder %s18, 0
      %p40 = por %p38, %p39
      %s41 = ssub.s32 %s12, %s19
      %p42 = scmp.eq.s32.totalorder %s41, 0
      %s44 = sadd.s32 %s43, 1
      %s45 = scalar_select %p42, %s43, %s44
      %p48 = pneg %p42
      %p49 = scmp.eq.s32.totalorder %s12, 8
      %p50 = por %p48, %p49
      %p51 = scmp.ne.s32.totalorder %s43, %s46
      %p52 = scmp.eq.s32.totalorder %s12, 0
      %p53 = por %p51, %p52
      %p54 = scmp.ne.s32.totalorder %s43, %s46
      %p55 = scmp.eq.s32.totalorder %s17, 8
      %p56 = por %p54, %p55
      %p57 = scmp.ne.s32.totalorder %s46, %s47
      %p58 = scmp.eq.s32.totalorder %s17, 0
      %p59 = por %p57, %p58
      %p60 = scmp.ne.s32.totalorder %s46, %s47
      %p61 = scmp.eq.s32.totalorder %s18, 8
      %p62 = por %p60, %p61
      %p64 = scmp.ne.s32.totalorder %s47, %s63
      %p65 = scmp.eq.s32.totalorder %s18, 0
      %p66 = por %p64, %p65
      %s67 = ssub.s32 %s12, %s19
      %p68 = scmp.eq.s32.totalorder %s67, 0
      %s70 = sadd.s32 %s69, 1
      %s71 = scalar_select %p68, %s69, %s70
      %p74 = pneg %p68
      %p75 = scmp.eq.s32.totalorder %s12, 8
      %p76 = por %p74, %p75
      %p77 = scmp.ne.s32.totalorder %s69, %s72
      %p78 = scmp.eq.s32.totalorder %s12, 0
      %p79 = por %p77, %p78
      %p80 = scmp.ne.s32.totalorder %s69, %s72
      %p81 = scmp.eq.s32.totalorder %s17, 8
      %p82 = por %p80, %p81
      %p83 = scmp.ne.s32.totalorder %s72, %s73
      %p84 = scmp.eq.s32.totalorder %s17, 0
      %p85 = por %p83, %p84
      %p86 = scmp.ne.s32.totalorder %s72, %s73
      %p87 = scmp.eq.s32.totalorder %s18, 8
      %p88 = por %p86, %p87
      %p90 = scmp.ne.s32.totalorder %s73, %s89
      %p91 = scmp.eq.s32.totalorder %s18, 0
      %p92 = por %p90, %p91
      %s94 = sadd.s32 %s93, 1
      %p97 = scmp.eq.s32.totalorder %s12, 8
      %p98 = scmp.ne.s32.totalorder %s93, %s95
      %p99 = scmp.eq.s32.totalorder %s12, 0
      %p100 = por %p98, %p99
      %p101 = scmp.ne.s32.totalorder %s93, %s95
      %p102 = scmp.eq.s32.totalorder %s17, 8
      %p103 = por %p101, %p102
      %p104 = scmp.ne.s32.totalorder %s95, %s96
      %p105 = scmp.eq.s32.totalorder %s17, 0
      %p106 = por %p104, %p105
      %p107 = scmp.ne.s32.totalorder %s95, %s96
      %p108 = scmp.eq.s32.totalorder %s18, 8
      %p109 = por %p107, %p108
      %p111 = scmp.ne.s32.totalorder %s96, %s110
      %p112 = scmp.eq.s32.totalorder %s18, 0
      %p113 = por %p111, %p112
      %p114 = scmp.le.s32.totalorder 1, %s12
      %p115 = scmp.lt.s32.totalorder %s12, 10
      %p116 = pnand %p114, %p115
      %p117 = pneg %p116
      // Predicated region
      $region9: #{forward.1} parent=5 // pred_check
        _
      $region10: #{forward.1} parent=5 // pred_check_branch
        %119 = sbr.rel (%p116) target = $region12
      $region11: #{forward.1} parent=5 // pred_region
        %s120 = ssub.s32 %s12, 1
        // Predicated region
        $region13: #{forward.1} parent=11 // pred_check
          %p121 = pneg %p33
        $region14: #{forward.1} parent=11 // pred_check_branch
          %123 = sbr.rel (%p121) target = $region16
        $region15: #{forward.1} parent=11 // pred_region
          _
        $region16: #{forward.1} parent=11 // pred_fallthru
          _
      $region12: #{forward.1} parent=5 // pred_fallthru
        _
      %p124 = scmp.lt.s32.totalorder %s12, 9
      // Predicated region
      $region17: #{forward.1} parent=5 // pred_check
        %p125 = pneg %p124
      $region18: #{forward.1} parent=5 // pred_check_branch
        %127 = sbr.rel (%p125) target = $region20
      $region19: #{forward.1} parent=5 // pred_region
        // Predicated region
        $region21: #{forward.1} parent=19 // pred_check
          %p128 = pneg %p53
        $region22: #{forward.1} parent=19 // pred_check_branch
          %130 = sbr.rel (%p128) target = $region24
        $region23: #{forward.1} parent=19 // pred_region
          %s131 = sand.u32 %s43, 1
          %s132 = scalar_lea.sflag [#allocation4], %s131
          %s133 = sand.u32 %s43, 1
          %s134 = smul.addr %s133, 192
          %s135 = scalar_lea.vmem [#allocation3], %s134
          %s136 = smul.u32 3, %s12
          %s138 = ssub.s32 3072, 3072
          %139 = vsyncadd %s132, %s138
          %s140 = smul.addr %s136, 16
          %s141 = smul.addr %s140, 64
          %s142 = scalar_lea.hbm %s1, %s141
          %s143 = sshll.u32 %s135, 4
          %s144 = int_to_ptr.vmem [resolvable:$true] %s143
          %149 = dma.hbm_to_vmem [thread:$0]  %s142, 3072, %s144, %s132, 64, 64, 4
        $region24: #{forward.1} parent=19 // pred_fallthru
          _
        // Predicated region
        $region25: #{forward.1} parent=19 // pred_check
          %p150 = pneg %p79
        $region26: #{forward.1} parent=19 // pred_check_branch
          %152 = sbr.rel (%p150) target = $region28
        $region27: #{forward.1} parent=19 // pred_region
          %p153 = scmp.lt.s32.totalorder %s12, 8
          %s154 = scalar_select %p153, %s12, 8
          %s155 = scalar_lea.vmem %s2, %s154
        $region28: #{forward.1} parent=19 // pred_fallthru
          _
      $region20: #{forward.1} parent=5 // pred_fallthru
        _
      %p156 = scmp.le.s32.totalorder 1, %s12
      %p157 = scmp.lt.s32.totalorder %s12, 10
      %p158 = pnand %p156, %p157
      %p159 = pneg %p158
      // Predicated region
      $region29: #{forward.1} parent=5 // pred_check
        _
      $region30: #{forward.1} parent=5 // pred_check_branch
        %161 = sbr.rel (%p158) target = $region32
      $region31: #{forward.1} parent=5 // pred_region
        %s162 = ssub.s32 %s12, 1
        %s163 = sand.u32 %s46, 1
        %s164 = scalar_lea.sflag [#allocation4], %s163
        %s165 = sand.u32 %s46, 1
        %s166 = smul.addr %s165, 192
        %s167 = scalar_lea.vmem [#allocation3], %s166
        // Predicated region
        $region33: #{forward.1} parent=31 // pred_check
          %p168 = pneg %p59
        $region34: #{forward.1} parent=31 // pred_check_branch
          %170 = sbr.rel (%p168) target = $region36
        $region35: #{forward.1} parent=31 // pred_region
          %171 = dma.done %s164, 3072
        $region36: #{forward.1} parent=31 // pred_fallthru
          _
        %p172 = pneg %p33
        %p173 = pneg %p30
        %s174 = sand.u32 %s46, 1
        %s175 = scalar_lea.sflag [#allocation4], %s174
        %s176 = sand.u32 %s46, 1
        %s177 = smul.addr %s176, 192
        %s178 = scalar_lea.vmem [#allocation3], %s177
        %p179 = pneg %p59
        %p180 = pneg %p56
        %p181 = scmp.lt.s32.totalorder %s17, 8
        %s182 = scalar_select %p181, %s17, 8
        %s183 = scalar_lea.vmem %s2, %s182
        %p184 = pneg %p85
        %p185 = pneg %p82
        %p186 = pneg %p106
        %p187 = pneg %p103
        %s188 = smul.u32 3, %s17
        %p189 = scmp.lt.s32.totalorder %s17, 8
        %s190 = scalar_select %p189, %s17, 8
        %s191 = scalar_lea.vmem %s2, %s190
        %p193 = scmp.eq.s32.totalorder %s17, 0
        // Predicated region
        $region37: #{forward.1} parent=31 // pred_check
          %p194 = pneg %p193
        $region38: #{forward.1} parent=31 // pred_check_branch
          %196 = sbr.rel (%p194) target = $region40
        $region39: #{forward.1} parent=31 // pred_region
          %v197 = vld [vmem:[%s0] sm:$0xf]
          %v198 = vld [vmem:[%s0 + $0x4] sm:$0xf]
          %v199 = vld [vmem:[%s0 + $0x8] sm:$0xf]
          %v200 = vld [vmem:[%s0 + $0xc] sm:$0xf]
          %v201 = vunpack.c.l.bf16 %v197
          %v202 = vunpack.c.l.bf16 %v198
          %v203 = vunpack.c.l.bf16 %v199
          %v204 = vunpack.c.l.bf16 %v200
          %205 = vst [vmem:[#allocation2 + $0x8] sm:$0xff] %v201
          %206 = vst [vmem:[#allocation2 + $0x10] sm:$0xff] %v202
          %207 = vst [vmem:[#allocation2 + $0x18] sm:$0xff] %v203
          %208 = vst [vmem:[#allocation2 + $0x20] sm:$0xff] %v204
          %v209 = vlaneseq
          %v210 = vshrl.u32 %v209, 7
          %v211 = vadd.s32 %v210, 8
          %v212 = vadd.s32 %v210, 16
          %v213 = vadd.s32 %v210, 24
          %v214 = vld [vmem:[#allocation2 + $0x7] sm:$0xff]
          %v215 = vld [vmem:[#allocation2 + $0xf] sm:$0xff]
          %v216 = vld [vmem:[#allocation2 + $0x17] sm:$0xff]
          %v217 = vld [vmem:[#allocation2 + $0x1f] sm:$0xff]
          %vm218 = vcmp.eq.s32.totalorder %v210, 0
          %vm219 = vcmp.eq.s32.totalorder %v211, 0
          %vm220 = vcmp.eq.s32.totalorder %v212, 0
          %vm221 = vcmp.eq.s32.totalorder %v213, 0
          %vm222 = vcmp.eq.s32.totalorder %v210, 16
          %vm223 = vcmp.eq.s32.totalorder %v211, 16
          %vm224 = vcmp.eq.s32.totalorder %v212, 16
          %vm225 = vcmp.eq.s32.totalorder %v213, 16
          %vm226 = vmor %vm218, %vm222
          %vm227 = vmor %vm219, %vm223
          %vm228 = vmor %vm220, %vm224
          %vm229 = vmor %vm221, %vm225
          %v230 = vsel %vm226, 0.0, %v214
          %v231 = vsel %vm227, 0.0, %v215
          %v232 = vsel %vm228, 0.0, %v216
          %v233 = vsel %vm229, 0.0, %v217
          %v234 = vpack.c.bf16 %v231, %v230
          %v235 = vpack.c.bf16 %v233, %v232
          %v236 = vld [vmem:[#allocation2 + $0x8] sm:$0xff]
          %v237 = vld [vmem:[#allocation2 + $0x10] sm:$0xff]
          %v238 = vld [vmem:[#allocation2 + $0x18] sm:$0xff]
          %v239 = vld [vmem:[#allocation2 + $0x20] sm:$0xff]
          %v240 = vpack.c.bf16 %v237, %v236
          %v241 = vpack.c.bf16 %v239, %v238
          %v242 = vld [vmem:[#allocation2 + $0x9] sm:$0xff]
          %v243 = vld [vmem:[#allocation2 + $0x11] sm:$0xff]
          %v244 = vld [vmem:[#allocation2 + $0x19] sm:$0xff]
          %v245 = vld [vmem:[#allocation2 + $0x21] sm:$0xff]
          %vm246 = vcmp.eq.s32.totalorder %v210, 15
          %vm247 = vcmp.eq.s32.totalorder %v211, 15
          %vm248 = vcmp.eq.s32.totalorder %v212, 15
          %vm249 = vcmp.eq.s32.totalorder %v213, 15
          %vm250 = vcmp.eq.s32.totalorder %v210, 31
          %vm251 = vcmp.eq.s32.totalorder %v211, 31
          %vm252 = vcmp.eq.s32.totalorder %v212, 31
          %vm253 = vcmp.eq.s32.totalorder %v213, 31
          %vm254 = vmor %vm246, %vm250
          %vm255 = vmor %vm247, %vm251
          %vm256 = vmor %vm248, %vm252
          %vm257 = vmor %vm249, %vm253
          %v258 = vsel %vm254, 0.0, %v242
          %v259 = vsel %vm255, 0.0, %v243
          %v260 = vsel %vm256, 0.0, %v244
          %v261 = vsel %vm257, 0.0, %v245
          %v262 = vpack.c.bf16 %v259, %v258
          %v263 = vpack.c.bf16 %v261, %v260
          %v264 = vld [vmem:[%s167] sm:$0xf]
          %v265 = vld [vmem:[%s167 + $0x4] sm:$0xf]
          %v266 = vld [vmem:[%s167 + $0x8] sm:$0xf]
          %v267 = vld [vmem:[%s167 + $0xc] sm:$0xf]
          %v268 = vld [vmem:[%s167 + $0x10] sm:$0xf]
          %v269 = vld [vmem:[%s167 + $0x14] sm:$0xf]
          %v270 = vld [vmem:[%s167 + $0x18] sm:$0xf]
          %v271 = vld [vmem:[%s167 + $0x1c] sm:$0xf]
          %v272 = vld [vmem:[%s167 + $0x20] sm:$0xf]
          %v273 = vld [vmem:[%s167 + $0x24] sm:$0xf]
          %v274 = vld [vmem:[%s167 + $0x28] sm:$0xf]
          %v275 = vld [vmem:[%s167 + $0x2c] sm:$0xf]
          %v276 = vld [vmem:[%s167 + $0x30] sm:$0xf]
          %v277 = vld [vmem:[%s167 + $0x34] sm:$0xf]
          %v278 = vld [vmem:[%s167 + $0x38] sm:$0xf]
          %v279 = vld [vmem:[%s167 + $0x3c] sm:$0xf]
          %s280 = scalar_lea.vmem %s167, 64 [#allocation3]
          %v281 = vld [vmem:[%s280] sm:$0xf]
          %v282 = vld [vmem:[%s280 + $0x4] sm:$0xf]
          %v283 = vld [vmem:[%s280 + $0x8] sm:$0xf]
          %v284 = vld [vmem:[%s280 + $0xc] sm:$0xf]
          %v285 = vld [vmem:[%s280 + $0x10] sm:$0xf]
          %v286 = vld [vmem:[%s280 + $0x14] sm:$0xf]
          %v287 = vld [vmem:[%s280 + $0x18] sm:$0xf]
          %v288 = vld [vmem:[%s280 + $0x1c] sm:$0xf]
          %v289 = vld [vmem:[%s280 + $0x20] sm:$0xf]
          %v290 = vld [vmem:[%s280 + $0x24] sm:$0xf]
          %v291 = vld [vmem:[%s280 + $0x28] sm:$0xf]
          %v292 = vld [vmem:[%s280 + $0x2c] sm:$0xf]
          %v293 = vld [vmem:[%s280 + $0x30] sm:$0xf]
          %v294 = vld [vmem:[%s280 + $0x34] sm:$0xf]
          %v295 = vld [vmem:[%s280 + $0x38] sm:$0xf]
          %v296 = vld [vmem:[%s280 + $0x3c] sm:$0xf]
          %v313 = vunpack.c.l.b16 %v281
          %v314 = vunpack.c.l.b16 %v282
          %v315 = vunpack.c.l.b16 %v283
          %v316 = vunpack.c.l.b16 %v284
          %v317 = vunpack.c.l.b16 %v285
          %v318 = vunpack.c.l.b16 %v286
          %v319 = vunpack.c.l.b16 %v287
          %v320 = vunpack.c.l.b16 %v288
          %v321 = vunpack.c.l.b16 %v289
          %v322 = vunpack.c.l.b16 %v290
          %v323 = vunpack.c.l.b16 %v291
          %v324 = vunpack.c.l.b16 %v292
          %v325 = vunpack.c.l.b16 %v293
          %v326 = vunpack.c.l.b16 %v294
          %v327 = vunpack.c.l.b16 %v295
          %v328 = vunpack.c.l.b16 %v296
          %v329 = vpack.c.b16 %v314, %v313
          %v330 = vpack.c.b16 %v316, %v315
          %v331 = vpack.c.b16 %v318, %v317
          %v332 = vpack.c.b16 %v320, %v319
          %v333 = vpack.c.b16 %v322, %v321
          %v334 = vpack.c.b16 %v324, %v323
          %v335 = vpack.c.b16 %v326, %v325
          %v336 = vpack.c.b16 %v328, %v327
          %345 = vmatprep.subr.bf16.mxu0 0
          %346 = vmatpush1.bf16.msra.mxu0 %v329
          %347 = vmatprep.subr.bf16.mxu0 0
          %348 = vmatpush1.bf16.msra.mxu0 %v330
          %349 = vmatprep.subr.bf16.mxu0 0
          %350 = vmatpush1.bf16.msra.mxu0 %v331
          %351 = vmatprep.subr.bf16.mxu0 0
          %352 = vmatpush1.bf16.msra.mxu0 %v332
          %353 = vmatprep.subr.bf16.mxu0 0
          %354 = vmatpush1.bf16.msra.mxu0 %v333
          %355 = vmatprep.subr.bf16.mxu0 0
          %356 = vmatpush1.bf16.msra.mxu0 %v334
          %357 = vmatprep.subr.bf16.mxu0 0
          %358 = vmatpush1.bf16.msra.mxu0 %v335
          %359 = vmatprep.subr.bf16.mxu0 0
          %360 = vmatpush1.bf16.msra.mxu0 %v336
          %361 = vmatprep.subr.bf16.mxu0 0
          %362 = vmatpush1.bf16.msra.mxu0 0
          %363 = vmatprep.subr.bf16.mxu0 0
          %364 = vmatpush1.bf16.msra.mxu0 0
          %365 = vmatprep.subr.bf16.mxu0 0
          %366 = vmatpush1.bf16.msra.mxu0 0
          %367 = vmatprep.subr.bf16.mxu0 0
          %368 = vmatpush1.bf16.msra.mxu0 0
          %369 = vmatprep.subr.bf16.mxu0 0
          %370 = vmatpush1.bf16.msra.mxu0 0
          %371 = vmatprep.subr.bf16.mxu0 0
          %372 = vmatpush1.bf16.msra.mxu0 0
          %373 = vmatprep.subr.bf16.mxu0 0
          %374 = vmatpush1.bf16.msra.mxu0 0
          %375 = vmatprep.subr.bf16.mxu0 0
          %376 = vmatpush1.bf16.msra.mxu0 0
          %377 = vmatprep.mubr.bf16.mxu0 0
          %378 = vmatmul.mubr.bf16.gmra.mrb[0].mxu0 %v240
          %v379 = vpop.f32.mrb[0].mxu0
          %v380 = vadd.f32 0.0, %v379
          %v381 = vpop.f32.mrb[0].mxu0
          %v382 = vpop.f32.mrb[0].mxu0
          %v383 = vadd.f32 0.0, %v382
          %v384 = vpop.f32.mrb[0].mxu0
          %385 = vmatprep.mubr.bf16.mxu0 0
          %386 = vmatmul.mubr.bf16.gmra.mrb[0].mxu0 %v241
          %v387 = vpop.f32.mrb[0].mxu0
          %v388 = vadd.f32 0.0, %v387
          %v389 = vpop.f32.mrb[0].mxu0
          %v390 = vpop.f32.mrb[0].mxu0
          %v391 = vadd.f32 0.0, %v390
          %v392 = vpop.f32.mrb[0].mxu0
          %393 = vdwg.mxu0
          %s394 = scalar_lea.vmem %s167, 128 [#allocation3]
          %v395 = vld [vmem:[%s394] sm:$0xf]
          %v396 = vld [vmem:[%s394 + $0x4] sm:$0xf]
          %v397 = vld [vmem:[%s394 + $0x8] sm:$0xf]
          %v398 = vld [vmem:[%s394 + $0xc] sm:$0xf]
          %v399 = vld [vmem:[%s394 + $0x10] sm:$0xf]
          %v400 = vld [vmem:[%s394 + $0x14] sm:$0xf]
          %v401 = vld [vmem:[%s394 + $0x18] sm:$0xf]
          %v402 = vld [vmem:[%s394 + $0x1c] sm:$0xf]
          %v403 = vld [vmem:[%s394 + $0x20] sm:$0xf]
          %v404 = vld [vmem:[%s394 + $0x24] sm:$0xf]
          %v405 = vld [vmem:[%s394 + $0x28] sm:$0xf]
          %v406 = vld [vmem:[%s394 + $0x2c] sm:$0xf]
          %v407 = vld [vmem:[%s394 + $0x30] sm:$0xf]
          %v408 = vld [vmem:[%s394 + $0x34] sm:$0xf]
          %v409 = vld [vmem:[%s394 + $0x38] sm:$0xf]
          %v410 = vld [vmem:[%s394 + $0x3c] sm:$0xf]
          %v427 = vunpack.c.l.b16 %v395
          %v428 = vunpack.c.l.b16 %v396
          %v429 = vunpack.c.l.b16 %v397
          %v430 = vunpack.c.l.b16 %v398
          %v431 = vunpack.c.l.b16 %v399
          %v432 = vunpack.c.l.b16 %v400
          %v433 = vunpack.c.l.b16 %v401
          %v434 = vunpack.c.l.b16 %v402
          %v435 = vunpack.c.l.b16 %v403
          %v436 = vunpack.c.l.b16 %v404
          %v437 = vunpack.c.l.b16 %v405
          %v438 = vunpack.c.l.b16 %v406
          %v439 = vunpack.c.l.b16 %v407
          %v440 = vunpack.c.l.b16 %v408
          %v441 = vunpack.c.l.b16 %v409
          %v442 = vunpack.c.l.b16 %v410
          %v443 = vpack.c.b16 %v428, %v427
          %v444 = vpack.c.b16 %v430, %v429
          %v445 = vpack.c.b16 %v432, %v431
          %v446 = vpack.c.b16 %v434, %v433
          %v447 = vpack.c.b16 %v436, %v435
          %v448 = vpack.c.b16 %v438, %v437
          %v449 = vpack.c.b16 %v440, %v439
          %v450 = vpack.c.b16 %v442, %v441
          %459 = vmatprep.subr.bf16.mxu0 0
          %460 = vmatpush1.bf16.msra.mxu0 %v443
          %461 = vmatprep.subr.bf16.mxu0 0
          %462 = vmatpush1.bf16.msra.mxu0 %v444
          %463 = vmatprep.subr.bf16.mxu0 0
          %464 = vmatpush1.bf16.msra.mxu0 %v445
          %465 = vmatprep.subr.bf16.mxu0 0
          %466 = vmatpush1.bf16.msra.mxu0 %v446
          %467 = vmatprep.subr.bf16.mxu0 0
          %468 = vmatpush1.bf16.msra.mxu0 %v447
          %469 = vmatprep.subr.bf16.mxu0 0
          %470 = vmatpush1.bf16.msra.mxu0 %v448
          %471 = vmatprep.subr.bf16.mxu0 0
          %472 = vmatpush1.bf16.msra.mxu0 %v449
          %473 = vmatprep.subr.bf16.mxu0 0
          %474 = vmatpush1.bf16.msra.mxu0 %v450
          %475 = vmatprep.subr.bf16.mxu0 0
          %476 = vmatpush1.bf16.msra.mxu0 0
          %477 = vmatprep.subr.bf16.mxu0 0
          %478 = vmatpush1.bf16.msra.mxu0 0
          %479 = vmatprep.subr.bf16.mxu0 0
          %480 = vmatpush1.bf16.msra.mxu0 0
          %481 = vmatprep.subr.bf16.mxu0 0
          %482 = vmatpush1.bf16.msra.mxu0 0
          %483 = vmatprep.subr.bf16.mxu0 0
          %484 = vmatpush1.bf16.msra.mxu0 0
          %485 = vmatprep.subr.bf16.mxu0 0
          %486 = vmatpush1.bf16.msra.mxu0 0
          %487 = vmatprep.subr.bf16.mxu0 0
          %488 = vmatpush1.bf16.msra.mxu0 0
          %489 = vmatprep.subr.bf16.mxu0 0
          %490 = vmatpush1.bf16.msra.mxu0 0
          %491 = vmatprep.mubr.bf16.mxu0 0
          %492 = vmatmul.mubr.bf16.gmra.mrb[0].mxu0 %v262
          %v493 = vpop.f32.mrb[0].mxu0
          %v494 = vadd.f32 0.0, %v493
          %v495 = vpop.f32.mrb[0].mxu0
          %v496 = vpop.f32.mrb[0].mxu0
          %v497 = vadd.f32 0.0, %v496
          %v498 = vpop.f32.mrb[0].mxu0
          %499 = vmatprep.mubr.bf16.mxu0 0
          %500 = vmatmul.mubr.bf16.gmra.mrb[0].mxu0 %v263
          %v501 = vpop.f32.mrb[0].mxu0
          %v502 = vadd.f32 0.0, %v501
          %v503 = vpop.f32.mrb[0].mxu0
          %v504 = vpop.f32.mrb[0].mxu0
          %v505 = vadd.f32 0.0, %v504
          %v506 = vpop.f32.mrb[0].mxu0
          %507 = vdwg.mxu0
          %v524 = vunpack.c.l.b16 %v264
          %v525 = vunpack.c.l.b16 %v265
          %v526 = vunpack.c.l.b16 %v266
          %v527 = vunpack.c.l.b16 %v267
          %v528 = vunpack.c.l.b16 %v268
          %v529 = vunpack.c.l.b16 %v269
          %v530 = vunpack.c.l.b16 %v270
          %v531 = vunpack.c.l.b16 %v271
          %v532 = vunpack.c.l.b16 %v272
          %v533 = vunpack.c.l.b16 %v273
          %v534 = vunpack.c.l.b16 %v274
          %v535 = vunpack.c.l.b16 %v275
          %v536 = vunpack.c.l.b16 %v276
          %v537 = vunpack.c.l.b16 %v277
          %v538 = vunpack.c.l.b16 %v278
          %v539 = vunpack.c.l.b16 %v279
          %v540 = vpack.c.b16 %v525, %v524
          %v541 = vpack.c.b16 %v527, %v526
          %v542 = vpack.c.b16 %v529, %v528
          %v543 = vpack.c.b16 %v531, %v530
          %v544 = vpack.c.b16 %v533, %v532
          %v545 = vpack.c.b16 %v535, %v534
          %v546 = vpack.c.b16 %v537, %v536
          %v547 = vpack.c.b16 %v539, %v538
          %556 = vmatprep.subr.bf16.mxu0 0
          %557 = vmatpush1.bf16.msra.mxu0 %v540
          %558 = vmatprep.subr.bf16.mxu0 0
          %559 = vmatpush1.bf16.msra.mxu0 %v541
          %560 = vmatprep.subr.bf16.mxu0 0
          %561 = vmatpush1.bf16.msra.mxu0 %v542
          %562 = vmatprep.subr.bf16.mxu0 0
          %563 = vmatpush1.bf16.msra.mxu0 %v543
          %564 = vmatprep.subr.bf16.mxu0 0
          %565 = vmatpush1.bf16.msra.mxu0 %v544
          %566 = vmatprep.subr.bf16.mxu0 0
          %567 = vmatpush1.bf16.msra.mxu0 %v545
          %568 = vmatprep.subr.bf16.mxu0 0
          %569 = vmatpush1.bf16.msra.mxu0 %v546
          %570 = vmatprep.subr.bf16.mxu0 0
          %571 = vmatpush1.bf16.msra.mxu0 %v547
          %572 = vmatprep.subr.bf16.mxu0 0
          %573 = vmatpush1.bf16.msra.mxu0 0
          %574 = vmatprep.subr.bf16.mxu0 0
          %575 = vmatpush1.bf16.msra.mxu0 0
          %576 = vmatprep.subr.bf16.mxu0 0
          %577 = vmatpush1.bf16.msra.mxu0 0
          %578 = vmatprep.subr.bf16.mxu0 0
          %579 = vmatpush1.bf16.msra.mxu0 0
          %580 = vmatprep.subr.bf16.mxu0 0
          %581 = vmatpush1.bf16.msra.mxu0 0
          %582 = vmatprep.subr.bf16.mxu0 0
          %583 = vmatpush1.bf16.msra.mxu0 0
          %584 = vmatprep.subr.bf16.mxu0 0
          %585 = vmatpush1.bf16.msra.mxu0 0
          %586 = vmatprep.subr.bf16.mxu0 0
          %587 = vmatpush1.bf16.msra.mxu0 0
          %588 = vmatprep.mubr.bf16.mxu0 0
          %589 = vmatmul.mubr.bf16.gmra.mrb[0].mxu0 %v234
          %v590 = vpop.f32.mrb[0].mxu0
          %v591 = vadd.f32 %v380, %v590
          %v592 = vpop.f32.mrb[0].mxu0
          %v593 = vpop.f32.mrb[0].mxu0
          %v594 = vadd.f32 %v383, %v593
          %v595 = vpop.f32.mrb[0].mxu0
          %596 = vmatprep.mubr.bf16.mxu0 0
          %597 = vmatmul.mubr.bf16.gmra.mrb[0].mxu0 %v235
          %v598 = vpop.f32.mrb[0].mxu0
          %v599 = vadd.f32 %v388, %v598
          %v600 = vpop.f32.mrb[0].mxu0
          %v601 = vpop.f32.mrb[0].mxu0
          %v602 = vadd.f32 %v391, %v601
          %v603 = vpop.f32.mrb[0].mxu0
          %604 = vdwg.mxu0
          %v605 = vadd.f32 %v591, %v494
          %v606 = vadd.f32 %v594, %v497
          %v607 = vadd.f32 %v599, %v502
          %v608 = vadd.f32 %v602, %v505
          %v609 = vld [vmem:[%s191] sm:$0x1]
          %v611 = vlaneseq
          %v612 = vshrl.u32 %v611, 7
          %v613 = vsub.s32 0, %v612
          %v614 = vrot.slane %v609, %v613
          %v616 = vadd.f32 %v605, %v614
          %v617 = vadd.f32 %v606, %v614
          %v618 = vadd.f32 %v607, %v614
          %v619 = vadd.f32 %v608, %v614
          %v620 = vsub.f32 0.0, %v616
          %v621 = vsub.f32 0.0, %v617
          %v622 = vsub.f32 0.0, %v618
          %v623 = vsub.f32 0.0, %v619
          %v624 = vmul.f32 %v620, 1.442695
          %v625 = vpow.pop %v624
          %v626 = vmul.f32 %v621, 1.442695
          %v627 = vpow.pop %v626
          %v628 = vmul.f32 %v622, 1.442695
          %v629 = vpow.pop %v628
          %v630 = vmul.f32 %v623, 1.442695
          %v631 = vpow.pop %v630
          %v632 = vadd.f32 %v625, 1.0
          %v633 = vadd.f32 %v627, 1.0
          %v634 = vadd.f32 %v629, 1.0
          %v635 = vadd.f32 %v631, 1.0
          %v636 = vrcp.pop %v632
          %v637 = vrcp.pop %v633
          %v638 = vrcp.pop %v634
          %v639 = vrcp.pop %v635
          %v640 = vmul.f32 %v616, %v636
          %v641 = vmul.f32 %v617, %v637
          %v642 = vmul.f32 %v618, %v638
          %v643 = vmul.f32 %v619, %v639
          %644 = vst [vmem:[#allocation2 + $0x8] sm:$0xff] %v640
          %645 = vst [vmem:[#allocation2 + $0x10] sm:$0xff] %v641
          %646 = vst [vmem:[#allocation2 + $0x18] sm:$0xff] %v642
          %647 = vst [vmem:[#allocation2 + $0x20] sm:$0xff] %v643
        $region40: #{forward.1} parent=31 // pred_fallthru
          _
        %p648 = scmp.eq.s32.totalorder %s17, 1
        // Predicated region
        $region41: #{forward.1} parent=31 // pred_check
          %p649 = pneg %p648
        $region42: #{forward.1} parent=31 // pred_check_branch
          %651 = sbr.rel (%p649) target = $region44
        $region43: #{forward.1} parent=31 // pred_region
          %v652 = vlaneseq
          %v653 = vshrl.u32 %v652, 7
          %v654 = vadd.s32 %v653, 8
          %s655 = scalar_lea.vmem [#allocation2], 7
          %v656 = vld [vmem:[%s655] ss:$2 sm:$0xff]
          %s657 = scalar_lea.vmem [#allocation2], 23
          %v658 = vld [vmem:[%s657] ss:$2 sm:$0xff]
          %vm659 = vcmp.eq.s32.totalorder %v653, 0
          %vm660 = vcmp.eq.s32.totalorder %v654, 0
          %vm661 = vcmp.eq.s32.totalorder %v653, 8
          %vm662 = vcmp.eq.s32.totalorder %v654, 8
          %vm663 = vmor %vm659, %vm661
          %vm664 = vmor %vm660, %vm662
          %v665 = vsel %vm663, 0.0, %v656
          %v666 = vsel %vm664, 0.0, %v658
          %v667 = vpack.c.bf16 %v666, %v665
          %s668 = scalar_lea.vmem [#allocation2], 8
          %v669 = vld [vmem:[%s668] ss:$2 sm:$0xff]
          %s670 = scalar_lea.vmem [#allocation2], 24
          %v671 = vld [vmem:[%s670] ss:$2 sm:$0xff]
          %v672 = vpack.c.bf16 %v671, %v669
          %s673 = scalar_lea.vmem [#allocation2], 9
          %v674 = vld [vmem:[%s673] ss:$2 sm:$0xff]
          %s675 = scalar_lea.vmem [#allocation2], 25
          %v676 = vld [vmem:[%s675] ss:$2 sm:$0xff]
          %v677 = vpack.c.bf16 %v676, %v674
          %v678 = vld [vmem:[%s167] sm:$0xf]
          %v679 = vld [vmem:[%s167 + $0x4] sm:$0xf]
          %v680 = vld [vmem:[%s167 + $0x8] sm:$0xf]
          %v681 = vld [vmem:[%s167 + $0xc] sm:$0xf]
          %v682 = vld [vmem:[%s167 + $0x10] sm:$0xf]
          %v683 = vld [vmem:[%s167 + $0x14] sm:$0xf]
          %v684 = vld [vmem:[%s167 + $0x18] sm:$0xf]
          %v685 = vld [vmem:[%s167 + $0x1c] sm:$0xf]
          %v686 = vld [vmem:[%s167 + $0x20] sm:$0xf]
          %v687 = vld [vmem:[%s167 + $0x24] sm:$0xf]
          %v688 = vld [vmem:[%s167 + $0x28] sm:$0xf]
          %v689 = vld [vmem:[%s167 + $0x2c] sm:$0xf]
          %v690 = vld [vmem:[%s167 + $0x30] sm:$0xf]
          %v691 = vld [vmem:[%s167 + $0x34] sm:$0xf]
          %v692 = vld [vmem:[%s167 + $0x38] sm:$0xf]
          %v693 = vld [vmem:[%s167 + $0x3c] sm:$0xf]
          %s694 = scalar_lea.vmem %s167, 64 [#allocation3]
          %v695 = vld [vmem:[%s694] sm:$0xf]
          %v696 = vld [vmem:[%s694 + $0x4] sm:$0xf]
          %v697 = vld [vmem:[%s694 + $0x8] sm:$0xf]
          %v698 = vld [vmem:[%s694 + $0xc] sm:$0xf]
          %v699 = vld [vmem:[%s694 + $0x10] sm:$0xf]
          %v700 = vld [vmem:[%s694 + $0x14] sm:$0xf]
          %v701 = vld [vmem:[%s694 + $0x18] sm:$0xf]
          %v702 = vld [vmem:[%s694 + $0x1c] sm:$0xf]
          %v703 = vld [vmem:[%s694 + $0x20] sm:$0xf]
          %v704 = vld [vmem:[%s694 + $0x24] sm:$0xf]
          %v705 = vld [vmem:[%s694 + $0x28] sm:$0xf]
          %v706 = vld [vmem:[%s694 + $0x2c] sm:$0xf]
          %v707 = vld [vmem:[%s694 + $0x30] sm:$0xf]
          %v708 = vld [vmem:[%s694 + $0x34] sm:$0xf]
          %v709 = vld [vmem:[%s694 + $0x38] sm:$0xf]
          %v710 = vld [vmem:[%s694 + $0x3c] sm:$0xf]
          %v727 = vunpack.c.l.b16 %v695
          %v728 = vunpack.c.l.b16 %v696
          %v729 = vunpack.c.l.b16 %v697
          %v730 = vunpack.c.l.b16 %v698
          %v731 = vunpack.c.l.b16 %v699
          %v732 = vunpack.c.l.b16 %v700
          %v733 = vunpack.c.l.b16 %v701
          %v734 = vunpack.c.l.b16 %v702
          %v735 = vunpack.c.l.b16 %v703
          %v736 = vunpack.c.l.b16 %v704
          %v737 = vunpack.c.l.b16 %v705
          %v738 = vunpack.c.l.b16 %v706
          %v739 = vunpack.c.l.b16 %v707
          %v740 = vunpack.c.l.b16 %v708
          %v741 = vunpack.c.l.b16 %v709
          %v742 = vunpack.c.l.b16 %v710
          %v743 = vpack.c.b16 %v728, %v727
          %v744 = vpack.c.b16 %v730, %v729
          %v745 = vpack.c.b16 %v732, %v731
          %v746 = vpack.c.b16 %v734, %v733
          %v747 = vpack.c.b16 %v736, %v735
          %v748 = vpack.c.b16 %v738, %v737
          %v749 = vpack.c.b16 %v740, %v739
          %v750 = vpack.c.b16 %v742, %v741
          %759 = vmatprep.subr.bf16.mxu0 0
          %760 = vmatpush1.bf16.msra.mxu0 %v743
          %761 = vmatprep.subr.bf16.mxu0 0
          %762 = vmatpush1.bf16.msra.mxu0 %v744
          %763 = vmatprep.subr.bf16.mxu0 0
          %764 = vmatpush1.bf16.msra.mxu0 %v745
          %765 = vmatprep.subr.bf16.mxu0 0
          %766 = vmatpush1.bf16.msra.mxu0 %v746
          %767 = vmatprep.subr.bf16.mxu0 0
          %768 = vmatpush1.bf16.msra.mxu0 %v747
          %769 = vmatprep.subr.bf16.mxu0 0
          %770 = vmatpush1.bf16.msra.mxu0 %v748
          %771 = vmatprep.subr.bf16.mxu0 0
          %772 = vmatpush1.bf16.msra.mxu0 %v749
          %773 = vmatprep.subr.bf16.mxu0 0
          %774 = vmatpush1.bf16.msra.mxu0 %v750
          %775 = vmatprep.subr.bf16.mxu0 0
          %776 = vmatpush1.bf16.msra.mxu0 0
          %777 = vmatprep.subr.bf16.mxu0 0
          %778 = vmatpush1.bf16.msra.mxu0 0
          %779 = vmatprep.subr.bf16.mxu0 0
          %780 = vmatpush1.bf16.msra.mxu0 0
          %781 = vmatprep.subr.bf16.mxu0 0
          %782 = vmatpush1.bf16.msra.mxu0 0
          %783 = vmatprep.subr.bf16.mxu0 0
          %784 = vmatpush1.bf16.msra.mxu0 0
          %785 = vmatprep.subr.bf16.mxu0 0
          %786 = vmatpush1.bf16.msra.mxu0 0
          %787 = vmatprep.subr.bf16.mxu0 0
          %788 = vmatpush1.bf16.msra.mxu0 0
          %789 = vmatprep.subr.bf16.mxu0 0
          %790 = vmatpush1.bf16.msra.mxu0 0
          %791 = vmatprep.mubr.bf16.mxu0 0
          %792 = vmatmul.mubr.bf16.gmra.mrb[0].mxu0 %v672
          %v793 = vpop.f32.mrb[0].mxu0
          %v794 = vadd.f32 0.0, %v793
          %v795 = vpop.f32.mrb[0].mxu0
          %v796 = vpop.f32.mrb[0].mxu0
          %v797 = vadd.f32 0.0, %v796
          %v798 = vpop.f32.mrb[0].mxu0
          %799 = vdwg.mxu0
          %s800 = scalar_lea.vmem %s167, 128 [#allocation3]
          %v801 = vld [vmem:[%s800] sm:$0xf]
          %v802 = vld [vmem:[%s800 + $0x4] sm:$0xf]
          %v803 = vld [vmem:[%s800 + $0x8] sm:$0xf]
          %v804 = vld [vmem:[%s800 + $0xc] sm:$0xf]
          %v805 = vld [vmem:[%s800 + $0x10] sm:$0xf]
          %v806 = vld [vmem:[%s800 + $0x14] sm:$0xf]
          %v807 = vld [vmem:[%s800 + $0x18] sm:$0xf]
          %v808 = vld [vmem:[%s800 + $0x1c] sm:$0xf]
          %v809 = vld [vmem:[%s800 + $0x20] sm:$0xf]
          %v810 = vld [vmem:[%s800 + $0x24] sm:$0xf]
          %v811 = vld [vmem:[%s800 + $0x28] sm:$0xf]
          %v812 = vld [vmem:[%s800 + $0x2c] sm:$0xf]
          %v813 = vld [vmem:[%s800 + $0x30] sm:$0xf]
          %v814 = vld [vmem:[%s800 + $0x34] sm:$0xf]
          %v815 = vld [vmem:[%s800 + $0x38] sm:$0xf]
          %v816 = vld [vmem:[%s800 + $0x3c] sm:$0xf]
          %v833 = vunpack.c.l.b16 %v801
          %v834 = vunpack.c.l.b16 %v802
          %v835 = vunpack.c.l.b16 %v803
          %v836 = vunpack.c.l.b16 %v804
          %v837 = vunpack.c.l.b16 %v805
          %v838 = vunpack.c.l.b16 %v806
          %v839 = vunpack.c.l.b16 %v807
          %v840 = vunpack.c.l.b16 %v808
          %v841 = vunpack.c.l.b16 %v809
          %v842 = vunpack.c.l.b16 %v810
          %v843 = vunpack.c.l.b16 %v811
          %v844 = vunpack.c.l.b16 %v812
          %v845 = vunpack.c.l.b16 %v813
          %v846 = vunpack.c.l.b16 %v814
          %v847 = vunpack.c.l.b16 %v815
          %v848 = vunpack.c.l.b16 %v816
          %v849 = vpack.c.b16 %v834, %v833
          %v850 = vpack.c.b16 %v836, %v835
          %v851 = vpack.c.b16 %v838, %v837
          %v852 = vpack.c.b16 %v840, %v839
          %v853 = vpack.c.b16 %v842, %v841
          %v854 = vpack.c.b16 %v844, %v843
          %v855 = vpack.c.b16 %v846, %v845
          %v856 = vpack.c.b16 %v848, %v847
          %865 = vmatprep.subr.bf16.mxu0 0
          %866 = vmatpush1.bf16.msra.mxu0 %v849
          %867 = vmatprep.subr.bf16.mxu0 0
          %868 = vmatpush1.bf16.msra.mxu0 %v850
          %869 = vmatprep.subr.bf16.mxu0 0
          %870 = vmatpush1.bf16.msra.mxu0 %v851
          %871 = vmatprep.subr.bf16.mxu0 0
          %872 = vmatpush1.bf16.msra.mxu0 %v852
          %873 = vmatprep.subr.bf16.mxu0 0
          %874 = vmatpush1.bf16.msra.mxu0 %v853
          %875 = vmatprep.subr.bf16.mxu0 0
          %876 = vmatpush1.bf16.msra.mxu0 %v854
          %877 = vmatprep.subr.bf16.mxu0 0
          %878 = vmatpush1.bf16.msra.mxu0 %v855
          %879 = vmatprep.subr.bf16.mxu0 0
          %880 = vmatpush1.bf16.msra.mxu0 %v856
          %881 = vmatprep.subr.bf16.mxu0 0
          %882 = vmatpush1.bf16.msra.mxu0 0
          %883 = vmatprep.subr.bf16.mxu0 0
          %884 = vmatpush1.bf16.msra.mxu0 0
          %885 = vmatprep.subr.bf16.mxu0 0
          %886 = vmatpush1.bf16.msra.mxu0 0
          %887 = vmatprep.subr.bf16.mxu0 0
          %888 = vmatpush1.bf16.msra.mxu0 0
          %889 = vmatprep.subr.bf16.mxu0 0
          %890 = vmatpush1.bf16.msra.mxu0 0
          %891 = vmatprep.subr.bf16.mxu0 0
          %892 = vmatpush1.bf16.msra.mxu0 0
          %893 = vmatprep.subr.bf16.mxu0 0
          %894 = vmatpush1.bf16.msra.mxu0 0
          %895 = vmatprep.subr.bf16.mxu0 0
          %896 = vmatpush1.bf16.msra.mxu0 0
          %897 = vmatprep.mubr.bf16.mxu0 0
          %898 = vmatmul.mubr.bf16.gmra.mrb[0].mxu0 %v677
          %v899 = vpop.f32.mrb[0].mxu0
          %v900 = vadd.f32 0.0, %v899
          %v901 = vpop.f32.mrb[0].mxu0
          %v902 = vpop.f32.mrb[0].mxu0
          %v903 = vadd.f32 0.0, %v902
          %v904 = vpop.f32.mrb[0].mxu0
          %905 = vdwg.mxu0
          %v922 = vunpack.c.l.b16 %v678
          %v923 = vunpack.c.l.b16 %v679
          %v924 = vunpack.c.l.b16 %v680
          %v925 = vunpack.c.l.b16 %v681
          %v926 = vunpack.c.l.b16 %v682
          %v927 = vunpack.c.l.b16 %v683
          %v928 = vunpack.c.l.b16 %v684
          %v929 = vunpack.c.l.b16 %v685
          %v930 = vunpack.c.l.b16 %v686
          %v931 = vunpack.c.l.b16 %v687
          %v932 = vunpack.c.l.b16 %v688
          %v933 = vunpack.c.l.b16 %v689
          %v934 = vunpack.c.l.b16 %v690
          %v935 = vunpack.c.l.b16 %v691
          %v936 = vunpack.c.l.b16 %v692
          %v937 = vunpack.c.l.b16 %v693
          %v938 = vpack.c.b16 %v923, %v922
          %v939 = vpack.c.b16 %v925, %v924
          %v940 = vpack.c.b16 %v927, %v926
          %v941 = vpack.c.b16 %v929, %v928
          %v942 = vpack.c.b16 %v931, %v930
          %v943 = vpack.c.b16 %v933, %v932
          %v944 = vpack.c.b16 %v935, %v934
          %v945 = vpack.c.b16 %v937, %v936
          %954 = vmatprep.subr.bf16.mxu0 0
          %955 = vmatpush1.bf16.msra.mxu0 %v938
          %956 = vmatprep.subr.bf16.mxu0 0
          %957 = vmatpush1.bf16.msra.mxu0 %v939
          %958 = vmatprep.subr.bf16.mxu0 0
          %959 = vmatpush1.bf16.msra.mxu0 %v940
          %960 = vmatprep.subr.bf16.mxu0 0
          %961 = vmatpush1.bf16.msra.mxu0 %v941
          %962 = vmatprep.subr.bf16.mxu0 0
          %963 = vmatpush1.bf16.msra.mxu0 %v942
          %964 = vmatprep.subr.bf16.mxu0 0
          %965 = vmatpush1.bf16.msra.mxu0 %v943
          %966 = vmatprep.subr.bf16.mxu0 0
          %967 = vmatpush1.bf16.msra.mxu0 %v944
          %968 = vmatprep.subr.bf16.mxu0 0
          %969 = vmatpush1.bf16.msra.mxu0 %v945
          %970 = vmatprep.subr.bf16.mxu0 0
          %971 = vmatpush1.bf16.msra.mxu0 0
          %972 = vmatprep.subr.bf16.mxu0 0
          %973 = vmatpush1.bf16.msra.mxu0 0
          %974 = vmatprep.subr.bf16.mxu0 0
          %975 = vmatpush1.bf16.msra.mxu0 0
          %976 = vmatprep.subr.bf16.mxu0 0
          %977 = vmatpush1.bf16.msra.mxu0 0
          %978 = vmatprep.subr.bf16.mxu0 0
          %979 = vmatpush1.bf16.msra.mxu0 0
          %980 = vmatprep.subr.bf16.mxu0 0
          %981 = vmatpush1.bf16.msra.mxu0 0
          %982 = vmatprep.subr.bf16.mxu0 0
          %983 = vmatpush1.bf16.msra.mxu0 0
          %984 = vmatprep.subr.bf16.mxu0 0
          %985 = vmatpush1.bf16.msra.mxu0 0
          %986 = vmatprep.mubr.bf16.mxu0 0
          %987 = vmatmul.mubr.bf16.gmra.mrb[0].mxu0 %v667
          %v988 = vpop.f32.mrb[0].mxu0
          %v989 = vadd.f32 %v794, %v988
          %v990 = vpop.f32.mrb[0].mxu0
          %v991 = vpop.f32.mrb[0].mxu0
          %v992 = vadd.f32 %v797, %v991
          %v993 = vpop.f32.mrb[0].mxu0
          %994 = vdwg.mxu0
          %v995 = vadd.f32 %v989, %v900
          %v996 = vadd.f32 %v992, %v903
          %v997 = vld [vmem:[%s191] sm:$0x1]
          %v999 = vlaneseq
          %v1000 = vshrl.u32 %v999, 7
          %v1001 = vsub.s32 0, %v1000
          %v1002 = vrot.slane %v997, %v1001
          %v1004 = vadd.f32 %v995, %v1002
          %v1005 = vadd.f32 %v996, %v1002
          %v1006 = vsub.f32 0.0, %v1004
          %v1007 = vsub.f32 0.0, %v1005
          %v1008 = vmul.f32 %v1006, 1.442695
          %v1009 = vpow.pop %v1008
          %v1010 = vmul.f32 %v1007, 1.442695
          %v1011 = vpow.pop %v1010
          %v1012 = vadd.f32 %v1009, 1.0
          %v1013 = vadd.f32 %v1011, 1.0
          %v1014 = vrcp.pop %v1012
          %v1015 = vrcp.pop %v1013
          %v1016 = vmul.f32 %v1004, %v1014
          %v1017 = vmul.f32 %v1005, %v1015
          %1018 = vst [vmem:[#allocation2 + $0x8] sm:$0xff] %v1016
          %1019 = vst [vmem:[#allocation2 + $0x10] sm:$0xff] %v1017
        $region44: #{forward.1} parent=31 // pred_fallthru
          _
        %p1020 = scmp.eq.s32.totalorder %s17, 2
        // Predicated region
        $region45: #{forward.1} parent=31 // pred_check
          %p1021 = pneg %p1020
        $region46: #{forward.1} parent=31 // pred_check_branch
          %1023 = sbr.rel (%p1021) target = $region48
        $region47: #{forward.1} parent=31 // pred_region
          %v1024 = vlaneseq
          %v1025 = vshrl.u32 %v1024, 7
          %v1026 = vadd.s32 %v1025, 8
          %v1027 = vld [vmem:[#allocation2 + $0x7] sm:$0xff]
          %v1028 = vld [vmem:[#allocation2 + $0xf] sm:$0xff]
          %vm1029 = vcmp.eq.s32.totalorder %v1025, 0
          %vm1030 = vcmp.eq.s32.totalorder %v1026, 0
          %vm1031 = vcmp.eq.s32.totalorder %v1025, 8
          %vm1032 = vcmp.eq.s32.totalorder %v1026, 8
          %vm1033 = vmor %vm1029, %vm1031
          %vm1034 = vmor %vm1030, %vm1032
          %v1035 = vsel %vm1033, 0.0, %v1027
          %v1036 = vsel %vm1034, 0.0, %v1028
          %v1037 = vpack.c.bf16 %v1036, %v1035
          %v1038 = vld [vmem:[#allocation2 + $0x8] sm:$0xff]
          %v1039 = vld [vmem:[#allocation2 + $0x10] sm:$0xff]
          %v1040 = vpack.c.bf16 %v1039, %v1038
          %v1041 = vld [vmem:[#allocation2 + $0x9] sm:$0xff]
          %v1042 = vld [vmem:[#allocation2 + $0x11] sm:$0xff]
          %vm1043 = vcmp.eq.s32.totalorder %v1025, 7
          %vm1044 = vcmp.eq.s32.totalorder %v1026, 7
          %vm1045 = vcmp.eq.s32.totalorder %v1025, 15
          %vm1046 = vcmp.eq.s32.totalorder %v1026, 15
          %vm1047 = vmor %vm1043, %vm1045
          %vm1048 = vmor %vm1044, %vm1046
          %v1049 = vsel %vm1047, 0.0, %v1041
          %v1050 = vsel %vm1048, 0.0, %v1042
          %v1051 = vpack.c.bf16 %v1050, %v1049
          %v1052 = vld [vmem:[%s167] sm:$0xf]
          %v1053 = vld [vmem:[%s167 + $0x4] sm:$0xf]
          %v1054 = vld [vmem:[%s167 + $0x8] sm:$0xf]
          %v1055 = vld [vmem:[%s167 + $0xc] sm:$0xf]
          %v1056 = vld [vmem:[%s167 + $0x10] sm:$0xf]
          %v1057 = vld [vmem:[%s167 + $0x14] sm:$0xf]
          %v1058 = vld [vmem:[%s167 + $0x18] sm:$0xf]
          %v1059 = vld [vmem:[%s167 + $0x1c] sm:$0xf]
          %v1060 = vld [vmem:[%s167 + $0x20] sm:$0xf]
          %v1061 = vld [vmem:[%s167 + $0x24] sm:$0xf]
          %v1062 = vld [vmem:[%s167 + $0x28] sm:$0xf]
          %v1063 = vld [vmem:[%s167 + $0x2c] sm:$0xf]
          %v1064 = vld [vmem:[%s167 + $0x30] sm:$0xf]
          %v1065 = vld [vmem:[%s167 + $0x34] sm:$0xf]
          %v1066 = vld [vmem:[%s167 + $0x38] sm:$0xf]
          %v1067 = vld [vmem:[%s167 + $0x3c] sm:$0xf]
          %s1068 = scalar_lea.vmem %s167, 64 [#allocation3]
          %v1069 = vld [vmem:[%s1068] sm:$0xf]
          %v1070 = vld [vmem:[%s1068 + $0x4] sm:$0xf]
          %v1071 = vld [vmem:[%s1068 + $0x8] sm:$0xf]
          %v1072 = vld [vmem:[%s1068 + $0xc] sm:$0xf]
          %v1073 = vld [vmem:[%s1068 + $0x10] sm:$0xf]
          %v1074 = vld [vmem:[%s1068 + $0x14] sm:$0xf]
          %v1075 = vld [vmem:[%s1068 + $0x18] sm:$0xf]
          %v1076 = vld [vmem:[%s1068 + $0x1c] sm:$0xf]
          %v1077 = vld [vmem:[%s1068 + $0x20] sm:$0xf]
          %v1078 = vld [vmem:[%s1068 + $0x24] sm:$0xf]
          %v1079 = vld [vmem:[%s1068 + $0x28] sm:$0xf]
          %v1080 = vld [vmem:[%s1068 + $0x2c] sm:$0xf]
          %v1081 = vld [vmem:[%s1068 + $0x30] sm:$0xf]
          %v1082 = vld [vmem:[%s1068 + $0x34] sm:$0xf]
          %v1083 = vld [vmem:[%s1068 + $0x38] sm:$0xf]
          %v1084 = vld [vmem:[%s1068 + $0x3c] sm:$0xf]
          %v1101 = vunpack.c.l.b16 %v1069
          %v1102 = vunpack.c.l.b16 %v1070
          %v1103 = vunpack.c.l.b16 %v1071
          %v1104 = vunpack.c.l.b16 %v1072
          %v1105 = vunpack.c.l.b16 %v1073
          %v1106 = vunpack.c.l.b16 %v1074
          %v1107 = vunpack.c.l.b16 %v1075
          %v1108 = vunpack.c.l.b16 %v1076
          %v1109 = vunpack.c.l.b16 %v1077
          %v1110 = vunpack.c.l.b16 %v1078
          %v1111 = vunpack.c.l.b16 %v1079
          %v1112 = vunpack.c.l.b16 %v1080
          %v1113 = vunpack.c.l.b16 %v1081
          %v1114 = vunpack.c.l.b16 %v1082
          %v1115 = vunpack.c.l.b16 %v1083
          %v1116 = vunpack.c.l.b16 %v1084
          %v1117 = vpack.c.b16 %v1102, %v1101
          %v1118 = vpack.c.b16 %v1104, %v1103
          %v1119 = vpack.c.b16 %v1106, %v1105
          %v1120 = vpack.c.b16 %v1108, %v1107
          %v1121 = vpack.c.b16 %v1110, %v1109
          %v1122 = vpack.c.b16 %v1112, %v1111
          %v1123 = vpack.c.b16 %v1114, %v1113
          %v1124 = vpack.c.b16 %v1116, %v1115
          %1133 = vmatprep.subr.bf16.mxu0 0
          %1134 = vmatpush1.bf16.msra.mxu0 %v1117
          %1135 = vmatprep.subr.bf16.mxu0 0
          %1136 = vmatpush1.bf16.msra.mxu0 %v1118
          %1137 = vmatprep.subr.bf16.mxu0 0
          %1138 = vmatpush1.bf16.msra.mxu0 %v1119
          %1139 = vmatprep.subr.bf16.mxu0 0
          %1140 = vmatpush1.bf16.msra.mxu0 %v1120
          %1141 = vmatprep.subr.bf16.mxu0 0
          %1142 = vmatpush1.bf16.msra.mxu0 %v1121
          %1143 = vmatprep.subr.bf16.mxu0 0
          %1144 = vmatpush1.bf16.msra.mxu0 %v1122
          %1145 = vmatprep.subr.bf16.mxu0 0
          %1146 = vmatpush1.bf16.msra.mxu0 %v1123
          %1147 = vmatprep.subr.bf16.mxu0 0
          %1148 = vmatpush1.bf16.msra.mxu0 %v1124
          %1149 = vmatprep.subr.bf16.mxu0 0
          %1150 = vmatpush1.bf16.msra.mxu0 0
          %1151 = vmatprep.subr.bf16.mxu0 0
          %1152 = vmatpush1.bf16.msra.mxu0 0
          %1153 = vmatprep.subr.bf16.mxu0 0
          %1154 = vmatpush1.bf16.msra.mxu0 0
          %1155 = vmatprep.subr.bf16.mxu0 0
          %1156 = vmatpush1.bf16.msra.mxu0 0
          %1157 = vmatprep.subr.bf16.mxu0 0
          %1158 = vmatpush1.bf16.msra.mxu0 0
          %1159 = vmatprep.subr.bf16.mxu0 0
          %1160 = vmatpush1.bf16.msra.mxu0 0
          %1161 = vmatprep.subr.bf16.mxu0 0
          %1162 = vmatpush1.bf16.msra.mxu0 0
          %1163 = vmatprep.subr.bf16.mxu0 0
          %1164 = vmatpush1.bf16.msra.mxu0 0
          %1165 = vmatprep.mubr.bf16.mxu0 0
          %1166 = vmatmul.mubr.bf16.gmra.mrb[0].mxu0 %v1040
          %v1167 = vpop.f32.mrb[0].mxu0
          %v1168 = vadd.f32 0.0, %v1167
          %v1169 = vpop.f32.mrb[0].mxu0
          %v1170 = vpop.f32.mrb[0].mxu0
          %v1171 = vadd.f32 0.0, %v1170
          %v1172 = vpop.f32.mrb[0].mxu0
          %1173 = vdwg.mxu0
          %s1174 = scalar_lea.vmem %s167, 128 [#allocation3]
          %v1175 = vld [vmem:[%s1174] sm:$0xf]
          %v1176 = vld [vmem:[%s1174 + $0x4] sm:$0xf]
          %v1177 = vld [vmem:[%s1174 + $0x8] sm:$0xf]
          %v1178 = vld [vmem:[%s1174 + $0xc] sm:$0xf]
          %v1179 = vld [vmem:[%s1174 + $0x10] sm:$0xf]
          %v1180 = vld [vmem:[%s1174 + $0x14] sm:$0xf]
          %v1181 = vld [vmem:[%s1174 + $0x18] sm:$0xf]
          %v1182 = vld [vmem:[%s1174 + $0x1c] sm:$0xf]
          %v1183 = vld [vmem:[%s1174 + $0x20] sm:$0xf]
          %v1184 = vld [vmem:[%s1174 + $0x24] sm:$0xf]
          %v1185 = vld [vmem:[%s1174 + $0x28] sm:$0xf]
          %v1186 = vld [vmem:[%s1174 + $0x2c] sm:$0xf]
          %v1187 = vld [vmem:[%s1174 + $0x30] sm:$0xf]
          %v1188 = vld [vmem:[%s1174 + $0x34] sm:$0xf]
          %v1189 = vld [vmem:[%s1174 + $0x38] sm:$0xf]
          %v1190 = vld [vmem:[%s1174 + $0x3c] sm:$0xf]
          %v1207 = vunpack.c.l.b16 %v1175
          %v1208 = vunpack.c.l.b16 %v1176
          %v1209 = vunpack.c.l.b16 %v1177
          %v1210 = vunpack.c.l.b16 %v1178
          %v1211 = vunpack.c.l.b16 %v1179
          %v1212 = vunpack.c.l.b16 %v1180
          %v1213 = vunpack.c.l.b16 %v1181
          %v1214 = vunpack.c.l.b16 %v1182
          %v1215 = vunpack.c.l.b16 %v1183
          %v1216 = vunpack.c.l.b16 %v1184
          %v1217 = vunpack.c.l.b16 %v1185
          %v1218 = vunpack.c.l.b16 %v1186
          %v1219 = vunpack.c.l.b16 %v1187
          %v1220 = vunpack.c.l.b16 %v1188
          %v1221 = vunpack.c.l.b16 %v1189
          %v1222 = vunpack.c.l.b16 %v1190
          %v1223 = vpack.c.b16 %v1208, %v1207
          %v1224 = vpack.c.b16 %v1210, %v1209
          %v1225 = vpack.c.b16 %v1212, %v1211
          %v1226 = vpack.c.b16 %v1214, %v1213
          %v1227 = vpack.c.b16 %v1216, %v1215
          %v1228 = vpack.c.b16 %v1218, %v1217
          %v1229 = vpack.c.b16 %v1220, %v1219
          %v1230 = vpack.c.b16 %v1222, %v1221
          %1239 = vmatprep.subr.bf16.mxu0 0
          %1240 = vmatpush1.bf16.msra.mxu0 %v1223
          %1241 = vmatprep.subr.bf16.mxu0 0
          %1242 = vmatpush1.bf16.msra.mxu0 %v1224
          %1243 = vmatprep.subr.bf16.mxu0 0
          %1244 = vmatpush1.bf16.msra.mxu0 %v1225
          %1245 = vmatprep.subr.bf16.mxu0 0
          %1246 = vmatpush1.bf16.msra.mxu0 %v1226
          %1247 = vmatprep.subr.bf16.mxu0 0
          %1248 = vmatpush1.bf16.msra.mxu0 %v1227
          %1249 = vmatprep.subr.bf16.mxu0 0
          %1250 = vmatpush1.bf16.msra.mxu0 %v1228
          %1251 = vmatprep.subr.bf16.mxu0 0
          %1252 = vmatpush1.bf16.msra.mxu0 %v1229
          %1253 = vmatprep.subr.bf16.mxu0 0
          %1254 = vmatpush1.bf16.msra.mxu0 %v1230
          %1255 = vmatprep.subr.bf16.mxu0 0
          %1256 = vmatpush1.bf16.msra.mxu0 0
          %1257 = vmatprep.subr.bf16.mxu0 0
          %1258 = vmatpush1.bf16.msra.mxu0 0
          %1259 = vmatprep.subr.bf16.mxu0 0
          %1260 = vmatpush1.bf16.msra.mxu0 0
          %1261 = vmatprep.subr.bf16.mxu0 0
          %1262 = vmatpush1.bf16.msra.mxu0 0
          %1263 = vmatprep.subr.bf16.mxu0 0
          %1264 = vmatpush1.bf16.msra.mxu0 0
          %1265 = vmatprep.subr.bf16.mxu0 0
          %1266 = vmatpush1.bf16.msra.mxu0 0
          %1267 = vmatprep.subr.bf16.mxu0 0
          %1268 = vmatpush1.bf16.msra.mxu0 0
          %1269 = vmatprep.subr.bf16.mxu0 0
          %1270 = vmatpush1.bf16.msra.mxu0 0
          %1271 = vmatprep.mubr.bf16.mxu0 0
          %1272 = vmatmul.mubr.bf16.gmra.mrb[0].mxu0 %v1051
          %v1273 = vpop.f32.mrb[0].mxu0
          %v1274 = vadd.f32 0.0, %v1273
          %v1275 = vpop.f32.mrb[0].mxu0
          %v1276 = vpop.f32.mrb[0].mxu0
          %v1277 = vadd.f32 0.0, %v1276
          %v1278 = vpop.f32.mrb[0].mxu0
          %1279 = vdwg.mxu0
          %v1296 = vunpack.c.l.b16 %v1052
          %v1297 = vunpack.c.l.b16 %v1053
          %v1298 = vunpack.c.l.b16 %v1054
          %v1299 = vunpack.c.l.b16 %v1055
          %v1300 = vunpack.c.l.b16 %v1056
          %v1301 = vunpack.c.l.b16 %v1057
          %v1302 = vunpack.c.l.b16 %v1058
          %v1303 = vunpack.c.l.b16 %v1059
          %v1304 = vunpack.c.l.b16 %v1060
          %v1305 = vunpack.c.l.b16 %v1061
          %v1306 = vunpack.c.l.b16 %v1062
          %v1307 = vunpack.c.l.b16 %v1063
          %v1308 = vunpack.c.l.b16 %v1064
          %v1309 = vunpack.c.l.b16 %v1065
          %v1310 = vunpack.c.l.b16 %v1066
          %v1311 = vunpack.c.l.b16 %v1067
          %v1312 = vpack.c.b16 %v1297, %v1296
          %v1313 = vpack.c.b16 %v1299, %v1298
          %v1314 = vpack.c.b16 %v1301, %v1300
          %v1315 = vpack.c.b16 %v1303, %v1302
          %v1316 = vpack.c.b16 %v1305, %v1304
          %v1317 = vpack.c.b16 %v1307, %v1306
          %v1318 = vpack.c.b16 %v1309, %v1308
          %v1319 = vpack.c.b16 %v1311, %v1310
          %1328 = vmatprep.subr.bf16.mxu0 0
          %1329 = vmatpush1.bf16.msra.mxu0 %v1312
          %1330 = vmatprep.subr.bf16.mxu0 0
          %1331 = vmatpush1.bf16.msra.mxu0 %v1313
          %1332 = vmatprep.subr.bf16.mxu0 0
          %1333 = vmatpush1.bf16.msra.mxu0 %v1314
          %1334 = vmatprep.subr.bf16.mxu0 0
          %1335 = vmatpush1.bf16.msra.mxu0 %v1315
          %1336 = vmatprep.subr.bf16.mxu0 0
          %1337 = vmatpush1.bf16.msra.mxu0 %v1316
          %1338 = vmatprep.subr.bf16.mxu0 0
          %1339 = vmatpush1.bf16.msra.mxu0 %v1317
          %1340 = vmatprep.subr.bf16.mxu0 0
          %1341 = vmatpush1.bf16.msra.mxu0 %v1318
          %1342 = vmatprep.subr.bf16.mxu0 0
          %1343 = vmatpush1.bf16.msra.mxu0 %v1319
          %1344 = vmatprep.subr.bf16.mxu0 0
          %1345 = vmatpush1.bf16.msra.mxu0 0
          %1346 = vmatprep.subr.bf16.mxu0 0
          %1347 = vmatpush1.bf16.msra.mxu0 0
          %1348 = vmatprep.subr.bf16.mxu0 0
          %1349 = vmatpush1.bf16.msra.mxu0 0
          %1350 = vmatprep.subr.bf16.mxu0 0
          %1351 = vmatpush1.bf16.msra.mxu0 0
          %1352 = vmatprep.subr.bf16.mxu0 0
          %1353 = vmatpush1.bf16.msra.mxu0 0
          %1354 = vmatprep.subr.bf16.mxu0 0
          %1355 = vmatpush1.bf16.msra.mxu0 0
          %1356 = vmatprep.subr.bf16.mxu0 0
          %1357 = vmatpush1.bf16.msra.mxu0 0
          %1358 = vmatprep.subr.bf16.mxu0 0
          %1359 = vmatpush1.bf16.msra.mxu0 0
          %1360 = vmatprep.mubr.bf16.mxu0 0
          %1361 = vmatmul.mubr.bf16.gmra.mrb[0].mxu0 %v1037
          %v1362 = vpop.f32.mrb[0].mxu0
          %v1363 = vadd.f32 %v1168, %v1362
          %v1364 = vpop.f32.mrb[0].mxu0
          %v1365 = vpop.f32.mrb[0].mxu0
          %v1366 = vadd.f32 %v1171, %v1365
          %v1367 = vpop.f32.mrb[0].mxu0
          %1368 = vdwg.mxu0
          %v1369 = vadd.f32 %v1363, %v1274
          %v1370 = vadd.f32 %v1366, %v1277
          %v1371 = vld [vmem:[%s191] sm:$0x1]
          %v1373 = vlaneseq
          %v1374 = vshrl.u32 %v1373, 7
          %v1375 = vsub.s32 0, %v1374
          %v1376 = vrot.slane %v1371, %v1375
          %v1378 = vadd.f32 %v1369, %v1376
          %v1379 = vadd.f32 %v1370, %v1376
          %v1380 = vsub.f32 0.0, %v1378
          %v1381 = vsub.f32 0.0, %v1379
          %v1382 = vmul.f32 %v1380, 1.442695
          %v1383 = vpow.pop %v1382
          %v1384 = vmul.f32 %v1381, 1.442695
          %v1385 = vpow.pop %v1384
          %v1386 = vadd.f32 %v1383, 1.0
          %v1387 = vadd.f32 %v1385, 1.0
          %v1388 = vrcp.pop %v1386
          %v1389 = vrcp.pop %v1387
          %v1390 = vmul.f32 %v1378, %v1388
          %v1391 = vmul.f32 %v1379, %v1389
          %1392 = vst [vmem:[#allocation2 + $0x8] sm:$0xff] %v1390
          %1393 = vst [vmem:[#allocation2 + $0x10] sm:$0xff] %v1391
        $region48: #{forward.1} parent=31 // pred_fallthru
          _
        %p1394 = scmp.eq.s32.totalorder %s17, 3
        // Predicated region
        $region49: #{forward.1} parent=31 // pred_check
          %p1395 = pneg %p1394
        $region50: #{forward.1} parent=31 // pred_check_branch
          %1397 = sbr.rel (%p1395) target = $region52
        $region51: #{forward.1} parent=31 // pred_region
          %v1398 = vlaneseq
          %v1399 = vshrl.u32 %v1398, 7
          %s1400 = scalar_lea.vmem [#allocation2], 7
          %v1401 = vld [vmem:[%s1400] ss:$2 sm:$0xf]
          %s1402 = scalar_lea.vmem [#allocation2], 15
          %v1403 = vld [vmem:[%s1402] ss:$2 sm:$0xf]
          %v1405 = vrot.slane %v1403, 4
          %vm1407 = vcmask 1043456
          %v1408 = vsel %vm1407, %v1401, %v1405
          %vm1409 = vcmp.eq.s32.totalorder %v1399, 0
          %vm1410 = vcmp.eq.s32.totalorder %v1399, 4
          %vm1411 = vmor %vm1409, %vm1410
          %v1412 = vsel %vm1411, 0.0, %v1408
          %v1413 = vpack.c.bf16 %v1412, %v1412
          %s1414 = scalar_lea.vmem [#allocation2], 8
          %v1415 = vld [vmem:[%s1414] ss:$2 sm:$0xf]
          %s1416 = scalar_lea.vmem [#allocation2], 16
          %v1417 = vld [vmem:[%s1416] ss:$2 sm:$0xf]
          %v1419 = vrot.slane %v1417, 4
          %v1421 = vsel %vm1407, %v1415, %v1419
          %v1422 = vpack.c.bf16 %v1421, %v1421
          %s1423 = scalar_lea.vmem [#allocation2], 9
          %v1424 = vld [vmem:[%s1423] ss:$2 sm:$0xf]
          %s1425 = scalar_lea.vmem [#allocation2], 17
          %v1426 = vld [vmem:[%s1425] ss:$2 sm:$0xf]
          %v1428 = vrot.slane %v1426, 4
          %v1430 = vsel %vm1407, %v1424, %v1428
          %v1431 = vpack.c.bf16 %v1430, %v1430
          %v1432 = vld [vmem:[%s167] sm:$0xf]
          %v1433 = vld [vmem:[%s167 + $0x4] sm:$0xf]
          %v1434 = vld [vmem:[%s167 + $0x8] sm:$0xf]
          %v1435 = vld [vmem:[%s167 + $0xc] sm:$0xf]
          %v1436 = vld [vmem:[%s167 + $0x10] sm:$0xf]
          %v1437 = vld [vmem:[%s167 + $0x14] sm:$0xf]
          %v1438 = vld [vmem:[%s167 + $0x18] sm:$0xf]
          %v1439 = vld [vmem:[%s167 + $0x1c] sm:$0xf]
          %v1440 = vld [vmem:[%s167 + $0x20] sm:$0xf]
          %v1441 = vld [vmem:[%s167 + $0x24] sm:$0xf]
          %v1442 = vld [vmem:[%s167 + $0x28] sm:$0xf]
          %v1443 = vld [vmem:[%s167 + $0x2c] sm:$0xf]
          %v1444 = vld [vmem:[%s167 + $0x30] sm:$0xf]
          %v1445 = vld [vmem:[%s167 + $0x34] sm:$0xf]
          %v1446 = vld [vmem:[%s167 + $0x38] sm:$0xf]
          %v1447 = vld [vmem:[%s167 + $0x3c] sm:$0xf]
          %s1448 = scalar_lea.vmem %s167, 64 [#allocation3]
          %v1449 = vld [vmem:[%s1448] sm:$0xf]
          %v1450 = vld [vmem:[%s1448 + $0x4] sm:$0xf]
          %v1451 = vld [vmem:[%s1448 + $0x8] sm:$0xf]
          %v1452 = vld [vmem:[%s1448 + $0xc] sm:$0xf]
          %v1453 = vld [vmem:[%s1448 + $0x10] sm:$0xf]
          %v1454 = vld [vmem:[%s1448 + $0x14] sm:$0xf]
          %v1455 = vld [vmem:[%s1448 + $0x18] sm:$0xf]
          %v1456 = vld [vmem:[%s1448 + $0x1c] sm:$0xf]
          %v1457 = vld [vmem:[%s1448 + $0x20] sm:$0xf]
          %v1458 = vld [vmem:[%s1448 + $0x24] sm:$0xf]
          %v1459 = vld [vmem:[%s1448 + $0x28] sm:$0xf]
          %v1460 = vld [vmem:[%s1448 + $0x2c] sm:$0xf]
          %v1461 = vld [vmem:[%s1448 + $0x30] sm:$0xf]
          %v1462 = vld [vmem:[%s1448 + $0x34] sm:$0xf]
          %v1463 = vld [vmem:[%s1448 + $0x38] sm:$0xf]
          %v1464 = vld [vmem:[%s1448 + $0x3c] sm:$0xf]
          %v1481 = vunpack.c.l.b16 %v1449
          %v1482 = vunpack.c.l.b16 %v1450
          %v1483 = vunpack.c.l.b16 %v1451
          %v1484 = vunpack.c.l.b16 %v1452
          %v1485 = vunpack.c.l.b16 %v1453
          %v1486 = vunpack.c.l.b16 %v1454
          %v1487 = vunpack.c.l.b16 %v1455
          %v1488 = vunpack.c.l.b16 %v1456
          %v1489 = vunpack.c.l.b16 %v1457
          %v1490 = vunpack.c.l.b16 %v1458
          %v1491 = vunpack.c.l.b16 %v1459
          %v1492 = vunpack.c.l.b16 %v1460
          %v1493 = vunpack.c.l.b16 %v1461
          %v1494 = vunpack.c.l.b16 %v1462
          %v1495 = vunpack.c.l.b16 %v1463
          %v1496 = vunpack.c.l.b16 %v1464
          %v1497 = vpack.c.b16 %v1482, %v1481
          %v1498 = vpack.c.b16 %v1484, %v1483
          %v1499 = vpack.c.b16 %v1486, %v1485
          %v1500 = vpack.c.b16 %v1488, %v1487
          %v1501 = vpack.c.b16 %v1490, %v1489
          %v1502 = vpack.c.b16 %v1492, %v1491
          %v1503 = vpack.c.b16 %v1494, %v1493
          %v1504 = vpack.c.b16 %v1496, %v1495
          %1513 = vmatprep.subr.bf16.mxu0 0
          %1514 = vmatpush1.bf16.msra.mxu0 %v1497
          %1515 = vmatprep.subr.bf16.mxu0 0
          %1516 = vmatpush1.bf16.msra.mxu0 %v1498
          %1517 = vmatprep.subr.bf16.mxu0 0
          %1518 = vmatpush1.bf16.msra.mxu0 %v1499
          %1519 = vmatprep.subr.bf16.mxu0 0
          %1520 = vmatpush1.bf16.msra.mxu0 %v1500
          %1521 = vmatprep.subr.bf16.mxu0 0
          %1522 = vmatpush1.bf16.msra.mxu0 %v1501
          %1523 = vmatprep.subr.bf16.mxu0 0
          %1524 = vmatpush1.bf16.msra.mxu0 %v1502
          %1525 = vmatprep.subr.bf16.mxu0 0
          %1526 = vmatpush1.bf16.msra.mxu0 %v1503
          %1527 = vmatprep.subr.bf16.mxu0 0
          %1528 = vmatpush1.bf16.msra.mxu0 %v1504
          %1529 = vmatprep.subr.bf16.mxu0 0
          %1530 = vmatpush1.bf16.msra.mxu0 0
          %1531 = vmatprep.subr.bf16.mxu0 0
          %1532 = vmatpush1.bf16.msra.mxu0 0
          %1533 = vmatprep.subr.bf16.mxu0 0
          %1534 = vmatpush1.bf16.msra.mxu0 0
          %1535 = vmatprep.subr.bf16.mxu0 0
          %1536 = vmatpush1.bf16.msra.mxu0 0
          %1537 = vmatprep.subr.bf16.mxu0 0
          %1538 = vmatpush1.bf16.msra.mxu0 0
          %1539 = vmatprep.subr.bf16.mxu0 0
          %1540 = vmatpush1.bf16.msra.mxu0 0
          %1541 = vmatprep.subr.bf16.mxu0 0
          %1542 = vmatpush1.bf16.msra.mxu0 0
          %1543 = vmatprep.subr.bf16.mxu0 0
          %1544 = vmatpush1.bf16.msra.mxu0 0
          %1545 = vmatprep.mubr.bf16.mxu0 0
          %1546 = vmatmul.mubr.bf16.gmra.mrb[0].mxu0 %v1422
          %v1547 = vpop.f32.mrb[0].mxu0
          %v1548 = vadd.f32 0.0, %v1547
          %v1549 = vpop.f32.mrb[0].mxu0
          %v1550 = vpop.f32.mrb[0].mxu0
          %v1551 = vpop.f32.mrb[0].mxu0
          %1552 = vdwg.mxu0
          %s1553 = scalar_lea.vmem %s167, 128 [#allocation3]
          %v1554 = vld [vmem:[%s1553] sm:$0xf]
          %v1555 = vld [vmem:[%s1553 + $0x4] sm:$0xf]
          %v1556 = vld [vmem:[%s1553 + $0x8] sm:$0xf]
          %v1557 = vld [vmem:[%s1553 + $0xc] sm:$0xf]
          %v1558 = vld [vmem:[%s1553 + $0x10] sm:$0xf]
          %v1559 = vld [vmem:[%s1553 + $0x14] sm:$0xf]
          %v1560 = vld [vmem:[%s1553 + $0x18] sm:$0xf]
          %v1561 = vld [vmem:[%s1553 + $0x1c] sm:$0xf]
          %v1562 = vld [vmem:[%s1553 + $0x20] sm:$0xf]
          %v1563 = vld [vmem:[%s1553 + $0x24] sm:$0xf]
          %v1564 = vld [vmem:[%s1553 + $0x28] sm:$0xf]
          %v1565 = vld [vmem:[%s1553 + $0x2c] sm:$0xf]
          %v1566 = vld [vmem:[%s1553 + $0x30] sm:$0xf]
          %v1567 = vld [vmem:[%s1553 + $0x34] sm:$0xf]
          %v1568 = vld [vmem:[%s1553 + $0x38] sm:$0xf]
          %v1569 = vld [vmem:[%s1553 + $0x3c] sm:$0xf]
          %v1586 = vunpack.c.l.b16 %v1554
          %v1587 = vunpack.c.l.b16 %v1555
          %v1588 = vunpack.c.l.b16 %v1556
          %v1589 = vunpack.c.l.b16 %v1557
          %v1590 = vunpack.c.l.b16 %v1558
          %v1591 = vunpack.c.l.b16 %v1559
          %v1592 = vunpack.c.l.b16 %v1560
          %v1593 = vunpack.c.l.b16 %v1561
          %v1594 = vunpack.c.l.b16 %v1562
          %v1595 = vunpack.c.l.b16 %v1563
          %v1596 = vunpack.c.l.b16 %v1564
          %v1597 = vunpack.c.l.b16 %v1565
          %v1598 = vunpack.c.l.b16 %v1566
          %v1599 = vunpack.c.l.b16 %v1567
          %v1600 = vunpack.c.l.b16 %v1568
          %v1601 = vunpack.c.l.b16 %v1569
          %v1602 = vpack.c.b16 %v1587, %v1586
          %v1603 = vpack.c.b16 %v1589, %v1588
          %v1604 = vpack.c.b16 %v1591, %v1590
          %v1605 = vpack.c.b16 %v1593, %v1592
          %v1606 = vpack.c.b16 %v1595, %v1594
          %v1607 = vpack.c.b16 %v1597, %v1596
          %v1608 = vpack.c.b16 %v1599, %v1598
          %v1609 = vpack.c.b16 %v1601, %v1600
          %1618 = vmatprep.subr.bf16.mxu0 0
          %1619 = vmatpush1.bf16.msra.mxu0 %v1602
          %1620 = vmatprep.subr.bf16.mxu0 0
          %1621 = vmatpush1.bf16.msra.mxu0 %v1603
          %1622 = vmatprep.subr.bf16.mxu0 0
          %1623 = vmatpush1.bf16.msra.mxu0 %v1604
          %1624 = vmatprep.subr.bf16.mxu0 0
          %1625 = vmatpush1.bf16.msra.mxu0 %v1605
          %1626 = vmatprep.subr.bf16.mxu0 0
          %1627 = vmatpush1.bf16.msra.mxu0 %v1606
          %1628 = vmatprep.subr.bf16.mxu0 0
          %1629 = vmatpush1.bf16.msra.mxu0 %v1607
          %1630 = vmatprep.subr.bf16.mxu0 0
          %1631 = vmatpush1.bf16.msra.mxu0 %v1608
          %1632 = vmatprep.subr.bf16.mxu0 0
          %1633 = vmatpush1.bf16.msra.mxu0 %v1609
          %1634 = vmatprep.subr.bf16.mxu0 0
          %1635 = vmatpush1.bf16.msra.mxu0 0
          %1636 = vmatprep.subr.bf16.mxu0 0
          %1637 = vmatpush1.bf16.msra.mxu0 0
          %1638 = vmatprep.subr.bf16.mxu0 0
          %1639 = vmatpush1.bf16.msra.mxu0 0
          %1640 = vmatprep.subr.bf16.mxu0 0
          %1641 = vmatpush1.bf16.msra.mxu0 0
          %1642 = vmatprep.subr.bf16.mxu0 0
          %1643 = vmatpush1.bf16.msra.mxu0 0
          %1644 = vmatprep.subr.bf16.mxu0 0
          %1645 = vmatpush1.bf16.msra.mxu0 0
          %1646 = vmatprep.subr.bf16.mxu0 0
          %1647 = vmatpush1.bf16.msra.mxu0 0
          %1648 = vmatprep.subr.bf16.mxu0 0
          %1649 = vmatpush1.bf16.msra.mxu0 0
          %1650 = vmatprep.mubr.bf16.mxu0 0
          %1651 = vmatmul.mubr.bf16.gmra.mrb[0].mxu0 %v1431
          %v1652 = vpop.f32.mrb[0].mxu0
          %v1653 = vadd.f32 0.0, %v1652
          %v1654 = vpop.f32.mrb[0].mxu0
          %v1655 = vpop.f32.mrb[0].mxu0
          %v1656 = vpop.f32.mrb[0].mxu0
          %1657 = vdwg.mxu0
          %v1674 = vunpack.c.l.b16 %v1432
          %v1675 = vunpack.c.l.b16 %v1433
          %v1676 = vunpack.c.l.b16 %v1434
          %v1677 = vunpack.c.l.b16 %v1435
          %v1678 = vunpack.c.l.b16 %v1436
          %v1679 = vunpack.c.l.b16 %v1437
          %v1680 = vunpack.c.l.b16 %v1438
          %v1681 = vunpack.c.l.b16 %v1439
          %v1682 = vunpack.c.l.b16 %v1440
          %v1683 = vunpack.c.l.b16 %v1441
          %v1684 = vunpack.c.l.b16 %v1442
          %v1685 = vunpack.c.l.b16 %v1443
          %v1686 = vunpack.c.l.b16 %v1444
          %v1687 = vunpack.c.l.b16 %v1445
          %v1688 = vunpack.c.l.b16 %v1446
          %v1689 = vunpack.c.l.b16 %v1447
          %v1690 = vpack.c.b16 %v1675, %v1674
          %v1691 = vpack.c.b16 %v1677, %v1676
          %v1692 = vpack.c.b16 %v1679, %v1678
          %v1693 = vpack.c.b16 %v1681, %v1680
          %v1694 = vpack.c.b16 %v1683, %v1682
          %v1695 = vpack.c.b16 %v1685, %v1684
          %v1696 = vpack.c.b16 %v1687, %v1686
          %v1697 = vpack.c.b16 %v1689, %v1688
          %1706 = vmatprep.subr.bf16.mxu0 0
          %1707 = vmatpush1.bf16.msra.mxu0 %v1690
          %1708 = vmatprep.subr.bf16.mxu0 0
          %1709 = vmatpush1.bf16.msra.mxu0 %v1691
          %1710 = vmatprep.subr.bf16.mxu0 0
          %1711 = vmatpush1.bf16.msra.mxu0 %v1692
          %1712 = vmatprep.subr.bf16.mxu0 0
          %1713 = vmatpush1.bf16.msra.mxu0 %v1693
          %1714 = vmatprep.subr.bf16.mxu0 0
          %1715 = vmatpush1.bf16.msra.mxu0 %v1694
          %1716 = vmatprep.subr.bf16.mxu0 0
          %1717 = vmatpush1.bf16.msra.mxu0 %v1695
          %1718 = vmatprep.subr.bf16.mxu0 0
          %1719 = vmatpush1.bf16.msra.mxu0 %v1696
          %1720 = vmatprep.subr.bf16.mxu0 0
          %1721 = vmatpush1.bf16.msra.mxu0 %v1697
          %1722 = vmatprep.subr.bf16.mxu0 0
          %1723 = vmatpush1.bf16.msra.mxu0 0
          %1724 = vmatprep.subr.bf16.mxu0 0
          %1725 = vmatpush1.bf16.msra.mxu0 0
          %1726 = vmatprep.subr.bf16.mxu0 0
          %1727 = vmatpush1.bf16.msra.mxu0 0
          %1728 = vmatprep.subr.bf16.mxu0 0
          %1729 = vmatpush1.bf16.msra.mxu0 0
          %1730 = vmatprep.subr.bf16.mxu0 0
          %1731 = vmatpush1.bf16.msra.mxu0 0
          %1732 = vmatprep.subr.bf16.mxu0 0
          %1733 = vmatpush1.bf16.msra.mxu0 0
          %1734 = vmatprep.subr.bf16.mxu0 0
          %1735 = vmatpush1.bf16.msra.mxu0 0
          %1736 = vmatprep.subr.bf16.mxu0 0
          %1737 = vmatpush1.bf16.msra.mxu0 0
          %1738 = vmatprep.mubr.bf16.mxu0 0
          %1739 = vmatmul.mubr.bf16.gmra.mrb[0].mxu0 %v1413
          %v1740 = vpop.f32.mrb[0].mxu0
          %v1741 = vadd.f32 %v1548, %v1740
          %v1742 = vpop.f32.mrb[0].mxu0
          %v1743 = vpop.f32.mrb[0].mxu0
          %v1744 = vpop.f32.mrb[0].mxu0
          %1745 = vdwg.mxu0
          %v1746 = vadd.f32 %v1741, %v1653
          %v1747 = vld [vmem:[%s191] sm:$0x1]
          %v1749 = vlaneseq
          %v1750 = vshrl.u32 %v1749, 7
          %v1751 = vsub.s32 0, %v1750
          %v1752 = vrot.slane %v1747, %v1751
          %v1754 = vadd.f32 %v1746, %v1752
          %v1755 = vsub.f32 0.0, %v1754
          %v1756 = vmul.f32 %v1755, 1.442695
          %v1757 = vpow.pop %v1756
          %v1758 = vadd.f32 %v1757, 1.0
          %v1759 = vrcp.pop %v1758
          %v1760 = vmul.f32 %v1754, %v1759
          %1761 = vst [vmem:[#allocation2 + $0x8] sm:$0xff] %v1760
        $region52: #{forward.1} parent=31 // pred_fallthru
          _
        %p1762 = scmp.eq.s32.totalorder %s17, 4
        // Predicated region
        $region53: #{forward.1} parent=31 // pred_check
          %p1763 = pneg %p1762
        $region54: #{forward.1} parent=31 // pred_check_branch
          %1765 = sbr.rel (%p1763) target = $region56
        $region55: #{forward.1} parent=31 // pred_region
          %v1766 = vlaneseq
          %v1767 = vshrl.u32 %v1766, 7
          %v1768 = vld [vmem:[#allocation2 + $0x7] sm:$0xff]
          %vm1769 = vcmp.eq.s32.totalorder %v1767, 0
          %vm1770 = vcmp.eq.s32.totalorder %v1767, 4
          %vm1771 = vmor %vm1769, %vm1770
          %v1772 = vsel %vm1771, 0.0, %v1768
          %v1773 = vpack.c.bf16 %v1772, %v1772
          %v1774 = vld [vmem:[#allocation2 + $0x8] sm:$0xff]
          %v1775 = vpack.c.bf16 %v1774, %v1774
          %v1776 = vld [vmem:[#allocation2 + $0x9] sm:$0xff]
          %vm1777 = vcmp.eq.s32.totalorder %v1767, 3
          %vm1778 = vcmp.eq.s32.totalorder %v1767, 7
          %vm1779 = vmor %vm1777, %vm1778
          %v1780 = vsel %vm1779, 0.0, %v1776
          %v1781 = vpack.c.bf16 %v1780, %v1780
          %v1782 = vld [vmem:[%s167] sm:$0xf]
          %v1783 = vld [vmem:[%s167 + $0x4] sm:$0xf]
          %v1784 = vld [vmem:[%s167 + $0x8] sm:$0xf]
          %v1785 = vld [vmem:[%s167 + $0xc] sm:$0xf]
          %v1786 = vld [vmem:[%s167 + $0x10] sm:$0xf]
          %v1787 = vld [vmem:[%s167 + $0x14] sm:$0xf]
          %v1788 = vld [vmem:[%s167 + $0x18] sm:$0xf]
          %v1789 = vld [vmem:[%s167 + $0x1c] sm:$0xf]
          %v1790 = vld [vmem:[%s167 + $0x20] sm:$0xf]
          %v1791 = vld [vmem:[%s167 + $0x24] sm:$0xf]
          %v1792 = vld [vmem:[%s167 + $0x28] sm:$0xf]
          %v1793 = vld [vmem:[%s167 + $0x2c] sm:$0xf]
          %v1794 = vld [vmem:[%s167 + $0x30] sm:$0xf]
          %v1795 = vld [vmem:[%s167 + $0x34] sm:$0xf]
          %v1796 = vld [vmem:[%s167 + $0x38] sm:$0xf]
          %v1797 = vld [vmem:[%s167 + $0x3c] sm:$0xf]
          %s1798 = scalar_lea.vmem %s167, 64 [#allocation3]
          %v1799 = vld [vmem:[%s1798] sm:$0xf]
          %v1800 = vld [vmem:[%s1798 + $0x4] sm:$0xf]
          %v1801 = vld [vmem:[%s1798 + $0x8] sm:$0xf]
          %v1802 = vld [vmem:[%s1798 + $0xc] sm:$0xf]
          %v1803 = vld [vmem:[%s1798 + $0x10] sm:$0xf]
          %v1804 = vld [vmem:[%s1798 + $0x14] sm:$0xf]
          %v1805 = vld [vmem:[%s1798 + $0x18] sm:$0xf]
          %v1806 = vld [vmem:[%s1798 + $0x1c] sm:$0xf]
          %v1807 = vld [vmem:[%s1798 + $0x20] sm:$0xf]
          %v1808 = vld [vmem:[%s1798 + $0x24] sm:$0xf]
          %v1809 = vld [vmem:[%s1798 + $0x28] sm:$0xf]
          %v1810 = vld [vmem:[%s1798 + $0x2c] sm:$0xf]
          %v1811 = vld [vmem:[%s1798 + $0x30] sm:$0xf]
          %v1812 = vld [vmem:[%s1798 + $0x34] sm:$0xf]
          %v1813 = vld [vmem:[%s1798 + $0x38] sm:$0xf]
          %v1814 = vld [vmem:[%s1798 + $0x3c] sm:$0xf]
          %v1831 = vunpack.c.l.b16 %v1799
          %v1832 = vunpack.c.l.b16 %v1800
          %v1833 = vunpack.c.l.b16 %v1801
          %v1834 = vunpack.c.l.b16 %v1802
          %v1835 = vunpack.c.l.b16 %v1803
          %v1836 = vunpack.c.l.b16 %v1804
          %v1837 = vunpack.c.l.b16 %v1805
          %v1838 = vunpack.c.l.b16 %v1806
          %v1839 = vunpack.c.l.b16 %v1807
          %v1840 = vunpack.c.l.b16 %v1808
          %v1841 = vunpack.c.l.b16 %v1809
          %v1842 = vunpack.c.l.b16 %v1810
          %v1843 = vunpack.c.l.b16 %v1811
          %v1844 = vunpack.c.l.b16 %v1812
          %v1845 = vunpack.c.l.b16 %v1813
          %v1846 = vunpack.c.l.b16 %v1814
          %v1847 = vpack.c.b16 %v1832, %v1831
          %v1848 = vpack.c.b16 %v1834, %v1833
          %v1849 = vpack.c.b16 %v1836, %v1835
          %v1850 = vpack.c.b16 %v1838, %v1837
          %v1851 = vpack.c.b16 %v1840, %v1839
          %v1852 = vpack.c.b16 %v1842, %v1841
          %v1853 = vpack.c.b16 %v1844, %v1843
          %v1854 = vpack.c.b16 %v1846, %v1845
          %1863 = vmatprep.subr.bf16.mxu0 0
          %1864 = vmatpush1.bf16.msra.mxu0 %v1847
          %1865 = vmatprep.subr.bf16.mxu0 0
          %1866 = vmatpush1.bf16.msra.mxu0 %v1848
          %1867 = vmatprep.subr.bf16.mxu0 0
          %1868 = vmatpush1.bf16.msra.mxu0 %v1849
          %1869 = vmatprep.subr.bf16.mxu0 0
          %1870 = vmatpush1.bf16.msra.mxu0 %v1850
          %1871 = vmatprep.subr.bf16.mxu0 0
          %1872 = vmatpush1.bf16.msra.mxu0 %v1851
          %1873 = vmatprep.subr.bf16.mxu0 0
          %1874 = vmatpush1.bf16.msra.mxu0 %v1852
          %1875 = vmatprep.subr.bf16.mxu0 0
          %1876 = vmatpush1.bf16.msra.mxu0 %v1853
          %1877 = vmatprep.subr.bf16.mxu0 0
          %1878 = vmatpush1.bf16.msra.mxu0 %v1854
          %1879 = vmatprep.subr.bf16.mxu0 0
          %1880 = vmatpush1.bf16.msra.mxu0 0
          %1881 = vmatprep.subr.bf16.mxu0 0
          %1882 = vmatpush1.bf16.msra.mxu0 0
          %1883 = vmatprep.subr.bf16.mxu0 0
          %1884 = vmatpush1.bf16.msra.mxu0 0
          %1885 = vmatprep.subr.bf16.mxu0 0
          %1886 = vmatpush1.bf16.msra.mxu0 0
          %1887 = vmatprep.subr.bf16.mxu0 0
          %1888 = vmatpush1.bf16.msra.mxu0 0
          %1889 = vmatprep.subr.bf16.mxu0 0
          %1890 = vmatpush1.bf16.msra.mxu0 0
          %1891 = vmatprep.subr.bf16.mxu0 0
          %1892 = vmatpush1.bf16.msra.mxu0 0
          %1893 = vmatprep.subr.bf16.mxu0 0
          %1894 = vmatpush1.bf16.msra.mxu0 0
          %1895 = vmatprep.mubr.bf16.mxu0 0
          %1896 = vmatmul.mubr.bf16.gmra.mrb[0].mxu0 %v1775
          %v1897 = vpop.f32.mrb[0].mxu0
          %v1898 = vadd.f32 0.0, %v1897
          %v1899 = vpop.f32.mrb[0].mxu0
          %v1900 = vpop.f32.mrb[0].mxu0
          %v1901 = vpop.f32.mrb[0].mxu0
          %1902 = vdwg.mxu0
          %s1903 = scalar_lea.vmem %s167, 128 [#allocation3]
          %v1904 = vld [vmem:[%s1903] sm:$0xf]
          %v1905 = vld [vmem:[%s1903 + $0x4] sm:$0xf]
          %v1906 = vld [vmem:[%s1903 + $0x8] sm:$0xf]
          %v1907 = vld [vmem:[%s1903 + $0xc] sm:$0xf]
          %v1908 = vld [vmem:[%s1903 + $0x10] sm:$0xf]
          %v1909 = vld [vmem:[%s1903 + $0x14] sm:$0xf]
          %v1910 = vld [vmem:[%s1903 + $0x18] sm:$0xf]
          %v1911 = vld [vmem:[%s1903 + $0x1c] sm:$0xf]
          %v1912 = vld [vmem:[%s1903 + $0x20] sm:$0xf]
          %v1913 = vld [vmem:[%s1903 + $0x24] sm:$0xf]
          %v1914 = vld [vmem:[%s1903 + $0x28] sm:$0xf]
          %v1915 = vld [vmem:[%s1903 + $0x2c] sm:$0xf]
          %v1916 = vld [vmem:[%s1903 + $0x30] sm:$0xf]
          %v1917 = vld [vmem:[%s1903 + $0x34] sm:$0xf]
          %v1918 = vld [vmem:[%s1903 + $0x38] sm:$0xf]
          %v1919 = vld [vmem:[%s1903 + $0x3c] sm:$0xf]
          %v1936 = vunpack.c.l.b16 %v1904
          %v1937 = vunpack.c.l.b16 %v1905
          %v1938 = vunpack.c.l.b16 %v1906
          %v1939 = vunpack.c.l.b16 %v1907
          %v1940 = vunpack.c.l.b16 %v1908
          %v1941 = vunpack.c.l.b16 %v1909
          %v1942 = vunpack.c.l.b16 %v1910
          %v1943 = vunpack.c.l.b16 %v1911
          %v1944 = vunpack.c.l.b16 %v1912
          %v1945 = vunpack.c.l.b16 %v1913
          %v1946 = vunpack.c.l.b16 %v1914
          %v1947 = vunpack.c.l.b16 %v1915
          %v1948 = vunpack.c.l.b16 %v1916
          %v1949 = vunpack.c.l.b16 %v1917
          %v1950 = vunpack.c.l.b16 %v1918
          %v1951 = vunpack.c.l.b16 %v1919
          %v1952 = vpack.c.b16 %v1937, %v1936
          %v1953 = vpack.c.b16 %v1939, %v1938
          %v1954 = vpack.c.b16 %v1941, %v1940
          %v1955 = vpack.c.b16 %v1943, %v1942
          %v1956 = vpack.c.b16 %v1945, %v1944
          %v1957 = vpack.c.b16 %v1947, %v1946
          %v1958 = vpack.c.b16 %v1949, %v1948
          %v1959 = vpack.c.b16 %v1951, %v1950
          %1968 = vmatprep.subr.bf16.mxu0 0
          %1969 = vmatpush1.bf16.msra.mxu0 %v1952
          %1970 = vmatprep.subr.bf16.mxu0 0
          %1971 = vmatpush1.bf16.msra.mxu0 %v1953
          %1972 = vmatprep.subr.bf16.mxu0 0
          %1973 = vmatpush1.bf16.msra.mxu0 %v1954
          %1974 = vmatprep.subr.bf16.mxu0 0
          %1975 = vmatpush1.bf16.msra.mxu0 %v1955
          %1976 = vmatprep.subr.bf16.mxu0 0
          %1977 = vmatpush1.bf16.msra.mxu0 %v1956
          %1978 = vmatprep.subr.bf16.mxu0 0
          %1979 = vmatpush1.bf16.msra.mxu0 %v1957
          %1980 = vmatprep.subr.bf16.mxu0 0
          %1981 = vmatpush1.bf16.msra.mxu0 %v1958
          %1982 = vmatprep.subr.bf16.mxu0 0
          %1983 = vmatpush1.bf16.msra.mxu0 %v1959
          %1984 = vmatprep.subr.bf16.mxu0 0
          %1985 = vmatpush1.bf16.msra.mxu0 0
          %1986 = vmatprep.subr.bf16.mxu0 0
          %1987 = vmatpush1.bf16.msra.mxu0 0
          %1988 = vmatprep.subr.bf16.mxu0 0
          %1989 = vmatpush1.bf16.msra.mxu0 0
          %1990 = vmatprep.subr.bf16.mxu0 0
          %1991 = vmatpush1.bf16.msra.mxu0 0
          %1992 = vmatprep.subr.bf16.mxu0 0
          %1993 = vmatpush1.bf16.msra.mxu0 0
          %1994 = vmatprep.subr.bf16.mxu0 0
          %1995 = vmatpush1.bf16.msra.mxu0 0
          %1996 = vmatprep.subr.bf16.mxu0 0
          %1997 = vmatpush1.bf16.msra.mxu0 0
          %1998 = vmatprep.subr.bf16.mxu0 0
          %1999 = vmatpush1.bf16.msra.mxu0 0
          %2000 = vmatprep.mubr.bf16.mxu0 0
          %2001 = vmatmul.mubr.bf16.gmra.mrb[0].mxu0 %v1781
          %v2002 = vpop.f32.mrb[0].mxu0
          %v2003 = vadd.f32 0.0, %v2002
          %v2004 = vpop.f32.mrb[0].mxu0
          %v2005 = vpop.f32.mrb[0].mxu0
          %v2006 = vpop.f32.mrb[0].mxu0
          %2007 = vdwg.mxu0
          %v2024 = vunpack.c.l.b16 %v1782
          %v2025 = vunpack.c.l.b16 %v1783
          %v2026 = vunpack.c.l.b16 %v1784
          %v2027 = vunpack.c.l.b16 %v1785
          %v2028 = vunpack.c.l.b16 %v1786
          %v2029 = vunpack.c.l.b16 %v1787
          %v2030 = vunpack.c.l.b16 %v1788
          %v2031 = vunpack.c.l.b16 %v1789
          %v2032 = vunpack.c.l.b16 %v1790
          %v2033 = vunpack.c.l.b16 %v1791
          %v2034 = vunpack.c.l.b16 %v1792
          %v2035 = vunpack.c.l.b16 %v1793
          %v2036 = vunpack.c.l.b16 %v1794
          %v2037 = vunpack.c.l.b16 %v1795
          %v2038 = vunpack.c.l.b16 %v1796
          %v2039 = vunpack.c.l.b16 %v1797
          %v2040 = vpack.c.b16 %v2025, %v2024
          %v2041 = vpack.c.b16 %v2027, %v2026
          %v2042 = vpack.c.b16 %v2029, %v2028
          %v2043 = vpack.c.b16 %v2031, %v2030
          %v2044 = vpack.c.b16 %v2033, %v2032
          %v2045 = vpack.c.b16 %v2035, %v2034
          %v2046 = vpack.c.b16 %v2037, %v2036
          %v2047 = vpack.c.b16 %v2039, %v2038
          %2056 = vmatprep.subr.bf16.mxu0 0
          %2057 = vmatpush1.bf16.msra.mxu0 %v2040
          %2058 = vmatprep.subr.bf16.mxu0 0
          %2059 = vmatpush1.bf16.msra.mxu0 %v2041
          %2060 = vmatprep.subr.bf16.mxu0 0
          %2061 = vmatpush1.bf16.msra.mxu0 %v2042
          %2062 = vmatprep.subr.bf16.mxu0 0
          %2063 = vmatpush1.bf16.msra.mxu0 %v2043
          %2064 = vmatprep.subr.bf16.mxu0 0
          %2065 = vmatpush1.bf16.msra.mxu0 %v2044
          %2066 = vmatprep.subr.bf16.mxu0 0
          %2067 = vmatpush1.bf16.msra.mxu0 %v2045
          %2068 = vmatprep.subr.bf16.mxu0 0
          %2069 = vmatpush1.bf16.msra.mxu0 %v2046
          %2070 = vmatprep.subr.bf16.mxu0 0
          %2071 = vmatpush1.bf16.msra.mxu0 %v2047
          %2072 = vmatprep.subr.bf16.mxu0 0
          %2073 = vmatpush1.bf16.msra.mxu0 0
          %2074 = vmatprep.subr.bf16.mxu0 0
          %2075 = vmatpush1.bf16.msra.mxu0 0
          %2076 = vmatprep.subr.bf16.mxu0 0
          %2077 = vmatpush1.bf16.msra.mxu0 0
          %2078 = vmatprep.subr.bf16.mxu0 0
          %2079 = vmatpush1.bf16.msra.mxu0 0
          %2080 = vmatprep.subr.bf16.mxu0 0
          %2081 = vmatpush1.bf16.msra.mxu0 0
          %2082 = vmatprep.subr.bf16.mxu0 0
          %2083 = vmatpush1.bf16.msra.mxu0 0
          %2084 = vmatprep.subr.bf16.mxu0 0
          %2085 = vmatpush1.bf16.msra.mxu0 0
          %2086 = vmatprep.subr.bf16.mxu0 0
          %2087 = vmatpush1.bf16.msra.mxu0 0
          %2088 = vmatprep.mubr.bf16.mxu0 0
          %2089 = vmatmul.mubr.bf16.gmra.mrb[0].mxu0 %v1773
          %v2090 = vpop.f32.mrb[0].mxu0
          %v2091 = vadd.f32 %v1898, %v2090
          %v2092 = vpop.f32.mrb[0].mxu0
          %v2093 = vpop.f32.mrb[0].mxu0
          %v2094 = vpop.f32.mrb[0].mxu0
          %2095 = vdwg.mxu0
          %v2096 = vadd.f32 %v2091, %v2003
          %v2097 = vld [vmem:[%s191] sm:$0x1]
          %v2099 = vlaneseq
          %v2100 = vshrl.u32 %v2099, 7
          %v2101 = vsub.s32 0, %v2100
          %v2102 = vrot.slane %v2097, %v2101
          %v2104 = vadd.f32 %v2096, %v2102
          %v2105 = vsub.f32 0.0, %v2104
          %v2106 = vmul.f32 %v2105, 1.442695
          %v2107 = vpow.pop %v2106
          %v2108 = vadd.f32 %v2107, 1.0
          %v2109 = vrcp.pop %v2108
          %v2110 = vmul.f32 %v2104, %v2109
          %2111 = vst [vmem:[#allocation2 + $0x8] sm:$0xff] %v2110
        $region56: #{forward.1} parent=31 // pred_fallthru
          _
        %p2112 = scmp.eq.s32.totalorder %s17, 5
        // Predicated region
        $region57: #{forward.1} parent=31 // pred_check
          %p2113 = pneg %p2112
        $region58: #{forward.1} parent=31 // pred_check_branch
          %2115 = sbr.rel (%p2113) target = $region60
        $region59: #{forward.1} parent=31 // pred_region
          %v2116 = vlaneseq
          %v2117 = vshrl.u32 %v2116, 7
          %s2118 = scalar_lea.vmem [#allocation2], 7
          %v2119 = vld [vmem:[%s2118] ss:$2 sm:$0x3]
          %s2120 = scalar_lea.vmem [#allocation2], 11
          %v2121 = vld [vmem:[%s2120] ss:$2 sm:$0x3]
          %v2123 = vrot.slane %v2121, 6
          %vm2125 = vcmask 1041408
          %v2126 = vsel %vm2125, %v2119, %v2123
          %vm2127 = vcmp.eq.s32.totalorder %v2117, 0
          %vm2128 = vcmp.eq.s32.totalorder %v2117, 2
          %vm2129 = vmor %vm2127, %vm2128
          %v2130 = vsel %vm2129, 0.0, %v2126
          %v2131 = vpack.c.bf16 %v2130, %v2130
          %s2132 = scalar_lea.vmem [#allocation2], 8
          %v2133 = vld [vmem:[%s2132] ss:$2 sm:$0x3]
          %s2134 = scalar_lea.vmem [#allocation2], 12
          %v2135 = vld [vmem:[%s2134] ss:$2 sm:$0x3]
          %v2137 = vrot.slane %v2135, 6
          %v2139 = vsel %vm2125, %v2133, %v2137
          %v2140 = vpack.c.bf16 %v2139, %v2139
          %s2141 = scalar_lea.vmem [#allocation2], 9
          %v2142 = vld [vmem:[%s2141] ss:$2 sm:$0x3]
          %s2143 = scalar_lea.vmem [#allocation2], 13
          %v2144 = vld [vmem:[%s2143] ss:$2 sm:$0x3]
          %v2146 = vrot.slane %v2144, 6
          %v2148 = vsel %vm2125, %v2142, %v2146
          %v2149 = vpack.c.bf16 %v2148, %v2148
          %v2150 = vld [vmem:[%s167] sm:$0xf]
          %v2151 = vld [vmem:[%s167 + $0x4] sm:$0xf]
          %v2152 = vld [vmem:[%s167 + $0x8] sm:$0xf]
          %v2153 = vld [vmem:[%s167 + $0xc] sm:$0xf]
          %v2154 = vld [vmem:[%s167 + $0x10] sm:$0xf]
          %v2155 = vld [vmem:[%s167 + $0x14] sm:$0xf]
          %v2156 = vld [vmem:[%s167 + $0x18] sm:$0xf]
          %v2157 = vld [vmem:[%s167 + $0x1c] sm:$0xf]
          %v2158 = vld [vmem:[%s167 + $0x20] sm:$0xf]
          %v2159 = vld [vmem:[%s167 + $0x24] sm:$0xf]
          %v2160 = vld [vmem:[%s167 + $0x28] sm:$0xf]
          %v2161 = vld [vmem:[%s167 + $0x2c] sm:$0xf]
          %v2162 = vld [vmem:[%s167 + $0x30] sm:$0xf]
          %v2163 = vld [vmem:[%s167 + $0x34] sm:$0xf]
          %v2164 = vld [vmem:[%s167 + $0x38] sm:$0xf]
          %v2165 = vld [vmem:[%s167 + $0x3c] sm:$0xf]
          %s2166 = scalar_lea.vmem %s167, 64 [#allocation3]
          %v2167 = vld [vmem:[%s2166] sm:$0xf]
          %v2168 = vld [vmem:[%s2166 + $0x4] sm:$0xf]
          %v2169 = vld [vmem:[%s2166 + $0x8] sm:$0xf]
          %v2170 = vld [vmem:[%s2166 + $0xc] sm:$0xf]
          %v2171 = vld [vmem:[%s2166 + $0x10] sm:$0xf]
          %v2172 = vld [vmem:[%s2166 + $0x14] sm:$0xf]
          %v2173 = vld [vmem:[%s2166 + $0x18] sm:$0xf]
          %v2174 = vld [vmem:[%s2166 + $0x1c] sm:$0xf]
          %v2175 = vld [vmem:[%s2166 + $0x20] sm:$0xf]
          %v2176 = vld [vmem:[%s2166 + $0x24] sm:$0xf]
          %v2177 = vld [vmem:[%s2166 + $0x28] sm:$0xf]
          %v2178 = vld [vmem:[%s2166 + $0x2c] sm:$0xf]
          %v2179 = vld [vmem:[%s2166 + $0x30] sm:$0xf]
          %v2180 = vld [vmem:[%s2166 + $0x34] sm:$0xf]
          %v2181 = vld [vmem:[%s2166 + $0x38] sm:$0xf]
          %v2182 = vld [vmem:[%s2166 + $0x3c] sm:$0xf]
          %v2199 = vunpack.c.l.b16 %v2167
          %v2200 = vunpack.c.l.b16 %v2168
          %v2201 = vunpack.c.l.b16 %v2169
          %v2202 = vunpack.c.l.b16 %v2170
          %v2203 = vunpack.c.l.b16 %v2171
          %v2204 = vunpack.c.l.b16 %v2172
          %v2205 = vunpack.c.l.b16 %v2173
          %v2206 = vunpack.c.l.b16 %v2174
          %v2207 = vunpack.c.l.b16 %v2175
          %v2208 = vunpack.c.l.b16 %v2176
          %v2209 = vunpack.c.l.b16 %v2177
          %v2210 = vunpack.c.l.b16 %v2178
          %v2211 = vunpack.c.l.b16 %v2179
          %v2212 = vunpack.c.l.b16 %v2180
          %v2213 = vunpack.c.l.b16 %v2181
          %v2214 = vunpack.c.l.b16 %v2182
          %v2215 = vpack.c.b16 %v2200, %v2199
          %v2216 = vpack.c.b16 %v2202, %v2201
          %v2217 = vpack.c.b16 %v2204, %v2203
          %v2218 = vpack.c.b16 %v2206, %v2205
          %v2219 = vpack.c.b16 %v2208, %v2207
          %v2220 = vpack.c.b16 %v2210, %v2209
          %v2221 = vpack.c.b16 %v2212, %v2211
          %v2222 = vpack.c.b16 %v2214, %v2213
          %2231 = vmatprep.subr.bf16.mxu0 0
          %2232 = vmatpush1.bf16.msra.mxu0 %v2215
          %2233 = vmatprep.subr.bf16.mxu0 0
          %2234 = vmatpush1.bf16.msra.mxu0 %v2216
          %2235 = vmatprep.subr.bf16.mxu0 0
          %2236 = vmatpush1.bf16.msra.mxu0 %v2217
          %2237 = vmatprep.subr.bf16.mxu0 0
          %2238 = vmatpush1.bf16.msra.mxu0 %v2218
          %2239 = vmatprep.subr.bf16.mxu0 0
          %2240 = vmatpush1.bf16.msra.mxu0 %v2219
          %2241 = vmatprep.subr.bf16.mxu0 0
          %2242 = vmatpush1.bf16.msra.mxu0 %v2220
          %2243 = vmatprep.subr.bf16.mxu0 0
          %2244 = vmatpush1.bf16.msra.mxu0 %v2221
          %2245 = vmatprep.subr.bf16.mxu0 0
          %2246 = vmatpush1.bf16.msra.mxu0 %v2222
          %2247 = vmatprep.subr.bf16.mxu0 0
          %2248 = vmatpush1.bf16.msra.mxu0 0
          %2249 = vmatprep.subr.bf16.mxu0 0
          %2250 = vmatpush1.bf16.msra.mxu0 0
          %2251 = vmatprep.subr.bf16.mxu0 0
          %2252 = vmatpush1.bf16.msra.mxu0 0
          %2253 = vmatprep.subr.bf16.mxu0 0
          %2254 = vmatpush1.bf16.msra.mxu0 0
          %2255 = vmatprep.subr.bf16.mxu0 0
          %2256 = vmatpush1.bf16.msra.mxu0 0
          %2257 = vmatprep.subr.bf16.mxu0 0
          %2258 = vmatpush1.bf16.msra.mxu0 0
          %2259 = vmatprep.subr.bf16.mxu0 0
          %2260 = vmatpush1.bf16.msra.mxu0 0
          %2261 = vmatprep.subr.bf16.mxu0 0
          %2262 = vmatpush1.bf16.msra.mxu0 0
          %2263 = vmatprep.mubr.bf16.mxu0 0
          %2264 = vmatmul.mubr.bf16.gmra.mrb[0].mxu0 %v2140
          %v2265 = vpop.f32.mrb[0].mxu0
          %v2266 = vadd.f32 0.0, %v2265
          %v2267 = vpop.f32.mrb[0].mxu0
          %v2268 = vpop.f32.mrb[0].mxu0
          %v2269 = vpop.f32.mrb[0].mxu0
          %2270 = vdwg.mxu0
          %s2271 = scalar_lea.vmem %s167, 128 [#allocation3]
          %v2272 = vld [vmem:[%s2271] sm:$0xf]
          %v2273 = vld [vmem:[%s2271 + $0x4] sm:$0xf]
          %v2274 = vld [vmem:[%s2271 + $0x8] sm:$0xf]
          %v2275 = vld [vmem:[%s2271 + $0xc] sm:$0xf]
          %v2276 = vld [vmem:[%s2271 + $0x10] sm:$0xf]
          %v2277 = vld [vmem:[%s2271 + $0x14] sm:$0xf]
          %v2278 = vld [vmem:[%s2271 + $0x18] sm:$0xf]
          %v2279 = vld [vmem:[%s2271 + $0x1c] sm:$0xf]
          %v2280 = vld [vmem:[%s2271 + $0x20] sm:$0xf]
          %v2281 = vld [vmem:[%s2271 + $0x24] sm:$0xf]
          %v2282 = vld [vmem:[%s2271 + $0x28] sm:$0xf]
          %v2283 = vld [vmem:[%s2271 + $0x2c] sm:$0xf]
          %v2284 = vld [vmem:[%s2271 + $0x30] sm:$0xf]
          %v2285 = vld [vmem:[%s2271 + $0x34] sm:$0xf]
          %v2286 = vld [vmem:[%s2271 + $0x38] sm:$0xf]
          %v2287 = vld [vmem:[%s2271 + $0x3c] sm:$0xf]
          %v2304 = vunpack.c.l.b16 %v2272
          %v2305 = vunpack.c.l.b16 %v2273
          %v2306 = vunpack.c.l.b16 %v2274
          %v2307 = vunpack.c.l.b16 %v2275
          %v2308 = vunpack.c.l.b16 %v2276
          %v2309 = vunpack.c.l.b16 %v2277
          %v2310 = vunpack.c.l.b16 %v2278
          %v2311 = vunpack.c.l.b16 %v2279
          %v2312 = vunpack.c.l.b16 %v2280
          %v2313 = vunpack.c.l.b16 %v2281
          %v2314 = vunpack.c.l.b16 %v2282
          %v2315 = vunpack.c.l.b16 %v2283
          %v2316 = vunpack.c.l.b16 %v2284
          %v2317 = vunpack.c.l.b16 %v2285
          %v2318 = vunpack.c.l.b16 %v2286
          %v2319 = vunpack.c.l.b16 %v2287
          %v2320 = vpack.c.b16 %v2305, %v2304
          %v2321 = vpack.c.b16 %v2307, %v2306
          %v2322 = vpack.c.b16 %v2309, %v2308
          %v2323 = vpack.c.b16 %v2311, %v2310
          %v2324 = vpack.c.b16 %v2313, %v2312
          %v2325 = vpack.c.b16 %v2315, %v2314
          %v2326 = vpack.c.b16 %v2317, %v2316
          %v2327 = vpack.c.b16 %v2319, %v2318
          %2336 = vmatprep.subr.bf16.mxu0 0
          %2337 = vmatpush1.bf16.msra.mxu0 %v2320
          %2338 = vmatprep.subr.bf16.mxu0 0
          %2339 = vmatpush1.bf16.msra.mxu0 %v2321
          %2340 = vmatprep.subr.bf16.mxu0 0
          %2341 = vmatpush1.bf16.msra.mxu0 %v2322
          %2342 = vmatprep.subr.bf16.mxu0 0
          %2343 = vmatpush1.bf16.msra.mxu0 %v2323
          %2344 = vmatprep.subr.bf16.mxu0 0
          %2345 = vmatpush1.bf16.msra.mxu0 %v2324
          %2346 = vmatprep.subr.bf16.mxu0 0
          %2347 = vmatpush1.bf16.msra.mxu0 %v2325
          %2348 = vmatprep.subr.bf16.mxu0 0
          %2349 = vmatpush1.bf16.msra.mxu0 %v2326
          %2350 = vmatprep.subr.bf16.mxu0 0
          %2351 = vmatpush1.bf16.msra.mxu0 %v2327
          %2352 = vmatprep.subr.bf16.mxu0 0
          %2353 = vmatpush1.bf16.msra.mxu0 0
          %2354 = vmatprep.subr.bf16.mxu0 0
          %2355 = vmatpush1.bf16.msra.mxu0 0
          %2356 = vmatprep.subr.bf16.mxu0 0
          %2357 = vmatpush1.bf16.msra.mxu0 0
          %2358 = vmatprep.subr.bf16.mxu0 0
          %2359 = vmatpush1.bf16.msra.mxu0 0
          %2360 = vmatprep.subr.bf16.mxu0 0
          %2361 = vmatpush1.bf16.msra.mxu0 0
          %2362 = vmatprep.subr.bf16.mxu0 0
          %2363 = vmatpush1.bf16.msra.mxu0 0
          %2364 = vmatprep.subr.bf16.mxu0 0
          %2365 = vmatpush1.bf16.msra.mxu0 0
          %2366 = vmatprep.subr.bf16.mxu0 0
          %2367 = vmatpush1.bf16.msra.mxu0 0
          %2368 = vmatprep.mubr.bf16.mxu0 0
          %2369 = vmatmul.mubr.bf16.gmra.mrb[0].mxu0 %v2149
          %v2370 = vpop.f32.mrb[0].mxu0
          %v2371 = vadd.f32 0.0, %v2370
          %v2372 = vpop.f32.mrb[0].mxu0
          %v2373 = vpop.f32.mrb[0].mxu0
          %v2374 = vpop.f32.mrb[0].mxu0
          %2375 = vdwg.mxu0
          %v2392 = vunpack.c.l.b16 %v2150
          %v2393 = vunpack.c.l.b16 %v2151
          %v2394 = vunpack.c.l.b16 %v2152
          %v2395 = vunpack.c.l.b16 %v2153
          %v2396 = vunpack.c.l.b16 %v2154
          %v2397 = vunpack.c.l.b16 %v2155
          %v2398 = vunpack.c.l.b16 %v2156
          %v2399 = vunpack.c.l.b16 %v2157
          %v2400 = vunpack.c.l.b16 %v2158
          %v2401 = vunpack.c.l.b16 %v2159
          %v2402 = vunpack.c.l.b16 %v2160
          %v2403 = vunpack.c.l.b16 %v2161
          %v2404 = vunpack.c.l.b16 %v2162
          %v2405 = vunpack.c.l.b16 %v2163
          %v2406 = vunpack.c.l.b16 %v2164
          %v2407 = vunpack.c.l.b16 %v2165
          %v2408 = vpack.c.b16 %v2393, %v2392
          %v2409 = vpack.c.b16 %v2395, %v2394
          %v2410 = vpack.c.b16 %v2397, %v2396
          %v2411 = vpack.c.b16 %v2399, %v2398
          %v2412 = vpack.c.b16 %v2401, %v2400
          %v2413 = vpack.c.b16 %v2403, %v2402
          %v2414 = vpack.c.b16 %v2405, %v2404
          %v2415 = vpack.c.b16 %v2407, %v2406
          %2424 = vmatprep.subr.bf16.mxu0 0
          %2425 = vmatpush1.bf16.msra.mxu0 %v2408
          %2426 = vmatprep.subr.bf16.mxu0 0
          %2427 = vmatpush1.bf16.msra.mxu0 %v2409
          %2428 = vmatprep.subr.bf16.mxu0 0
          %2429 = vmatpush1.bf16.msra.mxu0 %v2410
          %2430 = vmatprep.subr.bf16.mxu0 0
          %2431 = vmatpush1.bf16.msra.mxu0 %v2411
          %2432 = vmatprep.subr.bf16.mxu0 0
          %2433 = vmatpush1.bf16.msra.mxu0 %v2412
          %2434 = vmatprep.subr.bf16.mxu0 0
          %2435 = vmatpush1.bf16.msra.mxu0 %v2413
          %2436 = vmatprep.subr.bf16.mxu0 0
          %2437 = vmatpush1.bf16.msra.mxu0 %v2414
          %2438 = vmatprep.subr.bf16.mxu0 0
          %2439 = vmatpush1.bf16.msra.mxu0 %v2415
          %2440 = vmatprep.subr.bf16.mxu0 0
          %2441 = vmatpush1.bf16.msra.mxu0 0
          %2442 = vmatprep.subr.bf16.mxu0 0
          %2443 = vmatpush1.bf16.msra.mxu0 0
          %2444 = vmatprep.subr.bf16.mxu0 0
          %2445 = vmatpush1.bf16.msra.mxu0 0
          %2446 = vmatprep.subr.bf16.mxu0 0
          %2447 = vmatpush1.bf16.msra.mxu0 0
          %2448 = vmatprep.subr.bf16.mxu0 0
          %2449 = vmatpush1.bf16.msra.mxu0 0
          %2450 = vmatprep.subr.bf16.mxu0 0
          %2451 = vmatpush1.bf16.msra.mxu0 0
          %2452 = vmatprep.subr.bf16.mxu0 0
          %2453 = vmatpush1.bf16.msra.mxu0 0
          %2454 = vmatprep.subr.bf16.mxu0 0
          %2455 = vmatpush1.bf16.msra.mxu0 0
          %2456 = vmatprep.mubr.bf16.mxu0 0
          %2457 = vmatmul.mubr.bf16.gmra.mrb[0].mxu0 %v2131
          %v2458 = vpop.f32.mrb[0].mxu0
          %v2459 = vadd.f32 %v2266, %v2458
          %v2460 = vpop.f32.mrb[0].mxu0
          %v2461 = vpop.f32.mrb[0].mxu0
          %v2462 = vpop.f32.mrb[0].mxu0
          %2463 = vdwg.mxu0
          %v2464 = vadd.f32 %v2459, %v2371
          %v2465 = vld [vmem:[%s191] sm:$0x1]
          %v2467 = vlaneseq
          %v2468 = vshrl.u32 %v2467, 7
          %v2469 = vsub.s32 0, %v2468
          %v2470 = vrot.slane %v2465, %v2469
          %v2472 = vadd.f32 %v2464, %v2470
          %v2473 = vsub.f32 0.0, %v2472
          %v2474 = vmul.f32 %v2473, 1.442695
          %v2475 = vpow.pop %v2474
          %v2476 = vadd.f32 %v2475, 1.0
          %v2477 = vrcp.pop %v2476
          %v2478 = vmul.f32 %v2472, %v2477
          %2479 = vst [vmem:[#allocation2 + $0x8] sm:$0xf] %v2478
        $region60: #{forward.1} parent=31 // pred_fallthru
          _
        %p2480 = scmp.eq.s32.totalorder %s17, 6
        // Predicated region
        $region61: #{forward.1} parent=31 // pred_check
          %p2481 = pneg %p2480
        $region62: #{forward.1} parent=31 // pred_check_branch
          %2483 = sbr.rel (%p2481) target = $region64
        $region63: #{forward.1} parent=31 // pred_region
          %v2484 = vlaneseq
          %v2485 = vshrl.u32 %v2484, 7
          %v2486 = vld [vmem:[#allocation2 + $0x7] sm:$0xf]
          %vm2487 = vcmp.eq.s32.totalorder %v2485, 0
          %vm2488 = vcmp.eq.s32.totalorder %v2485, 2
          %vm2489 = vmor %vm2487, %vm2488
          %v2490 = vsel %vm2489, 0.0, %v2486
          %v2491 = vpack.c.bf16 %v2490, %v2490
          %v2492 = vld [vmem:[#allocation2 + $0x8] sm:$0xf]
          %v2493 = vpack.c.bf16 %v2492, %v2492
          %v2494 = vld [vmem:[#allocation2 + $0x9] sm:$0xf]
          %vm2495 = vcmp.eq.s32.totalorder %v2485, 1
          %vm2496 = vcmp.eq.s32.totalorder %v2485, 3
          %vm2497 = vmor %vm2495, %vm2496
          %v2498 = vsel %vm2497, 0.0, %v2494
          %v2499 = vpack.c.bf16 %v2498, %v2498
          %v2500 = vld [vmem:[%s167] sm:$0xf]
          %v2501 = vld [vmem:[%s167 + $0x4] sm:$0xf]
          %v2502 = vld [vmem:[%s167 + $0x8] sm:$0xf]
          %v2503 = vld [vmem:[%s167 + $0xc] sm:$0xf]
          %v2504 = vld [vmem:[%s167 + $0x10] sm:$0xf]
          %v2505 = vld [vmem:[%s167 + $0x14] sm:$0xf]
          %v2506 = vld [vmem:[%s167 + $0x18] sm:$0xf]
          %v2507 = vld [vmem:[%s167 + $0x1c] sm:$0xf]
          %v2508 = vld [vmem:[%s167 + $0x20] sm:$0xf]
          %v2509 = vld [vmem:[%s167 + $0x24] sm:$0xf]
          %v2510 = vld [vmem:[%s167 + $0x28] sm:$0xf]
          %v2511 = vld [vmem:[%s167 + $0x2c] sm:$0xf]
          %v2512 = vld [vmem:[%s167 + $0x30] sm:$0xf]
          %v2513 = vld [vmem:[%s167 + $0x34] sm:$0xf]
          %v2514 = vld [vmem:[%s167 + $0x38] sm:$0xf]
          %v2515 = vld [vmem:[%s167 + $0x3c] sm:$0xf]
          %s2516 = scalar_lea.vmem %s167, 64 [#allocation3]
          %v2517 = vld [vmem:[%s2516] sm:$0xf]
          %v2518 = vld [vmem:[%s2516 + $0x4] sm:$0xf]
          %v2519 = vld [vmem:[%s2516 + $0x8] sm:$0xf]
          %v2520 = vld [vmem:[%s2516 + $0xc] sm:$0xf]
          %v2521 = vld [vmem:[%s2516 + $0x10] sm:$0xf]
          %v2522 = vld [vmem:[%s2516 + $0x14] sm:$0xf]
          %v2523 = vld [vmem:[%s2516 + $0x18] sm:$0xf]
          %v2524 = vld [vmem:[%s2516 + $0x1c] sm:$0xf]
          %v2525 = vld [vmem:[%s2516 + $0x20] sm:$0xf]
          %v2526 = vld [vmem:[%s2516 + $0x24] sm:$0xf]
          %v2527 = vld [vmem:[%s2516 + $0x28] sm:$0xf]
          %v2528 = vld [vmem:[%s2516 + $0x2c] sm:$0xf]
          %v2529 = vld [vmem:[%s2516 + $0x30] sm:$0xf]
          %v2530 = vld [vmem:[%s2516 + $0x34] sm:$0xf]
          %v2531 = vld [vmem:[%s2516 + $0x38] sm:$0xf]
          %v2532 = vld [vmem:[%s2516 + $0x3c] sm:$0xf]
          %v2549 = vunpack.c.l.b16 %v2517
          %v2550 = vunpack.c.l.b16 %v2518
          %v2551 = vunpack.c.l.b16 %v2519
          %v2552 = vunpack.c.l.b16 %v2520
          %v2553 = vunpack.c.l.b16 %v2521
          %v2554 = vunpack.c.l.b16 %v2522
          %v2555 = vunpack.c.l.b16 %v2523
          %v2556 = vunpack.c.l.b16 %v2524
          %v2557 = vunpack.c.l.b16 %v2525
          %v2558 = vunpack.c.l.b16 %v2526
          %v2559 = vunpack.c.l.b16 %v2527
          %v2560 = vunpack.c.l.b16 %v2528
          %v2561 = vunpack.c.l.b16 %v2529
          %v2562 = vunpack.c.l.b16 %v2530
          %v2563 = vunpack.c.l.b16 %v2531
          %v2564 = vunpack.c.l.b16 %v2532
          %v2565 = vpack.c.b16 %v2550, %v2549
          %v2566 = vpack.c.b16 %v2552, %v2551
          %v2567 = vpack.c.b16 %v2554, %v2553
          %v2568 = vpack.c.b16 %v2556, %v2555
          %v2569 = vpack.c.b16 %v2558, %v2557
          %v2570 = vpack.c.b16 %v2560, %v2559
          %v2571 = vpack.c.b16 %v2562, %v2561
          %v2572 = vpack.c.b16 %v2564, %v2563
          %2581 = vmatprep.subr.bf16.mxu0 0
          %2582 = vmatpush1.bf16.msra.mxu0 %v2565
          %2583 = vmatprep.subr.bf16.mxu0 0
          %2584 = vmatpush1.bf16.msra.mxu0 %v2566
          %2585 = vmatprep.subr.bf16.mxu0 0
          %2586 = vmatpush1.bf16.msra.mxu0 %v2567
          %2587 = vmatprep.subr.bf16.mxu0 0
          %2588 = vmatpush1.bf16.msra.mxu0 %v2568
          %2589 = vmatprep.subr.bf16.mxu0 0
          %2590 = vmatpush1.bf16.msra.mxu0 %v2569
          %2591 = vmatprep.subr.bf16.mxu0 0
          %2592 = vmatpush1.bf16.msra.mxu0 %v2570
          %2593 = vmatprep.subr.bf16.mxu0 0
          %2594 = vmatpush1.bf16.msra.mxu0 %v2571
          %2595 = vmatprep.subr.bf16.mxu0 0
          %2596 = vmatpush1.bf16.msra.mxu0 %v2572
          %2597 = vmatprep.subr.bf16.mxu0 0
          %2598 = vmatpush1.bf16.msra.mxu0 0
          %2599 = vmatprep.subr.bf16.mxu0 0
          %2600 = vmatpush1.bf16.msra.mxu0 0
          %2601 = vmatprep.subr.bf16.mxu0 0
          %2602 = vmatpush1.bf16.msra.mxu0 0
          %2603 = vmatprep.subr.bf16.mxu0 0
          %2604 = vmatpush1.bf16.msra.mxu0 0
          %2605 = vmatprep.subr.bf16.mxu0 0
          %2606 = vmatpush1.bf16.msra.mxu0 0
          %2607 = vmatprep.subr.bf16.mxu0 0
          %2608 = vmatpush1.bf16.msra.mxu0 0
          %2609 = vmatprep.subr.bf16.mxu0 0
          %2610 = vmatpush1.bf16.msra.mxu0 0
          %2611 = vmatprep.subr.bf16.mxu0 0
          %2612 = vmatpush1.bf16.msra.mxu0 0
          %2613 = vmatprep.mubr.bf16.mxu0 0
          %2614 = vmatmul.mubr.bf16.gmra.mrb[0].mxu0 %v2493
          %v2615 = vpop.f32.mrb[0].mxu0
          %v2616 = vadd.f32 0.0, %v2615
          %v2617 = vpop.f32.mrb[0].mxu0
          %v2618 = vpop.f32.mrb[0].mxu0
          %v2619 = vpop.f32.mrb[0].mxu0
          %2620 = vdwg.mxu0
          %s2621 = scalar_lea.vmem %s167, 128 [#allocation3]
          %v2622 = vld [vmem:[%s2621] sm:$0xf]
          %v2623 = vld [vmem:[%s2621 + $0x4] sm:$0xf]
          %v2624 = vld [vmem:[%s2621 + $0x8] sm:$0xf]
          %v2625 = vld [vmem:[%s2621 + $0xc] sm:$0xf]
          %v2626 = vld [vmem:[%s2621 + $0x10] sm:$0xf]
          %v2627 = vld [vmem:[%s2621 + $0x14] sm:$0xf]
          %v2628 = vld [vmem:[%s2621 + $0x18] sm:$0xf]
          %v2629 = vld [vmem:[%s2621 + $0x1c] sm:$0xf]
          %v2630 = vld [vmem:[%s2621 + $0x20] sm:$0xf]
          %v2631 = vld [vmem:[%s2621 + $0x24] sm:$0xf]
          %v2632 = vld [vmem:[%s2621 + $0x28] sm:$0xf]
          %v2633 = vld [vmem:[%s2621 + $0x2c] sm:$0xf]
          %v2634 = vld [vmem:[%s2621 + $0x30] sm:$0xf]
          %v2635 = vld [vmem:[%s2621 + $0x34] sm:$0xf]
          %v2636 = vld [vmem:[%s2621 + $0x38] sm:$0xf]
          %v2637 = vld [vmem:[%s2621 + $0x3c] sm:$0xf]
          %v2654 = vunpack.c.l.b16 %v2622
          %v2655 = vunpack.c.l.b16 %v2623
          %v2656 = vunpack.c.l.b16 %v2624
          %v2657 = vunpack.c.l.b16 %v2625
          %v2658 = vunpack.c.l.b16 %v2626
          %v2659 = vunpack.c.l.b16 %v2627
          %v2660 = vunpack.c.l.b16 %v2628
          %v2661 = vunpack.c.l.b16 %v2629
          %v2662 = vunpack.c.l.b16 %v2630
          %v2663 = vunpack.c.l.b16 %v2631
          %v2664 = vunpack.c.l.b16 %v2632
          %v2665 = vunpack.c.l.b16 %v2633
          %v2666 = vunpack.c.l.b16 %v2634
          %v2667 = vunpack.c.l.b16 %v2635
          %v2668 = vunpack.c.l.b16 %v2636
          %v2669 = vunpack.c.l.b16 %v2637
          %v2670 = vpack.c.b16 %v2655, %v2654
          %v2671 = vpack.c.b16 %v2657, %v2656
          %v2672 = vpack.c.b16 %v2659, %v2658
          %v2673 = vpack.c.b16 %v2661, %v2660
          %v2674 = vpack.c.b16 %v2663, %v2662
          %v2675 = vpack.c.b16 %v2665, %v2664
          %v2676 = vpack.c.b16 %v2667, %v2666
          %v2677 = vpack.c.b16 %v2669, %v2668
          %2686 = vmatprep.subr.bf16.mxu0 0
          %2687 = vmatpush1.bf16.msra.mxu0 %v2670
          %2688 = vmatprep.subr.bf16.mxu0 0
          %2689 = vmatpush1.bf16.msra.mxu0 %v2671
          %2690 = vmatprep.subr.bf16.mxu0 0
          %2691 = vmatpush1.bf16.msra.mxu0 %v2672
          %2692 = vmatprep.subr.bf16.mxu0 0
          %2693 = vmatpush1.bf16.msra.mxu0 %v2673
          %2694 = vmatprep.subr.bf16.mxu0 0
          %2695 = vmatpush1.bf16.msra.mxu0 %v2674
          %2696 = vmatprep.subr.bf16.mxu0 0
          %2697 = vmatpush1.bf16.msra.mxu0 %v2675
          %2698 = vmatprep.subr.bf16.mxu0 0
          %2699 = vmatpush1.bf16.msra.mxu0 %v2676
          %2700 = vmatprep.subr.bf16.mxu0 0
          %2701 = vmatpush1.bf16.msra.mxu0 %v2677
          %2702 = vmatprep.subr.bf16.mxu0 0
          %2703 = vmatpush1.bf16.msra.mxu0 0
          %2704 = vmatprep.subr.bf16.mxu0 0
          %2705 = vmatpush1.bf16.msra.mxu0 0
          %2706 = vmatprep.subr.bf16.mxu0 0
          %2707 = vmatpush1.bf16.msra.mxu0 0
          %2708 = vmatprep.subr.bf16.mxu0 0
          %2709 = vmatpush1.bf16.msra.mxu0 0
          %2710 = vmatprep.subr.bf16.mxu0 0
          %2711 = vmatpush1.bf16.msra.mxu0 0
          %2712 = vmatprep.subr.bf16.mxu0 0
          %2713 = vmatpush1.bf16.msra.mxu0 0
          %2714 = vmatprep.subr.bf16.mxu0 0
          %2715 = vmatpush1.bf16.msra.mxu0 0
          %2716 = vmatprep.subr.bf16.mxu0 0
          %2717 = vmatpush1.bf16.msra.mxu0 0
          %2718 = vmatprep.mubr.bf16.mxu0 0
          %2719 = vmatmul.mubr.bf16.gmra.mrb[0].mxu0 %v2499
          %v2720 = vpop.f32.mrb[0].mxu0
          %v2721 = vadd.f32 0.0, %v2720
          %v2722 = vpop.f32.mrb[0].mxu0
          %v2723 = vpop.f32.mrb[0].mxu0
          %v2724 = vpop.f32.mrb[0].mxu0
          %2725 = vdwg.mxu0
          %v2742 = vunpack.c.l.b16 %v2500
          %v2743 = vunpack.c.l.b16 %v2501
          %v2744 = vunpack.c.l.b16 %v2502
          %v2745 = vunpack.c.l.b16 %v2503
          %v2746 = vunpack.c.l.b16 %v2504
          %v2747 = vunpack.c.l.b16 %v2505
          %v2748 = vunpack.c.l.b16 %v2506
          %v2749 = vunpack.c.l.b16 %v2507
          %v2750 = vunpack.c.l.b16 %v2508
          %v2751 = vunpack.c.l.b16 %v2509
          %v2752 = vunpack.c.l.b16 %v2510
          %v2753 = vunpack.c.l.b16 %v2511
          %v2754 = vunpack.c.l.b16 %v2512
          %v2755 = vunpack.c.l.b16 %v2513
          %v2756 = vunpack.c.l.b16 %v2514
          %v2757 = vunpack.c.l.b16 %v2515
          %v2758 = vpack.c.b16 %v2743, %v2742
          %v2759 = vpack.c.b16 %v2745, %v2744
          %v2760 = vpack.c.b16 %v2747, %v2746
          %v2761 = vpack.c.b16 %v2749, %v2748
          %v2762 = vpack.c.b16 %v2751, %v2750
          %v2763 = vpack.c.b16 %v2753, %v2752
          %v2764 = vpack.c.b16 %v2755, %v2754
          %v2765 = vpack.c.b16 %v2757, %v2756
          %2774 = vmatprep.subr.bf16.mxu0 0
          %2775 = vmatpush1.bf16.msra.mxu0 %v2758
          %2776 = vmatprep.subr.bf16.mxu0 0
          %2777 = vmatpush1.bf16.msra.mxu0 %v2759
          %2778 = vmatprep.subr.bf16.mxu0 0
          %2779 = vmatpush1.bf16.msra.mxu0 %v2760
          %2780 = vmatprep.subr.bf16.mxu0 0
          %2781 = vmatpush1.bf16.msra.mxu0 %v2761
          %2782 = vmatprep.subr.bf16.mxu0 0
          %2783 = vmatpush1.bf16.msra.mxu0 %v2762
          %2784 = vmatprep.subr.bf16.mxu0 0
          %2785 = vmatpush1.bf16.msra.mxu0 %v2763
          %2786 = vmatprep.subr.bf16.mxu0 0
          %2787 = vmatpush1.bf16.msra.mxu0 %v2764
          %2788 = vmatprep.subr.bf16.mxu0 0
          %2789 = vmatpush1.bf16.msra.mxu0 %v2765
          %2790 = vmatprep.subr.bf16.mxu0 0
          %2791 = vmatpush1.bf16.msra.mxu0 0
          %2792 = vmatprep.subr.bf16.mxu0 0
          %2793 = vmatpush1.bf16.msra.mxu0 0
          %2794 = vmatprep.subr.bf16.mxu0 0
          %2795 = vmatpush1.bf16.msra.mxu0 0
          %2796 = vmatprep.subr.bf16.mxu0 0
          %2797 = vmatpush1.bf16.msra.mxu0 0
          %2798 = vmatprep.subr.bf16.mxu0 0
          %2799 = vmatpush1.bf16.msra.mxu0 0
          %2800 = vmatprep.subr.bf16.mxu0 0
          %2801 = vmatpush1.bf16.msra.mxu0 0
          %2802 = vmatprep.subr.bf16.mxu0 0
          %2803 = vmatpush1.bf16.msra.mxu0 0
          %2804 = vmatprep.subr.bf16.mxu0 0
          %2805 = vmatpush1.bf16.msra.mxu0 0
          %2806 = vmatprep.mubr.bf16.mxu0 0
          %2807 = vmatmul.mubr.bf16.gmra.mrb[0].mxu0 %v2491
          %v2808 = vpop.f32.mrb[0].mxu0
          %v2809 = vadd.f32 %v2616, %v2808
          %v2810 = vpop.f32.mrb[0].mxu0
          %v2811 = vpop.f32.mrb[0].mxu0
          %v2812 = vpop.f32.mrb[0].mxu0
          %2813 = vdwg.mxu0
          %v2814 = vadd.f32 %v2809, %v2721
          %v2815 = vld [vmem:[%s191] sm:$0x1]
          %v2817 = vlaneseq
          %v2818 = vshrl.u32 %v2817, 7
          %v2819 = vsub.s32 0, %v2818
          %v2820 = vrot.slane %v2815, %v2819
          %v2822 = vadd.f32 %v2814, %v2820
          %v2823 = vsub.f32 0.0, %v2822
          %v2824 = vmul.f32 %v2823, 1.442695
          %v2825 = vpow.pop %v2824
          %v2826 = vadd.f32 %v2825, 1.0
          %v2827 = vrcp.pop %v2826
          %v2828 = vmul.f32 %v2822, %v2827
          %2829 = vst [vmem:[#allocation2 + $0x8] sm:$0xf] %v2828
        $region64: #{forward.1} parent=31 // pred_fallthru
          _
        %p2830 = scmp.eq.s32.totalorder %s17, 7
        // Predicated region
        $region65: #{forward.1} parent=31 // pred_check
          %p2831 = pneg %p2830
        $region66: #{forward.1} parent=31 // pred_check_branch
          %2833 = sbr.rel (%p2831) target = $region68
        $region67: #{forward.1} parent=31 // pred_region
          %v2834 = vlaneseq
          %v2835 = vshrl.u32 %v2834, 7
          %s2836 = scalar_lea.vmem [#allocation2], 7
          %v2837 = vld [vmem:[%s2836] ss:$2 sm:$0x1]
          %s2838 = scalar_lea.vmem [#allocation2], 9
          %v2839 = vld [vmem:[%s2838] ss:$2 sm:$0x1]
          %v2841 = vrot.slane %v2839, 7
          %vm2843 = vcmask 1040384
          %v2844 = vsel %vm2843, %v2837, %v2841
          %vm2845 = vcmp.eq.s32.totalorder %v2835, 0
          %vm2846 = vcmp.eq.s32.totalorder %v2835, 1
          %vm2847 = vmor %vm2845, %vm2846
          %v2848 = vsel %vm2847, 0.0, %v2844
          %v2849 = vpack.c.bf16 %v2848, %v2848
          %s2850 = scalar_lea.vmem [#allocation2], 8
          %v2851 = vld [vmem:[%s2850] ss:$2 sm:$0x1]
          %s2852 = scalar_lea.vmem [#allocation2], 10
          %v2853 = vld [vmem:[%s2852] ss:$2 sm:$0x1]
          %v2855 = vrot.slane %v2853, 7
          %v2857 = vsel %vm2843, %v2851, %v2855
          %v2858 = vpack.c.bf16 %v2857, %v2857
          %s2859 = scalar_lea.vmem [#allocation2], 11
          %v2860 = vld [vmem:[%s2859] ss:$2 sm:$0x1]
          %v2862 = vrot.slane %v2860, 7
          %v2864 = vsel %vm2843, %v2839, %v2862
          %v2865 = vpack.c.bf16 %v2864, %v2864
          %v2866 = vld [vmem:[%s167] sm:$0xf]
          %v2867 = vld [vmem:[%s167 + $0x4] sm:$0xf]
          %v2868 = vld [vmem:[%s167 + $0x8] sm:$0xf]
          %v2869 = vld [vmem:[%s167 + $0xc] sm:$0xf]
          %v2870 = vld [vmem:[%s167 + $0x10] sm:$0xf]
          %v2871 = vld [vmem:[%s167 + $0x14] sm:$0xf]
          %v2872 = vld [vmem:[%s167 + $0x18] sm:$0xf]
          %v2873 = vld [vmem:[%s167 + $0x1c] sm:$0xf]
          %v2874 = vld [vmem:[%s167 + $0x20] sm:$0xf]
          %v2875 = vld [vmem:[%s167 + $0x24] sm:$0xf]
          %v2876 = vld [vmem:[%s167 + $0x28] sm:$0xf]
          %v2877 = vld [vmem:[%s167 + $0x2c] sm:$0xf]
          %v2878 = vld [vmem:[%s167 + $0x30] sm:$0xf]
          %v2879 = vld [vmem:[%s167 + $0x34] sm:$0xf]
          %v2880 = vld [vmem:[%s167 + $0x38] sm:$0xf]
          %v2881 = vld [vmem:[%s167 + $0x3c] sm:$0xf]
          %s2882 = scalar_lea.vmem %s167, 64 [#allocation3]
          %v2883 = vld [vmem:[%s2882] sm:$0xf]
          %v2884 = vld [vmem:[%s2882 + $0x4] sm:$0xf]
          %v2885 = vld [vmem:[%s2882 + $0x8] sm:$0xf]
          %v2886 = vld [vmem:[%s2882 + $0xc] sm:$0xf]
          %v2887 = vld [vmem:[%s2882 + $0x10] sm:$0xf]
          %v2888 = vld [vmem:[%s2882 + $0x14] sm:$0xf]
          %v2889 = vld [vmem:[%s2882 + $0x18] sm:$0xf]
          %v2890 = vld [vmem:[%s2882 + $0x1c] sm:$0xf]
          %v2891 = vld [vmem:[%s2882 + $0x20] sm:$0xf]
          %v2892 = vld [vmem:[%s2882 + $0x24] sm:$0xf]
          %v2893 = vld [vmem:[%s2882 + $0x28] sm:$0xf]
          %v2894 = vld [vmem:[%s2882 + $0x2c] sm:$0xf]
          %v2895 = vld [vmem:[%s2882 + $0x30] sm:$0xf]
          %v2896 = vld [vmem:[%s2882 + $0x34] sm:$0xf]
          %v2897 = vld [vmem:[%s2882 + $0x38] sm:$0xf]
          %v2898 = vld [vmem:[%s2882 + $0x3c] sm:$0xf]
          %v2915 = vunpack.c.l.b16 %v2883
          %v2916 = vunpack.c.l.b16 %v2884
          %v2917 = vunpack.c.l.b16 %v2885
          %v2918 = vunpack.c.l.b16 %v2886
          %v2919 = vunpack.c.l.b16 %v2887
          %v2920 = vunpack.c.l.b16 %v2888
          %v2921 = vunpack.c.l.b16 %v2889
          %v2922 = vunpack.c.l.b16 %v2890
          %v2923 = vunpack.c.l.b16 %v2891
          %v2924 = vunpack.c.l.b16 %v2892
          %v2925 = vunpack.c.l.b16 %v2893
          %v2926 = vunpack.c.l.b16 %v2894
          %v2927 = vunpack.c.l.b16 %v2895
          %v2928 = vunpack.c.l.b16 %v2896
          %v2929 = vunpack.c.l.b16 %v2897
          %v2930 = vunpack.c.l.b16 %v2898
          %v2931 = vpack.c.b16 %v2916, %v2915
          %v2932 = vpack.c.b16 %v2918, %v2917
          %v2933 = vpack.c.b16 %v2920, %v2919
          %v2934 = vpack.c.b16 %v2922, %v2921
          %v2935 = vpack.c.b16 %v2924, %v2923
          %v2936 = vpack.c.b16 %v2926, %v2925
          %v2937 = vpack.c.b16 %v2928, %v2927
          %v2938 = vpack.c.b16 %v2930, %v2929
          %2947 = vmatprep.subr.bf16.mxu0 0
          %2948 = vmatpush1.bf16.msra.mxu0 %v2931
          %2949 = vmatprep.subr.bf16.mxu0 0
          %2950 = vmatpush1.bf16.msra.mxu0 %v2932
          %2951 = vmatprep.subr.bf16.mxu0 0
          %2952 = vmatpush1.bf16.msra.mxu0 %v2933
          %2953 = vmatprep.subr.bf16.mxu0 0
          %2954 = vmatpush1.bf16.msra.mxu0 %v2934
          %2955 = vmatprep.subr.bf16.mxu0 0
          %2956 = vmatpush1.bf16.msra.mxu0 %v2935
          %2957 = vmatprep.subr.bf16.mxu0 0
          %2958 = vmatpush1.bf16.msra.mxu0 %v2936
          %2959 = vmatprep.subr.bf16.mxu0 0
          %2960 = vmatpush1.bf16.msra.mxu0 %v2937
          %2961 = vmatprep.subr.bf16.mxu0 0
          %2962 = vmatpush1.bf16.msra.mxu0 %v2938
          %2963 = vmatprep.subr.bf16.mxu0 0
          %2964 = vmatpush1.bf16.msra.mxu0 0
          %2965 = vmatprep.subr.bf16.mxu0 0
          %2966 = vmatpush1.bf16.msra.mxu0 0
          %2967 = vmatprep.subr.bf16.mxu0 0
          %2968 = vmatpush1.bf16.msra.mxu0 0
          %2969 = vmatprep.subr.bf16.mxu0 0
          %2970 = vmatpush1.bf16.msra.mxu0 0
          %2971 = vmatprep.subr.bf16.mxu0 0
          %2972 = vmatpush1.bf16.msra.mxu0 0
          %2973 = vmatprep.subr.bf16.mxu0 0
          %2974 = vmatpush1.bf16.msra.mxu0 0
          %2975 = vmatprep.subr.bf16.mxu0 0
          %2976 = vmatpush1.bf16.msra.mxu0 0
          %2977 = vmatprep.subr.bf16.mxu0 0
          %2978 = vmatpush1.bf16.msra.mxu0 0
          %2979 = vmatprep.mubr.bf16.mxu0 0
          %2980 = vmatmul.mubr.bf16.gmra.mrb[0].mxu0 %v2858
          %v2981 = vpop.f32.mrb[0].mxu0
          %v2982 = vadd.f32 0.0, %v2981
          %v2983 = vpop.f32.mrb[0].mxu0
          %v2984 = vpop.f32.mrb[0].mxu0
          %v2985 = vpop.f32.mrb[0].mxu0
          %2986 = vdwg.mxu0
          %s2987 = scalar_lea.vmem %s167, 128 [#allocation3]
          %v2988 = vld [vmem:[%s2987] sm:$0xf]
          %v2989 = vld [vmem:[%s2987 + $0x4] sm:$0xf]
          %v2990 = vld [vmem:[%s2987 + $0x8] sm:$0xf]
          %v2991 = vld [vmem:[%s2987 + $0xc] sm:$0xf]
          %v2992 = vld [vmem:[%s2987 + $0x10] sm:$0xf]
          %v2993 = vld [vmem:[%s2987 + $0x14] sm:$0xf]
          %v2994 = vld [vmem:[%s2987 + $0x18] sm:$0xf]
          %v2995 = vld [vmem:[%s2987 + $0x1c] sm:$0xf]
          %v2996 = vld [vmem:[%s2987 + $0x20] sm:$0xf]
          %v2997 = vld [vmem:[%s2987 + $0x24] sm:$0xf]
          %v2998 = vld [vmem:[%s2987 + $0x28] sm:$0xf]
          %v2999 = vld [vmem:[%s2987 + $0x2c] sm:$0xf]
          %v3000 = vld [vmem:[%s2987 + $0x30] sm:$0xf]
          %v3001 = vld [vmem:[%s2987 + $0x34] sm:$0xf]
          %v3002 = vld [vmem:[%s2987 + $0x38] sm:$0xf]
          %v3003 = vld [vmem:[%s2987 + $0x3c] sm:$0xf]
          %v3020 = vunpack.c.l.b16 %v2988
          %v3021 = vunpack.c.l.b16 %v2989
          %v3022 = vunpack.c.l.b16 %v2990
          %v3023 = vunpack.c.l.b16 %v2991
          %v3024 = vunpack.c.l.b16 %v2992
          %v3025 = vunpack.c.l.b16 %v2993
          %v3026 = vunpack.c.l.b16 %v2994
          %v3027 = vunpack.c.l.b16 %v2995
          %v3028 = vunpack.c.l.b16 %v2996
          %v3029 = vunpack.c.l.b16 %v2997
          %v3030 = vunpack.c.l.b16 %v2998
          %v3031 = vunpack.c.l.b16 %v2999
          %v3032 = vunpack.c.l.b16 %v3000
          %v3033 = vunpack.c.l.b16 %v3001
          %v3034 = vunpack.c.l.b16 %v3002
          %v3035 = vunpack.c.l.b16 %v3003
          %v3036 = vpack.c.b16 %v3021, %v3020
          %v3037 = vpack.c.b16 %v3023, %v3022
          %v3038 = vpack.c.b16 %v3025, %v3024
          %v3039 = vpack.c.b16 %v3027, %v3026
          %v3040 = vpack.c.b16 %v3029, %v3028
          %v3041 = vpack.c.b16 %v3031, %v3030
          %v3042 = vpack.c.b16 %v3033, %v3032
          %v3043 = vpack.c.b16 %v3035, %v3034
          %3052 = vmatprep.subr.bf16.mxu0 0
          %3053 = vmatpush1.bf16.msra.mxu0 %v3036
          %3054 = vmatprep.subr.bf16.mxu0 0
          %3055 = vmatpush1.bf16.msra.mxu0 %v3037
          %3056 = vmatprep.subr.bf16.mxu0 0
          %3057 = vmatpush1.bf16.msra.mxu0 %v3038
          %3058 = vmatprep.subr.bf16.mxu0 0
          %3059 = vmatpush1.bf16.msra.mxu0 %v3039
          %3060 = vmatprep.subr.bf16.mxu0 0
          %3061 = vmatpush1.bf16.msra.mxu0 %v3040
          %3062 = vmatprep.subr.bf16.mxu0 0
          %3063 = vmatpush1.bf16.msra.mxu0 %v3041
          %3064 = vmatprep.subr.bf16.mxu0 0
          %3065 = vmatpush1.bf16.msra.mxu0 %v3042
          %3066 = vmatprep.subr.bf16.mxu0 0
          %3067 = vmatpush1.bf16.msra.mxu0 %v3043
          %3068 = vmatprep.subr.bf16.mxu0 0
          %3069 = vmatpush1.bf16.msra.mxu0 0
          %3070 = vmatprep.subr.bf16.mxu0 0
          %3071 = vmatpush1.bf16.msra.mxu0 0
          %3072 = vmatprep.subr.bf16.mxu0 0
          %3073 = vmatpush1.bf16.msra.mxu0 0
          %3074 = vmatprep.subr.bf16.mxu0 0
          %3075 = vmatpush1.bf16.msra.mxu0 0
          %3076 = vmatprep.subr.bf16.mxu0 0
          %3077 = vmatpush1.bf16.msra.mxu0 0
          %3078 = vmatprep.subr.bf16.mxu0 0
          %3079 = vmatpush1.bf16.msra.mxu0 0
          %3080 = vmatprep.subr.bf16.mxu0 0
          %3081 = vmatpush1.bf16.msra.mxu0 0
          %3082 = vmatprep.subr.bf16.mxu0 0
          %3083 = vmatpush1.bf16.msra.mxu0 0
          %3084 = vmatprep.mubr.bf16.mxu0 0
          %3085 = vmatmul.mubr.bf16.gmra.mrb[0].mxu0 %v2865
          %v3086 = vpop.f32.mrb[0].mxu0
          %v3087 = vadd.f32 0.0, %v3086
          %v3088 = vpop.f32.mrb[0].mxu0
          %v3089 = vpop.f32.mrb[0].mxu0
          %v3090 = vpop.f32.mrb[0].mxu0
          %3091 = vdwg.mxu0
          %v3108 = vunpack.c.l.b16 %v2866
          %v3109 = vunpack.c.l.b16 %v2867
          %v3110 = vunpack.c.l.b16 %v2868
          %v3111 = vunpack.c.l.b16 %v2869
          %v3112 = vunpack.c.l.b16 %v2870
          %v3113 = vunpack.c.l.b16 %v2871
          %v3114 = vunpack.c.l.b16 %v2872
          %v3115 = vunpack.c.l.b16 %v2873
          %v3116 = vunpack.c.l.b16 %v2874
          %v3117 = vunpack.c.l.b16 %v2875
          %v3118 = vunpack.c.l.b16 %v2876
          %v3119 = vunpack.c.l.b16 %v2877
          %v3120 = vunpack.c.l.b16 %v2878
          %v3121 = vunpack.c.l.b16 %v2879
          %v3122 = vunpack.c.l.b16 %v2880
          %v3123 = vunpack.c.l.b16 %v2881
          %v3124 = vpack.c.b16 %v3109, %v3108
          %v3125 = vpack.c.b16 %v3111, %v3110
          %v3126 = vpack.c.b16 %v3113, %v3112
          %v3127 = vpack.c.b16 %v3115, %v3114
          %v3128 = vpack.c.b16 %v3117, %v3116
          %v3129 = vpack.c.b16 %v3119, %v3118
          %v3130 = vpack.c.b16 %v3121, %v3120
          %v3131 = vpack.c.b16 %v3123, %v3122
          %3140 = vmatprep.subr.bf16.mxu0 0
          %3141 = vmatpush1.bf16.msra.mxu0 %v3124
          %3142 = vmatprep.subr.bf16.mxu0 0
          %3143 = vmatpush1.bf16.msra.mxu0 %v3125
          %3144 = vmatprep.subr.bf16.mxu0 0
          %3145 = vmatpush1.bf16.msra.mxu0 %v3126
          %3146 = vmatprep.subr.bf16.mxu0 0
          %3147 = vmatpush1.bf16.msra.mxu0 %v3127
          %3148 = vmatprep.subr.bf16.mxu0 0
          %3149 = vmatpush1.bf16.msra.mxu0 %v3128
          %3150 = vmatprep.subr.bf16.mxu0 0
          %3151 = vmatpush1.bf16.msra.mxu0 %v3129
          %3152 = vmatprep.subr.bf16.mxu0 0
          %3153 = vmatpush1.bf16.msra.mxu0 %v3130
          %3154 = vmatprep.subr.bf16.mxu0 0
          %3155 = vmatpush1.bf16.msra.mxu0 %v3131
          %3156 = vmatprep.subr.bf16.mxu0 0
          %3157 = vmatpush1.bf16.msra.mxu0 0
          %3158 = vmatprep.subr.bf16.mxu0 0
          %3159 = vmatpush1.bf16.msra.mxu0 0
          %3160 = vmatprep.subr.bf16.mxu0 0
          %3161 = vmatpush1.bf16.msra.mxu0 0
          %3162 = vmatprep.subr.bf16.mxu0 0
          %3163 = vmatpush1.bf16.msra.mxu0 0
          %3164 = vmatprep.subr.bf16.mxu0 0
          %3165 = vmatpush1.bf16.msra.mxu0 0
          %3166 = vmatprep.subr.bf16.mxu0 0
          %3167 = vmatpush1.bf16.msra.mxu0 0
          %3168 = vmatprep.subr.bf16.mxu0 0
          %3169 = vmatpush1.bf16.msra.mxu0 0
          %3170 = vmatprep.subr.bf16.mxu0 0
          %3171 = vmatpush1.bf16.msra.mxu0 0
          %3172 = vmatprep.mubr.bf16.mxu0 0
          %3173 = vmatmul.mubr.bf16.gmra.mrb[0].mxu0 %v2849
          %v3174 = vpop.f32.mrb[0].mxu0
          %v3175 = vadd.f32 %v2982, %v3174
          %v3176 = vpop.f32.mrb[0].mxu0
          %v3177 = vpop.f32.mrb[0].mxu0
          %v3178 = vpop.f32.mrb[0].mxu0
          %3179 = vdwg.mxu0
          %v3180 = vadd.f32 %v3175, %v3087
          %v3181 = vld [vmem:[%s191] sm:$0x1]
          %v3183 = vlaneseq
          %v3184 = vshrl.u32 %v3183, 7
          %v3185 = vsub.s32 0, %v3184
          %v3186 = vrot.slane %v3181, %v3185
          %v3188 = vadd.f32 %v3180, %v3186
          %v3189 = vsub.f32 0.0, %v3188
          %v3190 = vmul.f32 %v3189, 1.442695
          %v3191 = vpow.pop %v3190
          %v3192 = vadd.f32 %v3191, 1.0
          %v3193 = vrcp.pop %v3192
          %v3194 = vmul.f32 %v3188, %v3193
          %3195 = vst [vmem:[#allocation2 + $0x8] sm:$0x3] %v3194
        $region68: #{forward.1} parent=31 // pred_fallthru
          _
        %p3196 = scmp.eq.s32.totalorder %s17, 8
        // Predicated region
        $region69: #{forward.1} parent=31 // pred_check
          %p3197 = pneg %p3196
        $region70: #{forward.1} parent=31 // pred_check_branch
          %3199 = sbr.rel (%p3197) target = $region72
        $region71: #{forward.1} parent=31 // pred_region
          %v3200 = vld [vmem:[#allocation2 + $0x8] sm:$0x3]
          %v3201 = vpack.c.bf16 %v3200, %v3200
          %v3202 = vld [vmem:[%s167] sm:$0xf]
          %v3203 = vld [vmem:[%s167 + $0x4] sm:$0xf]
          %v3204 = vld [vmem:[%s167 + $0x8] sm:$0xf]
          %v3205 = vld [vmem:[%s167 + $0xc] sm:$0xf]
          %v3206 = vld [vmem:[%s167 + $0x10] sm:$0xf]
          %v3207 = vld [vmem:[%s167 + $0x14] sm:$0xf]
          %v3208 = vld [vmem:[%s167 + $0x18] sm:$0xf]
          %v3209 = vld [vmem:[%s167 + $0x1c] sm:$0xf]
          %v3210 = vld [vmem:[%s167 + $0x20] sm:$0xf]
          %v3211 = vld [vmem:[%s167 + $0x24] sm:$0xf]
          %v3212 = vld [vmem:[%s167 + $0x28] sm:$0xf]
          %v3213 = vld [vmem:[%s167 + $0x2c] sm:$0xf]
          %v3214 = vld [vmem:[%s167 + $0x30] sm:$0xf]
          %v3215 = vld [vmem:[%s167 + $0x34] sm:$0xf]
          %v3216 = vld [vmem:[%s167 + $0x38] sm:$0xf]
          %v3217 = vld [vmem:[%s167 + $0x3c] sm:$0xf]
          %v3218 = vld [vmem:[%s191] sm:$0x1]
          %v3220 = vlaneseq
          %v3221 = vshrl.u32 %v3220, 7
          %v3222 = vsub.s32 0, %v3221
          %v3223 = vrot.slane %v3218, %v3222
          %v3241 = vunpack.c.l.b16 %v3202
          %v3242 = vunpack.c.l.b16 %v3203
          %v3243 = vunpack.c.l.b16 %v3204
          %v3244 = vunpack.c.l.b16 %v3205
          %v3245 = vunpack.c.l.b16 %v3206
          %v3246 = vunpack.c.l.b16 %v3207
          %v3247 = vunpack.c.l.b16 %v3208
          %v3248 = vunpack.c.l.b16 %v3209
          %v3249 = vunpack.c.l.b16 %v3210
          %v3250 = vunpack.c.l.b16 %v3211
          %v3251 = vunpack.c.l.b16 %v3212
          %v3252 = vunpack.c.l.b16 %v3213
          %v3253 = vunpack.c.l.b16 %v3214
          %v3254 = vunpack.c.l.b16 %v3215
          %v3255 = vunpack.c.l.b16 %v3216
          %v3256 = vunpack.c.l.b16 %v3217
          %v3257 = vpack.c.b16 %v3242, %v3241
          %v3258 = vpack.c.b16 %v3244, %v3243
          %v3259 = vpack.c.b16 %v3246, %v3245
          %v3260 = vpack.c.b16 %v3248, %v3247
          %v3261 = vpack.c.b16 %v3250, %v3249
          %v3262 = vpack.c.b16 %v3252, %v3251
          %v3263 = vpack.c.b16 %v3254, %v3253
          %v3264 = vpack.c.b16 %v3256, %v3255
          %3273 = vmatprep.subr.bf16.mxu0 0
          %3274 = vmatpush1.bf16.msra.mxu0 %v3257
          %3275 = vmatprep.subr.bf16.mxu0 0
          %3276 = vmatpush1.bf16.msra.mxu0 %v3258
          %3277 = vmatprep.subr.bf16.mxu0 0
          %3278 = vmatpush1.bf16.msra.mxu0 %v3259
          %3279 = vmatprep.subr.bf16.mxu0 0
          %3280 = vmatpush1.bf16.msra.mxu0 %v3260
          %3281 = vmatprep.subr.bf16.mxu0 0
          %3282 = vmatpush1.bf16.msra.mxu0 %v3261
          %3283 = vmatprep.subr.bf16.mxu0 0
          %3284 = vmatpush1.bf16.msra.mxu0 %v3262
          %3285 = vmatprep.subr.bf16.mxu0 0
          %3286 = vmatpush1.bf16.msra.mxu0 %v3263
          %3287 = vmatprep.subr.bf16.mxu0 0
          %3288 = vmatpush1.bf16.msra.mxu0 %v3264
          %3289 = vmatprep.subr.bf16.mxu0 0
          %3290 = vmatpush1.bf16.msra.mxu0 0
          %3291 = vmatprep.subr.bf16.mxu0 0
          %3292 = vmatpush1.bf16.msra.mxu0 0
          %3293 = vmatprep.subr.bf16.mxu0 0
          %3294 = vmatpush1.bf16.msra.mxu0 0
          %3295 = vmatprep.subr.bf16.mxu0 0
          %3296 = vmatpush1.bf16.msra.mxu0 0
          %3297 = vmatprep.subr.bf16.mxu0 0
          %3298 = vmatpush1.bf16.msra.mxu0 0
          %3299 = vmatprep.subr.bf16.mxu0 0
          %3300 = vmatpush1.bf16.msra.mxu0 0
          %3301 = vmatprep.subr.bf16.mxu0 0
          %3302 = vmatpush1.bf16.msra.mxu0 0
          %3303 = vmatprep.subr.bf16.mxu0 0
          %3304 = vmatpush1.bf16.msra.mxu0 0
          %3305 = vmatprep.mubr.bf16.mxu0 0
          %3306 = vmatmul.mubr.bf16.gmra.mrb[0].mxu0 %v3201
          %v3307 = vpop.f32.mrb[0].mxu0
          %v3308 = vadd.f32 %v3223, %v3307
          %v3309 = vpop.f32.mrb[0].mxu0
          %v3310 = vpop.f32.mrb[0].mxu0
          %v3311 = vpop.f32.mrb[0].mxu0
          %3312 = vdwg.mxu0
          %3313 = vst [vmem:[#allocation2 + $0x8] sm:$0x3] %v3308
          %v3314 = vlaneseq
          %v3315 = vand.u32 %v3314, 127
          %vm3316 = vcmp.lt.s32.totalorder %v3315, 1
          %v3317 = vsel %vm3316, %v3308, 0.0
          %vm3318 = vcmask 1041408
          %v3319 = vsel %vm3318, %v3317, 0.0
          %3320 = vadd.xlane.f32.xlu0 %v3319
          %v3321 = vpop.xlane.xlu0 %3320
          %v3322 = vsub.f32 0.0, %v3321
          %v3323 = vmul.f32 %v3322, 1.442695
          %v3324 = vpow.pop %v3323
          %v3325 = vadd.f32 %v3324, 1.0
          %v3326 = vrcp.pop %v3325
          %3327 = vst [vmem:[%s3] sm:$0xff] 0.0
          %vm3328 = vcmask 1024
          %3329 = vst.msk [vmem:[%s3] sm:$0x3] %vm3328, %v3326
        $region72: #{forward.1} parent=31 // pred_fallthru
          _
        // Predicated region
        $region73: #{forward.1} parent=31 // pred_check
          %p3330 = pneg %p103
        $region74: #{forward.1} parent=31 // pred_check_branch
          %3332 = sbr.rel (%p3330) target = $region76
        $region75: #{forward.1} parent=31 // pred_region
          _
        $region76: #{forward.1} parent=31 // pred_fallthru
          _
        // Predicated region
        $region77: #{forward.1} parent=31 // pred_check
          %p3333 = pneg %p103
        $region78: #{forward.1} parent=31 // pred_check_branch
          %3335 = sbr.rel (%p3333) target = $region80
        $region79: #{forward.1} parent=31 // pred_region
          _
        $region80: #{forward.1} parent=31 // pred_fallthru
          _
      $region32: #{forward.1} parent=5 // pred_fallthru
        _
      %p3336 = scmp.le.s32.totalorder 2, %s12
      // Predicated region
      $region81: #{forward.1} parent=5 // pred_check
        %p3337 = pneg %p3336
      $region82: #{forward.1} parent=5 // pred_check_branch
        %3339 = sbr.rel (%p3337) target = $region84
      $region83: #{forward.1} parent=5 // pred_region
        %s3340 = ssub.s32 %s12, 2
      $region84: #{forward.1} parent=5 // pred_fallthru
        _
    $region6: #{forward.1} parent=1 // loop_footer
      %s16 = sadd.s32 1, %s12
    $region7: #{forward.1} parent=1 // loop_footer_branch
      %11 = sbr.rel target = $region3
    $region8: #{forward.1} parent=1 // loop_exit
      _
    %3341 = vsyncpa [#allocation4], 1
    %s3342 = scalar_lea.sflag [#allocation4], 1
    %3343 = vsyncpa %s3342, 1

</llo_original>
